<compile_context>
chip_gen: v7x
topology: tpu7x:2x2x1
jax: 0.10.0
libtpu: 0.0.40
codegen_flags: <defaults>
</compile_context>

<pallas_src>
import jax
import jax.numpy as jnp
import numpy as np
from jax import lax
from jax.experimental import pallas as pl
from jax.experimental.pallas import tpu as pltpu

# Make the pure-JAX reference run the MXU in f32 too (the kernel already pins
# precision explicitly), so the correctness comparison is apples-to-apples.
jax.config.update("jax_default_matmul_precision", "highest")

# Contract the last dim of both operands:  A @ B.T  without materializing B.T.
_NT = (((1,), (1,)), ((), ()))
_PREC = lax.Precision.HIGHEST


def _make_grn_kernel(rc, bf16_gate):
    """Kernel factory; `rc` (row-chunk sublanes) and `bf16_gate` are static."""

    def grn_kernel(a1_ref, a2_ref, wbf_ref, w1_ref, w2t_ref, bias_ref,
                   scal_ref, out_ref):
        _, TL1, E = a1_ref.shape
        TL2 = a2_ref.shape[1]
        K = w1_ref.shape[1] // 2

        a2 = a2_ref[0]          # (TL2, E)
        wbf = wbf_ref[...]      # (E, K*E)   lane-dense bilinear weight, 0.5*u_k folded in
        w1 = w1_ref[...]        # (E, 2K)    [Wd[:E] | 0.5*Wg[:E]]

        # arg2-side projections produced directly in transposed (2K, TL2)
        # layout with the gate bias folded in once -> per-k access is a cheap
        # sublane-row read, no XLU transposes in the k-loop.
        p2t = lax.dot_general(w2t_ref[...], a2, _NT, precision=_PREC,
                              preferred_element_type=jnp.float32) + bias_ref[...]

        # SMEM scalars: scal[:K] = 0.5*u, scal[K] = sum_k u[k]*b[k]
        half_u = [scal_ref[k] for k in range(K)]
        ub_sum = scal_ref[K]

        def row_chunk(r0):
            # Per-chunk live set: acc/btp/sln/tg = 4 * rc*TL2*4B <= ~128 KiB.
            a1c = a1_ref[0, pl.ds(r0, rc), :]                               # (rc, E)
            p1 = jnp.dot(a1c, w1, precision=_PREC,
                         preferred_element_type=jnp.float32)                # (rc, 2K)
            # Bilinear stage 1: one lane-dense (rc,E) x (E,K*E) matmul for all K.
            t_all = jnp.dot(a1c, wbf, precision=_PREC,
                            preferred_element_type=jnp.float32)             # (rc, K*E)

            # Accumulator starts at the hoisted constant sum_k u[k]*b[k].
            acc = jnp.full((rc, TL2), ub_sum, dtype=jnp.float32)

            # K (output_dim) is small & static -> unrolled Python loop.
            for k in range(K):
                # btp already carries the 0.5*u_k scale (folded into wbf).
                btp = lax.dot_general(t_all[:, k * E:(k + 1) * E], a2, _NT,
                                      precision=_PREC,
                                      preferred_element_type=jnp.float32)   # (rc, TL2)
                sln = half_u[k] * jnp.tanh(p1[:, k:k + 1] + p2t[k:k + 1, :])
                # Gate pre-activation carries the 0.5 scale from the weights:
                # sigmoid(z) = 0.5 + 0.5*tanh(z/2)  -> single EUP push.
                zg = p1[:, K + k:K + k + 1] + p2t[K + k:K + k + 1, :]
                if bf16_gate:
                    tg = jnp.tanh(zg.astype(jnp.bfloat16)).astype(jnp.float32)
                else:
                    tg = jnp.tanh(zg)
                # u_k*(g*btp_raw + (1-g)*sln_raw) == (btp + sln) + tg*(btp - sln)
                acc = acc + ((btp + sln) + tg * (btp - sln))

            out_ref[0, pl.ds(r0, rc), :] = acc

        nchunks = TL1 // rc
        if nchunks == 1:
            row_chunk(0)
        else:
            # fori_loop (not a Python loop) so the scheduler gets a hard
            # live-range boundary per chunk; no unroll to keep vreg pressure low.
            def body(c, carry):
                row_chunk(pl.multiple_of(c * rc, rc))
                return carry
            lax.fori_loop(0, nchunks, body, 0, unroll=False)

    return grn_kernel


def _pick_tile(n, cap, quantum):
    """Largest divisor of n that is <= cap and a multiple of `quantum`;
    falls back to n (a full dimension is always a legal block).
    NOTE: for a large prime n this returns the full dim — pad upstream if that
    blows the intended VMEM budget."""
    if n <= cap:
        return n
    t = (cap // quantum) * quantum
    while t >= quantum:
        if n % t == 0:
            return t
        t -= quantum
    return n


def _row_chunk(tl1):
    """Row-chunk size (<=32 sublanes) that divides the L1 tile."""
    if tl1 <= 32:
        return tl1
    for rc in (32, 16, 8):
        if tl1 % rc == 0:
            return rc
    return tl1


def gated_relevance_network(arg1, arg2, Wb, Wd, Wg, bg, b, u, *,
                            max_tl1=128, max_tl2=256, bf16_gate=False):
    arg1 = jnp.asarray(arg1, jnp.float32)
    arg2 = jnp.asarray(arg2, jnp.float32)
    Wb = jnp.asarray(Wb, jnp.float32)
    Wd = jnp.asarray(Wd, jnp.float32)
    Wg = jnp.asarray(Wg, jnp.float32)
    bg = jnp.asarray(bg, jnp.float32)
    b = jnp.asarray(b, jnp.float32)
    u = jnp.asarray(u, jnp.float32)

    B, L1, E = arg1.shape
    _, L2, _ = arg2.shape
    K = Wb.shape[0]

    # Lane-dense output branch: if L2 would produce masked (<128-lane) output
    # stores but L1 is lane-dense, compute the (B, L2, L1) transpose by
    # swapping operand roles (Wb transposed per k, Wd/Wg halves swapped),
    # then swap axes back at the end.
    swap = (L2 < 128) and (L1 >= 128)
    if swap:
        arg1, arg2 = arg2, arg1
        L1, L2 = L2, L1
        Wb = jnp.transpose(Wb, (0, 2, 1))
        Wd = jnp.concatenate([Wd[E:], Wd[:E]], axis=0)
        Wg = jnp.concatenate([Wg[E:], Wg[:E]], axis=0)

    # ---- parameter preprocessing (tiny, once per call) ----------------------
    uvec = u.reshape(K)
    # Fold 0.5*u_k into the bilinear weight columns; lane-dense layout:
    #   wb_flat[e, k*E + f] = 0.5*u_k * Wb[k, e, f]
    wb_flat = jnp.transpose(Wb * (0.5 * uvec)[:, None, None],
                            (1, 0, 2)).reshape(E, K * E)
    # Fused dense+gate projections; gate half pre-scaled by 0.5 so the kernel
    # uses sigmoid(z) = 0.5 + 0.5*tanh(z/2) with a single tanh per gate.
    w1 = jnp.concatenate([Wd[:E], 0.5 * Wg[:E]], axis=1)                 # (E, 2K)
    w2t = jnp.concatenate([Wd[E:], 0.5 * Wg[E:]], axis=1).T              # (2K, E)
    bias = jnp.concatenate([jnp.zeros((K,), jnp.float32),
                            0.5 * bg]).reshape(2 * K, 1)                 # (2K, 1)
    scal = jnp.concatenate([0.5 * uvec,
                            jnp.sum(uvec * b).reshape(1)])               # (K+1,) SMEM

    # ---- tiling --------------------------------------------------------------
    TL1 = _pick_tile(L1, max_tl1, 8)      # sublane-dim tile
    TL2 = _pick_tile(L2, max_tl2, 128)    # lane-dim tile (kept lane-dense)
    RC = _row_chunk(TL1)                  # in-kernel epilogue chunk
    # Batch is a grid axis (one element per step): hard live-range boundary and
    # >=B parallel steps for the v7x megacore.  Innermost axis = L1 tiles, so
    # arg2's (larger) tile is held constant / skip-DMA'd across it.
    grid = (B, L2 // TL2, L1 // TL1)

    out = pl.pallas_call(
        _make_grn_kernel(RC, bf16_gate),
        out_shape=jax.ShapeDtypeStruct((B, L1, L2), jnp.float32),
        grid=grid,
        in_specs=[
            pl.BlockSpec((1, TL1, E), lambda gb, gj, gi: (gb, gi, 0)),    # arg1 tile
            pl.BlockSpec((1, TL2, E), lambda gb, gj, gi: (gb, gj, 0)),    # arg2 tile
            # Grid-invariant weights (constant index maps -> fetched once).
            pl.BlockSpec((E, K * E), lambda gb, gj, gi: (0, 0)),          # 0.5*u-scaled Wb
            pl.BlockSpec((E, 2 * K), lambda gb, gj, gi: (0, 0)),          # [Wd|0.5*Wg] (arg1 side)
            pl.BlockSpec((2 * K, E), lambda gb, gj, gi: (0, 0)),          # [Wd|0.5*Wg]^T (arg2 side)
            pl.BlockSpec((2 * K, 1), lambda gb, gj, gi: (0, 0)),          # gate bias (0.5*bg)
            pl.BlockSpec(memory_space=pltpu.MemorySpace.SMEM),            # 0.5*u, sum u*b
        ],
        out_specs=pl.BlockSpec((1, TL1, TL2), lambda gb, gj, gi: (gb, gi, gj)),
        compiler_params=pltpu.CompilerParams(
            dimension_semantics=("parallel", "parallel", "parallel"),
            vmem_limit_bytes=32 * 1024 * 1024),
    )(arg1, arg2, wb_flat, w1, w2t, bias, scal)

    if swap:
        out = jnp.swapaxes(out, 1, 2)
    return out


def grn_reference(arg1, arg2, Wb, Wd, Wg, bg, b, u):
    """Pure-JAX mirror of the PyTorch forward for verification."""
    E = arg1.shape[-1]
    btp = jnp.einsum('bie,kef,bjf->bijk', arg1, Wb, arg2)
    d1 = jnp.einsum('bie,ek->bik', arg1, Wd[:E])
    d2 = jnp.einsum('bje,ek->bjk', arg2, Wd[E:])
    sln = jnp.tanh(d1[:, :, None, :] + d2[:, None, :, :])
    p1 = jnp.einsum('bie,ek->bik', arg1, Wg[:E])
    p2 = jnp.einsum('bje,ek->bjk', arg2, Wg[E:])
    g = jax.nn.sigmoid(p1[:, :, None, :] + p2[:, None, :, :] + bg)
    s = g * btp + (1.0 - g) * sln + b
    return jnp.einsum('bijk,k->bij', s, u[:, 0])


if __name__ == "__main__":
    E, K = 32, 4

    key = jax.random.PRNGKey(0)
    ks = jax.random.split(key, 6)
    # Parameters: torch.rand -> uniform [0, 1), deterministic here.
    Wb = jax.random.uniform(ks[0], (K, E, E), jnp.float32)
    Wd = jax.random.uniform(ks[1], (2 * E, K), jnp.float32)
    Wg = jax.random.uniform(ks[2], (2 * E, K), jnp.float32)
    bg = jax.random.uniform(ks[3], (K,), jnp.float32)
    b = jax.random.uniform(ks[4], (K,), jnp.float32)
    u = jax.random.uniform(ks[5], (K, 1), jnp.float32)

    # Shapes exercising: (a) tiny smoke test, (b) the lane-dense transpose
    # branch (L2 < 128 <= L1), (c) the chunked (fori_loop) epilogue path.
    for (B, L1, L2) in [(2, 8, 8), (2, 128, 16), (1, 64, 128)]:
        k1, k2 = jax.random.split(jax.random.fold_in(key, 1000 * L1 + L2), 2)
        arg1 = jax.random.normal(k1, (B, L1, E), jnp.float32)
        arg2 = jax.random.normal(k2, (B, L2, E), jnp.float32)

        out = gated_relevance_network(arg1, arg2, Wb, Wd, Wg, bg, b, u)
        out = jax.block_until_ready(out)
        assert out.shape == (B, L1, L2)

        ref = grn_reference(arg1, arg2, Wb, Wd, Wg, bg, b, u)
        np.testing.assert_allclose(np.asarray(out), np.asarray(ref),
                                   rtol=2e-4, atol=1e-3)

    print("KERNEL_OK")
</pallas_src>

<mosaic_0001>
module attributes {stable_mosaic.version = 11 : i64} {
  func.func @grn_kernel(%arg0: i32, %arg1: i32, %arg2: i32, %arg3: memref<1x8x32xf32, #tpu.memory_space<vmem>>, %arg4: memref<1x8x32xf32, #tpu.memory_space<vmem>>, %arg5: memref<32x128xf32, #tpu.memory_space<vmem>>, %arg6: memref<32x8xf32, #tpu.memory_space<vmem>>, %arg7: memref<8x32xf32, #tpu.memory_space<vmem>>, %arg8: memref<8x1xf32, #tpu.memory_space<vmem>>, %arg9: memref<5xf32, #tpu.memory_space<smem>>, %arg10: memref<1x8x8xf32, #tpu.memory_space<vmem>>) attributes {dimension_semantics = [#tpu.dimension_semantics<parallel>, #tpu.dimension_semantics<parallel>, #tpu.dimension_semantics<parallel>], iteration_bounds = array<i64: 2, 1, 1>, scalar_prefetch = 0 : i64, scratch_operands = 0 : i64, tpu.core_type = #tpu.core_type<tc>, window_params = [{transform_indices = @transform_0, window_bounds = array<i64: 1, 8, 32>}, {transform_indices = @transform_1, window_bounds = array<i64: 1, 8, 32>}, {pipeline_mode = #tpu.pipeline_mode<synchronous>, transform_indices = @transform_2, window_bounds = array<i64: 32, 128>}, {pipeline_mode = #tpu.pipeline_mode<synchronous>, transform_indices = @transform_3, window_bounds = array<i64: 32, 8>}, {pipeline_mode = #tpu.pipeline_mode<synchronous>, transform_indices = @transform_4, window_bounds = array<i64: 8, 32>}, {pipeline_mode = #tpu.pipeline_mode<synchronous>, transform_indices = @transform_5, window_bounds = array<i64: 8, 1>}, {transform_indices = @transform_6, window_bounds = array<i64: 5>}, {transform_indices = @transform_7, window_bounds = array<i64: 1, 8, 8>}]} {
    %c0 = arith.constant 0 : index
    %c0_0 = arith.constant 0 : index
    %c0_1 = arith.constant 0 : index
    %0 = vector.load %arg4[%c0, %c0_0, %c0_1] : memref<1x8x32xf32, #tpu.memory_space<vmem>>, vector<1x8x32xf32>
    %1 = vector.shape_cast %0 : vector<1x8x32xf32> to vector<8x32xf32>
    %c0_2 = arith.constant 0 : index
    %c0_3 = arith.constant 0 : index
    %2 = vector.load %arg5[%c0_2, %c0_3] : memref<32x128xf32, #tpu.memory_space<vmem>>, vector<32x128xf32>
    %c0_4 = arith.constant 0 : index
    %c0_5 = arith.constant 0 : index
    %3 = vector.load %arg6[%c0_4, %c0_5] : memref<32x8xf32, #tpu.memory_space<vmem>>, vector<32x8xf32>
    %c0_6 = arith.constant 0 : index
    %c0_7 = arith.constant 0 : index
    %4 = vector.load %arg7[%c0_6, %c0_7] : memref<8x32xf32, #tpu.memory_space<vmem>>, vector<8x32xf32>
    %cst = arith.constant dense<0.000000e+00> : vector<8x8xf32>
    %5 = tpu.matmul %4, %1, %cst {dimension_numbers = #tpu.dot_dimension_numbers<[1], [1], [0], [0], [0, 0, 1, 0], [], []>, precision = #tpu.contract_precision<fp32>} : vector<8x32xf32>, vector<8x32xf32>, vector<8x8xf32> -> vector<8x8xf32>
    %c0_8 = arith.constant 0 : index
    %c0_9 = arith.constant 0 : index
    %6 = vector.load %arg8[%c0_8, %c0_9] : memref<8x1xf32, #tpu.memory_space<vmem>>, vector<8x1xf32>
    %7 = vector.broadcast %6 : vector<8x1xf32> to vector<8x8xf32>
    %8 = arith.addf %5, %7 : vector<8x8xf32>
    %c0_10 = arith.constant 0 : index
    %9 = memref.load %arg9[%c0_10] : memref<5xf32, #tpu.memory_space<smem>>
    %c1 = arith.constant 1 : index
    %10 = memref.load %arg9[%c1] : memref<5xf32, #tpu.memory_space<smem>>
    %c2 = arith.constant 2 : index
    %11 = memref.load %arg9[%c2] : memref<5xf32, #tpu.memory_space<smem>>
    %c3 = arith.constant 3 : index
    %12 = memref.load %arg9[%c3] : memref<5xf32, #tpu.memory_space<smem>>
    %c4 = arith.constant 4 : index
    %13 = memref.load %arg9[%c4] : memref<5xf32, #tpu.memory_space<smem>>
    %c0_11 = arith.constant 0 : index
    %c0_12 = arith.constant 0 : index
    %c0_13 = arith.constant 0 : index
    %14 = vector.load %arg3[%c0_11, %c0_12, %c0_13] : memref<1x8x32xf32, #tpu.memory_space<vmem>>, vector<1x8x32xf32>
    %15 = vector.shape_cast %14 : vector<1x8x32xf32> to vector<8x32xf32>
    %cst_14 = arith.constant dense<0.000000e+00> : vector<8x8xf32>
    %16 = tpu.matmul %15, %3, %cst_14 {dimension_numbers = #tpu.dot_dimension_numbers<[1], [0], [0], [1], [0, 0, 1, 1], [], []>, precision = #tpu.contract_precision<fp32>} : vector<8x32xf32>, vector<32x8xf32>, vector<8x8xf32> -> vector<8x8xf32>
    %cst_15 = arith.constant dense<0.000000e+00> : vector<8x128xf32>
    %17 = tpu.matmul %15, %2, %cst_15 {dimension_numbers = #tpu.dot_dimension_numbers<[1], [0], [0], [1], [0, 0, 1, 1], [], []>, precision = #tpu.contract_precision<fp32>} : vector<8x32xf32>, vector<32x128xf32>, vector<8x128xf32> -> vector<8x128xf32>
    %18 = vector.broadcast %13 : f32 to vector<8x8xf32>
    %19 = vector.extract_strided_slice %17 {offsets = [0, 0], sizes = [8, 32], strides = [1, 1]} : vector<8x128xf32> to vector<8x32xf32>
    %cst_16 = arith.constant dense<0.000000e+00> : vector<8x8xf32>
    %20 = tpu.matmul %19, %1, %cst_16 {dimension_numbers = #tpu.dot_dimension_numbers<[1], [1], [0], [0], [0, 0, 1, 0], [], []>, precision = #tpu.contract_precision<fp32>} : vector<8x32xf32>, vector<8x32xf32>, vector<8x8xf32> -> vector<8x8xf32>
    %21 = vector.extract_strided_slice %16 {offsets = [0, 0], sizes = [8, 1], strides = [1, 1]} : vector<8x8xf32> to vector<8x1xf32>
    %22 = vector.extract_strided_slice %8 {offsets = [0, 0], sizes = [1, 8], strides = [1, 1]} : vector<8x8xf32> to vector<1x8xf32>
    %23 = vector.broadcast %21 : vector<8x1xf32> to vector<8x8xf32>
    %24 = vector.broadcast %22 : vector<1x8xf32> to vector<8x8xf32>
    %25 = arith.addf %23, %24 : vector<8x8xf32>
    %26 = math.tanh %25 : vector<8x8xf32>
    %27 = vector.broadcast %9 : f32 to vector<8x8xf32>
    %28 = arith.mulf %27, %26 : vector<8x8xf32>
    %29 = vector.extract_strided_slice %16 {offsets = [0, 4], sizes = [8, 1], strides = [1, 1]} : vector<8x8xf32> to vector<8x1xf32>
    %30 = vector.extract_strided_slice %8 {offsets = [4, 0], sizes = [1, 8], strides = [1, 1]} : vector<8x8xf32> to vector<1x8xf32>
    %31 = vector.broadcast %29 : vector<8x1xf32> to vector<8x8xf32>
    %32 = vector.broadcast %30 : vector<1x8xf32> to vector<8x8xf32>
    %33 = arith.addf %31, %32 : vector<8x8xf32>
    %34 = math.tanh %33 : vector<8x8xf32>
    %35 = arith.addf %20, %28 : vector<8x8xf32>
    %36 = arith.subf %20, %28 : vector<8x8xf32>
    %37 = arith.mulf %34, %36 : vector<8x8xf32>
    %38 = arith.addf %35, %37 : vector<8x8xf32>
    %39 = arith.addf %18, %38 : vector<8x8xf32>
    %40 = vector.extract_strided_slice %17 {offsets = [0, 32], sizes = [8, 32], strides = [1, 1]} : vector<8x128xf32> to vector<8x32xf32>
    %cst_17 = arith.constant dense<0.000000e+00> : vector<8x8xf32>
    %41 = tpu.matmul %40, %1, %cst_17 {dimension_numbers = #tpu.dot_dimension_numbers<[1], [1], [0], [0], [0, 0, 1, 0], [], []>, precision = #tpu.contract_precision<fp32>} : vector<8x32xf32>, vector<8x32xf32>, vector<8x8xf32> -> vector<8x8xf32>
    %42 = vector.extract_strided_slice %16 {offsets = [0, 1], sizes = [8, 1], strides = [1, 1]} : vector<8x8xf32> to vector<8x1xf32>
    %43 = vector.extract_strided_slice %8 {offsets = [1, 0], sizes = [1, 8], strides = [1, 1]} : vector<8x8xf32> to vector<1x8xf32>
    %44 = vector.broadcast %42 : vector<8x1xf32> to vector<8x8xf32>
    %45 = vector.broadcast %43 : vector<1x8xf32> to vector<8x8xf32>
    %46 = arith.addf %44, %45 : vector<8x8xf32>
    %47 = math.tanh %46 : vector<8x8xf32>
    %48 = vector.broadcast %10 : f32 to vector<8x8xf32>
    %49 = arith.mulf %48, %47 : vector<8x8xf32>
    %50 = vector.extract_strided_slice %16 {offsets = [0, 5], sizes = [8, 1], strides = [1, 1]} : vector<8x8xf32> to vector<8x1xf32>
    %51 = vector.extract_strided_slice %8 {offsets = [5, 0], sizes = [1, 8], strides = [1, 1]} : vector<8x8xf32> to vector<1x8xf32>
    %52 = vector.broadcast %50 : vector<8x1xf32> to vector<8x8xf32>
    %53 = vector.broadcast %51 : vector<1x8xf32> to vector<8x8xf32>
    %54 = arith.addf %52, %53 : vector<8x8xf32>
    %55 = math.tanh %54 : vector<8x8xf32>
    %56 = arith.addf %41, %49 : vector<8x8xf32>
    %57 = arith.subf %41, %49 : vector<8x8xf32>
    %58 = arith.mulf %55, %57 : vector<8x8xf32>
    %59 = arith.addf %56, %58 : vector<8x8xf32>
    %60 = arith.addf %39, %59 : vector<8x8xf32>
    %61 = vector.extract_strided_slice %17 {offsets = [0, 64], sizes = [8, 32], strides = [1, 1]} : vector<8x128xf32> to vector<8x32xf32>
    %cst_18 = arith.constant dense<0.000000e+00> : vector<8x8xf32>
    %62 = tpu.matmul %61, %1, %cst_18 {dimension_numbers = #tpu.dot_dimension_numbers<[1], [1], [0], [0], [0, 0, 1, 0], [], []>, precision = #tpu.contract_precision<fp32>} : vector<8x32xf32>, vector<8x32xf32>, vector<8x8xf32> -> vector<8x8xf32>
    %63 = vector.extract_strided_slice %16 {offsets = [0, 2], sizes = [8, 1], strides = [1, 1]} : vector<8x8xf32> to vector<8x1xf32>
    %64 = vector.extract_strided_slice %8 {offsets = [2, 0], sizes = [1, 8], strides = [1, 1]} : vector<8x8xf32> to vector<1x8xf32>
    %65 = vector.broadcast %63 : vector<8x1xf32> to vector<8x8xf32>
    %66 = vector.broadcast %64 : vector<1x8xf32> to vector<8x8xf32>
    %67 = arith.addf %65, %66 : vector<8x8xf32>
    %68 = math.tanh %67 : vector<8x8xf32>
    %69 = vector.broadcast %11 : f32 to vector<8x8xf32>
    %70 = arith.mulf %69, %68 : vector<8x8xf32>
    %71 = vector.extract_strided_slice %16 {offsets = [0, 6], sizes = [8, 1], strides = [1, 1]} : vector<8x8xf32> to vector<8x1xf32>
    %72 = vector.extract_strided_slice %8 {offsets = [6, 0], sizes = [1, 8], strides = [1, 1]} : vector<8x8xf32> to vector<1x8xf32>
    %73 = vector.broadcast %71 : vector<8x1xf32> to vector<8x8xf32>
    %74 = vector.broadcast %72 : vector<1x8xf32> to vector<8x8xf32>
    %75 = arith.addf %73, %74 : vector<8x8xf32>
    %76 = math.tanh %75 : vector<8x8xf32>
    %77 = arith.addf %62, %70 : vector<8x8xf32>
    %78 = arith.subf %62, %70 : vector<8x8xf32>
    %79 = arith.mulf %76, %78 : vector<8x8xf32>
    %80 = arith.addf %77, %79 : vector<8x8xf32>
    %81 = arith.addf %60, %80 : vector<8x8xf32>
    %82 = vector.extract_strided_slice %17 {offsets = [0, 96], sizes = [8, 32], strides = [1, 1]} : vector<8x128xf32> to vector<8x32xf32>
    %cst_19 = arith.constant dense<0.000000e+00> : vector<8x8xf32>
    %83 = tpu.matmul %82, %1, %cst_19 {dimension_numbers = #tpu.dot_dimension_numbers<[1], [1], [0], [0], [0, 0, 1, 0], [], []>, precision = #tpu.contract_precision<fp32>} : vector<8x32xf32>, vector<8x32xf32>, vector<8x8xf32> -> vector<8x8xf32>
    %84 = vector.extract_strided_slice %16 {offsets = [0, 3], sizes = [8, 1], strides = [1, 1]} : vector<8x8xf32> to vector<8x1xf32>
    %85 = vector.extract_strided_slice %8 {offsets = [3, 0], sizes = [1, 8], strides = [1, 1]} : vector<8x8xf32> to vector<1x8xf32>
    %86 = vector.broadcast %84 : vector<8x1xf32> to vector<8x8xf32>
    %87 = vector.broadcast %85 : vector<1x8xf32> to vector<8x8xf32>
    %88 = arith.addf %86, %87 : vector<8x8xf32>
    %89 = math.tanh %88 : vector<8x8xf32>
    %90 = vector.broadcast %12 : f32 to vector<8x8xf32>
    %91 = arith.mulf %90, %89 : vector<8x8xf32>
    %92 = vector.extract_strided_slice %16 {offsets = [0, 7], sizes = [8, 1], strides = [1, 1]} : vector<8x8xf32> to vector<8x1xf32>
    %93 = vector.extract_strided_slice %8 {offsets = [7, 0], sizes = [1, 8], strides = [1, 1]} : vector<8x8xf32> to vector<1x8xf32>
    %94 = vector.broadcast %92 : vector<8x1xf32> to vector<8x8xf32>
    %95 = vector.broadcast %93 : vector<1x8xf32> to vector<8x8xf32>
    %96 = arith.addf %94, %95 : vector<8x8xf32>
    %97 = math.tanh %96 : vector<8x8xf32>
    %98 = arith.addf %83, %91 : vector<8x8xf32>
    %99 = arith.subf %83, %91 : vector<8x8xf32>
    %100 = arith.mulf %97, %99 : vector<8x8xf32>
    %101 = arith.addf %98, %100 : vector<8x8xf32>
    %102 = arith.addf %81, %101 : vector<8x8xf32>
    %c0_20 = arith.constant 0 : index
    %c0_21 = arith.constant 0 : index
    %c0_22 = arith.constant 0 : index
    %103 = vector.load %arg10[%c0_20, %c0_21, %c0_22] : memref<1x8x8xf32, #tpu.memory_space<vmem>>, vector<1x8x8xf32>
    %104 = vector.shape_cast %103 : vector<1x8x8xf32> to vector<8x8xf32>
    %105 = vector.shape_cast %102 : vector<8x8xf32> to vector<1x8x8xf32>
    tpu.vector_store %arg10[%c0_20, %c0_21, %c0_22], %105 {strides = array<i32>} : memref<1x8x8xf32, #tpu.memory_space<vmem>>, vector<1x8x8xf32>,
    return
  }
  func.func @transform_0(%arg0: i32, %arg1: i32, %arg2: i32) -> (i32, i32, i32) {
    %c0_i32 = arith.constant 0 : i32
    %c0_i32_0 = arith.constant 0 : i32
    return %arg0, %arg2, %c0_i32 : i32, i32, i32
  }
  func.func @transform_1(%arg0: i32, %arg1: i32, %arg2: i32) -> (i32, i32, i32) {
    %c0_i32 = arith.constant 0 : i32
    %c0_i32_0 = arith.constant 0 : i32
    return %arg0, %arg1, %c0_i32 : i32, i32, i32
  }
  func.func @transform_2(%arg0: i32, %arg1: i32, %arg2: i32) -> (i32, i32) {
    %c0_i32 = arith.constant 0 : i32
    %c0_i32_0 = arith.constant 0 : i32
    %c0_i32_1 = arith.constant 0 : i32
    return %c0_i32, %c0_i32_0 : i32, i32
  }
  func.func @transform_3(%arg0: i32, %arg1: i32, %arg2: i32) -> (i32, i32) {
    %c0_i32 = arith.constant 0 : i32
    %c0_i32_0 = arith.constant 0 : i32
    %c0_i32_1 = arith.constant 0 : i32
    return %c0_i32, %c0_i32_0 : i32, i32
  }
  func.func @transform_4(%arg0: i32, %arg1: i32, %arg2: i32) -> (i32, i32) {
    %c0_i32 = arith.constant 0 : i32
    %c0_i32_0 = arith.constant 0 : i32
    %c0_i32_1 = arith.constant 0 : i32
    return %c0_i32, %c0_i32_0 : i32, i32
  }
  func.func @transform_5(%arg0: i32, %arg1: i32, %arg2: i32) -> (i32, i32) {
    %c0_i32 = arith.constant 0 : i32
    %c0_i32_0 = arith.constant 0 : i32
    %c0_i32_1 = arith.constant 0 : i32
    return %c0_i32, %c0_i32_0 : i32, i32
  }
  func.func @transform_6(%arg0: i32, %arg1: i32, %arg2: i32) -> i32 {
    %c0_i32 = arith.constant 0 : i32
    %c0_i32_0 = arith.constant 0 : i32
    return %c0_i32 : i32
  }
  func.func @transform_7(%arg0: i32, %arg1: i32, %arg2: i32) -> (i32, i32, i32) {
    %c0_i32 = arith.constant 0 : i32
    return %arg0, %arg2, %arg1 : i32, i32, i32
  }
}

</mosaic_0001>

<llo_original>
// kernel: tpu_custom_call.1
$region0: #{tpu_custom_call.1}
  #allocation0 [shape = 'u32[]', space=smem, size = 0x4, offset = 0x4, fixed_abs, tag = 'smem constant byte address 0x4 - core index']
  #allocation1 [shape = 'u32[144,128]{1,0:T(1,128)}', space=vmem, size = 0x12000, scoped, tag = 'internal scratch']
  %s0 = inlined_call_operand.vmem [shape: f32[2,8,32], index: 0, kind: input, shape index: {}]
  %s1 = inlined_call_operand.hbm [shape: f32[2,8,32], index: 1, kind: input, shape index: {}]
  %s2 = inlined_call_operand.vmem [shape: f32[32,128], index: 2, kind: input, shape index: {}]
  %s3 = inlined_call_operand.vmem [shape: f32[32,8], index: 3, kind: input, shape index: {}]
  %s4 = inlined_call_operand.vmem [shape: f32[8,32], index: 4, kind: input, shape index: {}]
  %s5 = inlined_call_operand.vmem [shape: f32[8,1], index: 5, kind: input, shape index: {}]
  %s6 = inlined_call_operand.vmem [shape: f32[5], index: 6, kind: input, shape index: {}]
  %s7 = inlined_call_operand.hbm [shape: f32[2,8,8], index: 7, kind: output, shape index: {}]
  %s8 = sld [smem:[#allocation0]]
  $region69: #{tpu_custom_call.1} parent=0
    _
  %s10 = ssub.s32 1, %s8
  %s11 = scalar_select 0, %s10, %s8
  $region1: #{tpu_custom_call.1} parent=0
    #allocation2 [shape = 'u8[8192]{0}', space=vmem, size = 0x2000, scoped, tag = 'input window, operand 1']
    #allocation3 [shape = 's32[2]{0}', space=sflag, size = 0x8, scoped, tag = 'scoped memory for tpu_custom_call.1']
    #allocation4 [shape = 's32[2]{0}', space=sflag, size = 0x8, scoped, tag = 'scoped memory for tpu_custom_call.1']
    #allocation5 [shape = 's32[2]{0}', space=sflag, size = 0x8, scoped, tag = 'scoped memory for tpu_custom_call.1']
    #allocation6 [shape = 'u8[512]{0}', space=smem, size = 0x200, scoped, tag = 'input window, operand 6, single buffered']
    #allocation7 [shape = 'u8[8192]{0}', space=vmem, size = 0x2000, scoped, tag = 'output window, operand 0']
    %12 = vsyncpa [#allocation3], 0
    %s13 = scalar_lea.sflag [#allocation3], 1
    %14 = vsyncpa %s13, 0
    %15 = vsyncpa [#allocation5], 0
    %16 = vsyncpa [#allocation4], 0
    %s17 = scalar_lea.sflag [#allocation4], 1
    %18 = vsyncpa %s17, 0
    loop: start=0, step=1, limit=4
    $region2: #{tpu_custom_call.1} parent=1 // loop_pre_header
      _
    $region3: #{tpu_custom_call.1} parent=1 // loop_header
      %s20 = sphi 0, %s24
      %p21 = scmp.ge.s32.totalorder %s20, 4
      %s27 = sphi 0, %s46
      %s28 = sphi 0, %s42
      %s29 = sphi 0, %s38
      %s30 = sphi 0, %s27
      %s31 = sphi 0, %s28
      %s32 = sphi 0, %s29
      %s33 = sphi 0, %s30
      %s34 = sphi 0, %s31
      %s35 = sphi 0, %s32
      %s51 = sphi 0, %s53
      %s54 = sphi 0, %s51
      %s55 = sphi 0, %s54
      %s71 = sphi 0, %s55
      %s79 = sphi 0, %s81
      %s82 = sphi 0, %s79
      %s83 = sphi 0, %s82
      %s99 = sphi 0, %s83
      %s103 = sphi 0, %s103
      %s105 = sphi 0, %s103
      %s106 = sphi 0, %s105
      %s120 = sphi 0, %s106
      %s124 = sphi 0, %s124
      %s126 = sphi 0, %s124
      %s127 = sphi 0, %s126
      %s141 = sphi 0, %s127
      %s145 = sphi 0, %s145
      %s147 = sphi 0, %s145
      %s148 = sphi 0, %s147
      %s162 = sphi 0, %s148
      %s166 = sphi 0, %s166
      %s168 = sphi 0, %s166
      %s169 = sphi 0, %s168
      %s183 = sphi 0, %s169
      %s187 = sphi 0, %s187
      %s189 = sphi 0, %s187
      %s190 = sphi 0, %s189
      %s204 = sphi 0, %s190
      %s214 = sphi 0, %s216
      %s217 = sphi 0, %s214
      %s218 = sphi 0, %s217
      %s234 = sphi 0, %s218
    $region4: #{tpu_custom_call.1} parent=1 // loop_header_branch
      %23 = sbr.rel (%p21) target = $region8
    $region5: #{tpu_custom_call.1} parent=1 // loop_body
      %s25 = ssub.s32 %s20, 1
      %s26 = ssub.s32 %s20, 2
      %s36 = sadd.s32 1, %s29
      %p37 = scmp.ge.s32.totalorder %s36, 1
      %s38 = scalar_select %p37, 0, %s36
      %s39 = sadd.s32 1, %s28
      %s40 = scalar_select %p37, %s39, %s28
      %p41 = scmp.ge.s32.totalorder %s40, 1
      %s42 = scalar_select %p41, 0, %s40
      %s43 = sadd.s32 1, %s27
      %s44 = scalar_select %p41, %s43, %s27
      %p45 = scmp.ge.s32.totalorder %s44, 2
      %s46 = scalar_select %p45, 0, %s44
      %s47 = ssub.s32 %s27, %s46
      %s48 = ssub.s32 %s29, %s38
      %s49 = sor.u32 %s47, %s48
      %p50 = scmp.eq.s32.totalorder %s49, 0
      %s52 = sadd.s32 %s51, 1
      %s53 = scalar_select %p50, %s51, %s52
      %p56 = pneg %p50
      %p57 = scmp.eq.s32.totalorder %s20, 1
      %p58 = por %p56, %p57
      %p59 = scmp.ne.s32.totalorder %s51, %s54
      %p60 = scmp.eq.s32.totalorder %s20, 0
      %p61 = por %p59, %p60
      %p62 = scmp.ne.s32.totalorder %s51, %s54
      %p63 = scmp.eq.s32.totalorder %s25, 1
      %p64 = por %p62, %p63
      %p65 = scmp.ne.s32.totalorder %s54, %s55
      %p66 = scmp.eq.s32.totalorder %s25, 0
      %p67 = por %p65, %p66
      %p68 = scmp.ne.s32.totalorder %s54, %s55
      %p69 = scmp.eq.s32.totalorder %s26, 1
      %p70 = por %p68, %p69
      %p72 = scmp.ne.s32.totalorder %s55, %s71
      %p73 = scmp.eq.s32.totalorder %s26, 0
      %p74 = por %p72, %p73
      %s75 = ssub.s32 %s27, %s46
      %s76 = ssub.s32 %s28, %s42
      %s77 = sor.u32 %s75, %s76
      %p78 = scmp.eq.s32.totalorder %s77, 0
      %s80 = sadd.s32 %s79, 1
      %s81 = scalar_select %p78, %s79, %s80
      %p84 = pneg %p78
      %p85 = scmp.eq.s32.totalorder %s20, 1
      %p86 = por %p84, %p85
      %p87 = scmp.ne.s32.totalorder %s79, %s82
      %p88 = scmp.eq.s32.totalorder %s20, 0
      %p89 = por %p87, %p88
      %p90 = scmp.ne.s32.totalorder %s79, %s82
      %p91 = scmp.eq.s32.totalorder %s25, 1
      %p92 = por %p90, %p91
      %p93 = scmp.ne.s32.totalorder %s82, %s83
      %p94 = scmp.eq.s32.totalorder %s25, 0
      %p95 = por %p93, %p94
      %p96 = scmp.ne.s32.totalorder %s82, %s83
      %p97 = scmp.eq.s32.totalorder %s26, 1
      %p98 = por %p96, %p97
      %p100 = scmp.ne.s32.totalorder %s83, %s99
      %p101 = scmp.eq.s32.totalorder %s26, 0
      %p102 = por %p100, %p101
      %s104 = sadd.s32 %s103, 1
      %p107 = scmp.eq.s32.totalorder %s20, 1
      %p108 = scmp.ne.s32.totalorder %s103, %s105
      %p109 = scmp.eq.s32.totalorder %s20, 0
      %p110 = por %p108, %p109
      %p111 = scmp.ne.s32.totalorder %s103, %s105
      %p112 = scmp.eq.s32.totalorder %s25, 1
      %p113 = por %p111, %p112
      %p114 = scmp.ne.s32.totalorder %s105, %s106
      %p115 = scmp.eq.s32.totalorder %s25, 0
      %p116 = por %p114, %p115
      %p117 = scmp.ne.s32.totalorder %s105, %s106
      %p118 = scmp.eq.s32.totalorder %s26, 1
      %p119 = por %p117, %p118
      %p121 = scmp.ne.s32.totalorder %s106, %s120
      %p122 = scmp.eq.s32.totalorder %s26, 0
      %p123 = por %p121, %p122
      %s125 = sadd.s32 %s124, 1
      %p128 = scmp.eq.s32.totalorder %s20, 1
      %p129 = scmp.ne.s32.totalorder %s124, %s126
      %p130 = scmp.eq.s32.totalorder %s20, 0
      %p131 = por %p129, %p130
      %p132 = scmp.ne.s32.totalorder %s124, %s126
      %p133 = scmp.eq.s32.totalorder %s25, 1
      %p134 = por %p132, %p133
      %p135 = scmp.ne.s32.totalorder %s126, %s127
      %p136 = scmp.eq.s32.totalorder %s25, 0
      %p137 = por %p135, %p136
      %p138 = scmp.ne.s32.totalorder %s126, %s127
      %p139 = scmp.eq.s32.totalorder %s26, 1
      %p140 = por %p138, %p139
      %p142 = scmp.ne.s32.totalorder %s127, %s141
      %p143 = scmp.eq.s32.totalorder %s26, 0
      %p144 = por %p142, %p143
      %s146 = sadd.s32 %s145, 1
      %p149 = scmp.eq.s32.totalorder %s20, 1
      %p150 = scmp.ne.s32.totalorder %s145, %s147
      %p151 = scmp.eq.s32.totalorder %s20, 0
      %p152 = por %p150, %p151
      %p153 = scmp.ne.s32.totalorder %s145, %s147
      %p154 = scmp.eq.s32.totalorder %s25, 1
      %p155 = por %p153, %p154
      %p156 = scmp.ne.s32.totalorder %s147, %s148
      %p157 = scmp.eq.s32.totalorder %s25, 0
      %p158 = por %p156, %p157
      %p159 = scmp.ne.s32.totalorder %s147, %s148
      %p160 = scmp.eq.s32.totalorder %s26, 1
      %p161 = por %p159, %p160
      %p163 = scmp.ne.s32.totalorder %s148, %s162
      %p164 = scmp.eq.s32.totalorder %s26, 0
      %p165 = por %p163, %p164
      %s167 = sadd.s32 %s166, 1
      %p170 = scmp.eq.s32.totalorder %s20, 1
      %p171 = scmp.ne.s32.totalorder %s166, %s168
      %p172 = scmp.eq.s32.totalorder %s20, 0
      %p173 = por %p171, %p172
      %p174 = scmp.ne.s32.totalorder %s166, %s168
      %p175 = scmp.eq.s32.totalorder %s25, 1
      %p176 = por %p174, %p175
      %p177 = scmp.ne.s32.totalorder %s168, %s169
      %p178 = scmp.eq.s32.totalorder %s25, 0
      %p179 = por %p177, %p178
      %p180 = scmp.ne.s32.totalorder %s168, %s169
      %p181 = scmp.eq.s32.totalorder %s26, 1
      %p182 = por %p180, %p181
      %p184 = scmp.ne.s32.totalorder %s169, %s183
      %p185 = scmp.eq.s32.totalorder %s26, 0
      %p186 = por %p184, %p185
      %s188 = sadd.s32 %s187, 1
      %p191 = scmp.eq.s32.totalorder %s20, 1
      %p192 = scmp.ne.s32.totalorder %s187, %s189
      %p193 = scmp.eq.s32.totalorder %s20, 0
      %p194 = por %p192, %p193
      %p195 = scmp.ne.s32.totalorder %s187, %s189
      %p196 = scmp.eq.s32.totalorder %s25, 1
      %p197 = por %p195, %p196
      %p198 = scmp.ne.s32.totalorder %s189, %s190
      %p199 = scmp.eq.s32.totalorder %s25, 0
      %p200 = por %p198, %p199
      %p201 = scmp.ne.s32.totalorder %s189, %s190
      %p202 = scmp.eq.s32.totalorder %s26, 1
      %p203 = por %p201, %p202
      %p205 = scmp.ne.s32.totalorder %s190, %s204
      %p206 = scmp.eq.s32.totalorder %s26, 0
      %p207 = por %p205, %p206
      %s208 = ssub.s32 %s27, %s46
      %s209 = ssub.s32 %s29, %s38
      %s210 = sor.u32 %s208, %s209
      %s211 = ssub.s32 %s28, %s42
      %s212 = sor.u32 %s210, %s211
      %p213 = scmp.eq.s32.totalorder %s212, 0
      %s215 = sadd.s32 %s214, 1
      %s216 = scalar_select %p213, %s214, %s215
      %p219 = pneg %p213
      %p220 = scmp.eq.s32.totalorder %s20, 1
      %p221 = por %p219, %p220
      %p222 = scmp.ne.s32.totalorder %s214, %s217
      %p223 = scmp.eq.s32.totalorder %s20, 0
      %p224 = por %p222, %p223
      %p225 = scmp.ne.s32.totalorder %s214, %s217
      %p226 = scmp.eq.s32.totalorder %s25, 1
      %p227 = por %p225, %p226
      %p228 = scmp.ne.s32.totalorder %s217, %s218
      %p229 = scmp.eq.s32.totalorder %s25, 0
      %p230 = por %p228, %p229
      %p231 = scmp.ne.s32.totalorder %s217, %s218
      %p232 = scmp.eq.s32.totalorder %s26, 1
      %p233 = por %p231, %p232
      %p235 = scmp.ne.s32.totalorder %s218, %s234
      %p236 = scmp.eq.s32.totalorder %s26, 0
      %p237 = por %p235, %p236
      %p238 = scmp.le.s32.totalorder 1, %s20
      %p239 = scmp.lt.s32.totalorder %s20, 3
      %p240 = pnand %p238, %p239
      %p241 = pneg %p240
      // Predicated region
      $region9: #{tpu_custom_call.1} parent=5 // pred_check
        _
      $region10: #{tpu_custom_call.1} parent=5 // pred_check_branch
        %243 = sbr.rel (%p240) target = $region12
      $region11: #{tpu_custom_call.1} parent=5 // pred_region
        %s244 = ssub.s32 %s20, 1
        // Predicated region
        $region13: #{tpu_custom_call.1} parent=11 // pred_check
          %p245 = pneg %p116
        $region14: #{tpu_custom_call.1} parent=11 // pred_check_branch
          %247 = sbr.rel (%p245) target = $region16
        $region15: #{tpu_custom_call.1} parent=11 // pred_region
          _
        $region16: #{tpu_custom_call.1} parent=11 // pred_fallthru
          _
        // Predicated region
        $region17: #{tpu_custom_call.1} parent=11 // pred_check
          %p248 = pneg %p137
        $region18: #{tpu_custom_call.1} parent=11 // pred_check_branch
          %250 = sbr.rel (%p248) target = $region20
        $region19: #{tpu_custom_call.1} parent=11 // pred_region
          _
        $region20: #{tpu_custom_call.1} parent=11 // pred_fallthru
          _
        // Predicated region
        $region21: #{tpu_custom_call.1} parent=11 // pred_check
          %p251 = pneg %p158
        $region22: #{tpu_custom_call.1} parent=11 // pred_check_branch
          %253 = sbr.rel (%p251) target = $region24
        $region23: #{tpu_custom_call.1} parent=11 // pred_region
          _
        $region24: #{tpu_custom_call.1} parent=11 // pred_fallthru
          _
        // Predicated region
        $region25: #{tpu_custom_call.1} parent=11 // pred_check
          %p254 = pneg %p179
        $region26: #{tpu_custom_call.1} parent=11 // pred_check_branch
          %256 = sbr.rel (%p254) target = $region28
        $region27: #{tpu_custom_call.1} parent=11 // pred_region
          _
        $region28: #{tpu_custom_call.1} parent=11 // pred_fallthru
          _
        // Predicated region
        $region29: #{tpu_custom_call.1} parent=11 // pred_check
          %p257 = pneg %p200
        $region30: #{tpu_custom_call.1} parent=11 // pred_check_branch
          %259 = sbr.rel (%p257) target = $region32
        $region31: #{tpu_custom_call.1} parent=11 // pred_region
          %s261 = ssub.s32 16, 16
          %262 = vsyncadd [#allocation5], %s261
          %s264 = sshll.u32 %s6, 4
          %s265 = int_to_ptr.vmem [resolvable:$true] %s264
          %267 = dma.vmem_to_smem %s265, 16, [#allocation6], [#allocation5]
        $region32: #{tpu_custom_call.1} parent=11 // pred_fallthru
          _
      $region12: #{tpu_custom_call.1} parent=5 // pred_fallthru
        _
      %p268 = scmp.lt.s32.totalorder %s20, 2
      // Predicated region
      $region33: #{tpu_custom_call.1} parent=5 // pred_check
        %p269 = pneg %p268
      $region34: #{tpu_custom_call.1} parent=5 // pred_check_branch
        %271 = sbr.rel (%p269) target = $region36
      $region35: #{tpu_custom_call.1} parent=5 // pred_region
        // Predicated region
        $region37: #{tpu_custom_call.1} parent=35 // pred_check
          %p272 = pneg %p61
        $region38: #{tpu_custom_call.1} parent=35 // pred_check_branch
          %274 = sbr.rel (%p272) target = $region40
        $region39: #{tpu_custom_call.1} parent=35 // pred_region
          %p275 = scmp.lt.s32.totalorder %s27, 1
          %s276 = scalar_select %p275, %s27, 1
          %p277 = scmp.lt.s32.totalorder %s29, 0
          %s278 = scalar_select %p277, %s29, 0
          %s279 = sadd.s32 %s278, %s276
          %s280 = smul.addr %s279, 8
          %s281 = scalar_lea.vmem %s0, %s280
        $region40: #{tpu_custom_call.1} parent=35 // pred_fallthru
          _
        // Predicated region
        $region41: #{tpu_custom_call.1} parent=35 // pred_check
          %p282 = pneg %p89
        $region42: #{tpu_custom_call.1} parent=35 // pred_check_branch
          %284 = sbr.rel (%p282) target = $region44
        $region43: #{tpu_custom_call.1} parent=35 // pred_region
          %s285 = sand.u32 %s79, 1
          %s286 = scalar_lea.sflag [#allocation3], %s285
          %s287 = sand.u32 %s79, 1
          %s288 = smul.addr %s287, 8
          %s289 = scalar_lea.vmem [#allocation2], %s288
          %s291 = ssub.s32 128, 128
          %292 = vsyncadd %s286, %s291
          %s293 = sadd.s32 %s28, %s27
          %s294 = smul.addr %s293, 128
          %s295 = scalar_lea.hbm %s1, %s294
          %s297 = sshll.u32 %s289, 4
          %s298 = int_to_ptr.vmem [resolvable:$true] %s297
          %300 = dma.hbm_to_vmem [thread:$0]  %s295, 128, %s298, %s286
        $region44: #{tpu_custom_call.1} parent=35 // pred_fallthru
          _
      $region36: #{tpu_custom_call.1} parent=5 // pred_fallthru
        _
      %p301 = scmp.le.s32.totalorder 1, %s20
      %p302 = scmp.lt.s32.totalorder %s20, 3
      %p303 = pnand %p301, %p302
      %p304 = pneg %p303
      // Predicated region
      $region45: #{tpu_custom_call.1} parent=5 // pred_check
        _
      $region46: #{tpu_custom_call.1} parent=5 // pred_check_branch
        %306 = sbr.rel (%p303) target = $region48
      $region47: #{tpu_custom_call.1} parent=5 // pred_region
        %s307 = ssub.s32 %s20, 1
        %s308 = sand.u32 %s82, 1
        %s309 = scalar_lea.sflag [#allocation3], %s308
        %s310 = sand.u32 %s82, 1
        %s311 = smul.addr %s310, 8
        %s312 = scalar_lea.vmem [#allocation2], %s311
        // Predicated region
        $region49: #{tpu_custom_call.1} parent=47 // pred_check
          %p313 = pneg %p95
        $region50: #{tpu_custom_call.1} parent=47 // pred_check_branch
          %315 = sbr.rel (%p313) target = $region52
        $region51: #{tpu_custom_call.1} parent=47 // pred_region
          %316 = dma.done %s309, 128
        $region52: #{tpu_custom_call.1} parent=47 // pred_fallthru
          _
        // Predicated region
        $region53: #{tpu_custom_call.1} parent=47 // pred_check
          %p317 = pneg %p200
        $region54: #{tpu_custom_call.1} parent=47 // pred_check_branch
          %319 = sbr.rel (%p317) target = $region56
        $region55: #{tpu_custom_call.1} parent=47 // pred_region
          %320 = dma.done [#allocation5], 16
        $region56: #{tpu_custom_call.1} parent=47 // pred_fallthru
          _
        %321 = sfence
        %p322 = scmp.lt.s32.totalorder %s30, 1
        %s323 = scalar_select %p322, %s30, 1
        %p324 = scmp.lt.s32.totalorder %s32, 0
        %s325 = scalar_select %p324, %s32, 0
        %s326 = sadd.s32 %s325, %s323
        %s327 = smul.addr %s326, 8
        %s328 = scalar_lea.vmem %s0, %s327
        %p329 = pneg %p67
        %p330 = pneg %p64
        %s331 = sand.u32 %s82, 1
        %s332 = scalar_lea.sflag [#allocation3], %s331
        %s333 = sand.u32 %s82, 1
        %s334 = smul.addr %s333, 8
        %s335 = scalar_lea.vmem [#allocation2], %s334
        %p336 = pneg %p95
        %p337 = pneg %p92
        %p338 = pneg %p116
        %p339 = pneg %p113
        %p340 = pneg %p137
        %p341 = pneg %p134
        %p342 = pneg %p158
        %p343 = pneg %p155
        %p344 = pneg %p179
        %p345 = pneg %p176
        %p346 = pneg %p200
        %p347 = pneg %p197
        %p348 = pneg %p230
        %p349 = pneg %p227
        %s350 = sand.u32 %s217, 1
        %s351 = scalar_lea.sflag [#allocation4], %s350
        %s352 = sand.u32 %s217, 1
        %s353 = smul.addr %s352, 8
        %s354 = scalar_lea.vmem [#allocation7], %s353
        %p355 = scmp.lt.s32.totalorder %s30, 1
        %s356 = scalar_select %p355, %s30, 1
        %p357 = scmp.lt.s32.totalorder %s32, 0
        %s358 = scalar_select %p357, %s32, 0
        %s359 = sadd.s32 %s358, %s356
        %s360 = smul.addr %s359, 8
        %s361 = scalar_lea.vmem %s0, %s360
        %v362 = vld [vmem:[%s312] sm:$0xff]
        %v363 = vld [vmem:[%s2] sm:$0xff]
        %v364 = vld [vmem:[%s2 + $0x8] sm:$0xff]
        %v365 = vld [vmem:[%s2 + $0x10] sm:$0xff]
        %v366 = vld [vmem:[%s2 + $0x18] sm:$0xff]
        %v367 = vld [vmem:[%s3] sm:$0xff]
        %v368 = vld [vmem:[%s3 + $0x8] sm:$0xff]
        %v369 = vld [vmem:[%s3 + $0x10] sm:$0xff]
        %v370 = vld [vmem:[%s3 + $0x18] sm:$0xff]
        %v371 = vld [vmem:[%s4] sm:$0xff]
        %v372 = vld [vmem:[%s5] sm:$0xff]
        %374 = vset.pattern.permute.xlu0 0
        %375 = vperm.xlu0 %374, %v372
        %v376 = vpop.permute.xlu0 %375
        %vm378 = vcmask 261120
        %v380 = vsel %vm378, %v371, 0
        %v383 = vsel %vm378, %v362, 0
        %385 = vmatprep.subr.mxu0 0.0
        %v386 = vand.u32 %v383, 4294901760
        %387 = vmatpush1.xpose.msra.mxu0 %v386
        %388 = vmatprep.subr.mxu0 0.0
        %389 = vmatpush1.xpose.msra.mxu0 0.0
        %390 = vmatprep.subr.mxu0 0.0
        %391 = vmatpush1.xpose.msra.mxu0 0.0
        %392 = vmatprep.subr.mxu0 0.0
        %393 = vmatpush1.xpose.msra.mxu0 0.0
        %394 = vmatprep.subr.mxu0 0.0
        %395 = vmatpush1.xpose.msra.mxu0 0.0
        %396 = vmatprep.subr.mxu0 0.0
        %397 = vmatpush1.xpose.msra.mxu0 0.0
        %398 = vmatprep.subr.mxu0 0.0
        %399 = vmatpush1.xpose.msra.mxu0 0.0
        %400 = vmatprep.subr.mxu0 0.0
        %401 = vmatpush1.xpose.msra.mxu0 0.0
        %402 = vmatprep.subr.mxu0 0.0
        %403 = vmatpush1.xpose.msra.mxu0 0.0
        %404 = vmatprep.subr.mxu0 0.0
        %405 = vmatpush1.xpose.msra.mxu0 0.0
        %406 = vmatprep.subr.mxu0 0.0
        %407 = vmatpush1.xpose.msra.mxu0 0.0
        %408 = vmatprep.subr.mxu0 0.0
        %409 = vmatpush1.xpose.msra.mxu0 0.0
        %410 = vmatprep.subr.mxu0 0.0
        %411 = vmatpush1.xpose.msra.mxu0 0.0
        %412 = vmatprep.subr.mxu0 0.0
        %413 = vmatpush1.xpose.msra.mxu0 0.0
        %414 = vmatprep.subr.mxu0 0.0
        %415 = vmatpush1.xpose.msra.mxu0 0.0
        %416 = vmatprep.subr.mxu0 0.0
        %417 = vmatpush1.xpose.msra.mxu0 0.0
        %418 = vmatprep.subr.mxu0 0.0
        %419 = vmatpush1.xpose.msra.mxu0 0.0
        %420 = vmatprep.subr.mxu0 0.0
        %421 = vmatpush1.xpose.msra.mxu0 0.0
        %422 = vmatprep.subr.mxu0 0.0
        %423 = vmatpush1.xpose.msra.mxu0 0.0
        %424 = vmatprep.subr.mxu0 0.0
        %425 = vmatpush1.xpose.msra.mxu0 0.0
        %426 = vmatprep.subr.mxu0 0.0
        %427 = vmatpush1.xpose.msra.mxu0 0.0
        %428 = vmatprep.subr.mxu0 0.0
        %429 = vmatpush1.xpose.msra.mxu0 0.0
        %430 = vmatprep.subr.mxu0 0.0
        %431 = vmatpush1.xpose.msra.mxu0 0.0
        %432 = vmatprep.subr.mxu0 0.0
        %433 = vmatpush1.xpose.msra.mxu0 0.0
        %434 = vmatprep.subr.mxu0 0.0
        %435 = vmatpush1.xpose.msra.mxu0 0.0
        %436 = vmatprep.subr.mxu0 0.0
        %437 = vmatpush1.xpose.msra.mxu0 0.0
        %438 = vmatprep.subr.mxu0 0.0
        %439 = vmatpush1.xpose.msra.mxu0 0.0
        %440 = vmatprep.subr.mxu0 0.0
        %441 = vmatpush1.xpose.msra.mxu0 0.0
        %442 = vmatprep.subr.mxu0 0.0
        %443 = vmatpush1.xpose.msra.mxu0 0.0
        %444 = vmatprep.subr.mxu0 0.0
        %445 = vmatpush1.xpose.msra.mxu0 0.0
        %446 = vmatprep.subr.mxu0 0.0
        %447 = vmatpush1.xpose.msra.mxu0 0.0
        %448 = vmatprep.subr.mxu0 0.0
        %449 = vmatpush1.xpose.msra.mxu0 0.0
        %450 = vmatprep.mubr.f32.mxu0 0.0
        %v451 = vand.u32 %v380, 4294901760
        %v452 = vsub.f32 %v380, %v451
        %v453 = vand.u32 %v452, 4294901760
        %v454 = vsub.f32 %v452, %v453
        %v455 = vand.u32 %v454, 4294901760
        %456 = vmatmul.mubr.f32.gmra.mrb[0].mxu0 %v455
        %v457 = vpop.f32.mrb[0].mxu0
        %v458 = vadd.f32 %v376, %v457
        %v459 = vpop.f32.mrb[0].mxu0
        %460 = vdwg.mxu0
        %461 = vmatprep.subr.mxu0 0.0
        %v462 = vand.u32 %v383, 4294901760
        %v463 = vsub.f32 %v383, %v462
        %v464 = vand.u32 %v463, 4294901760
        %v465 = vsub.f32 %v463, %v464
        %v466 = vand.u32 %v465, 4294901760
        %467 = vmatpush1.xpose.msra.mxu0 %v466
        %468 = vmatprep.subr.mxu0 0.0
        %469 = vmatpush1.xpose.msra.mxu0 0.0
        %470 = vmatprep.subr.mxu0 0.0
        %471 = vmatpush1.xpose.msra.mxu0 0.0
        %472 = vmatprep.subr.mxu0 0.0
        %473 = vmatpush1.xpose.msra.mxu0 0.0
        %474 = vmatprep.subr.mxu0 0.0
        %475 = vmatpush1.xpose.msra.mxu0 0.0
        %476 = vmatprep.subr.mxu0 0.0
        %477 = vmatpush1.xpose.msra.mxu0 0.0
        %478 = vmatprep.subr.mxu0 0.0
        %479 = vmatpush1.xpose.msra.mxu0 0.0
        %480 = vmatprep.subr.mxu0 0.0
        %481 = vmatpush1.xpose.msra.mxu0 0.0
        %482 = vmatprep.subr.mxu0 0.0
        %483 = vmatpush1.xpose.msra.mxu0 0.0
        %484 = vmatprep.subr.mxu0 0.0
        %485 = vmatpush1.xpose.msra.mxu0 0.0
        %486 = vmatprep.subr.mxu0 0.0
        %487 = vmatpush1.xpose.msra.mxu0 0.0
        %488 = vmatprep.subr.mxu0 0.0
        %489 = vmatpush1.xpose.msra.mxu0 0.0
        %490 = vmatprep.subr.mxu0 0.0
        %491 = vmatpush1.xpose.msra.mxu0 0.0
        %492 = vmatprep.subr.mxu0 0.0
        %493 = vmatpush1.xpose.msra.mxu0 0.0
        %494 = vmatprep.subr.mxu0 0.0
        %495 = vmatpush1.xpose.msra.mxu0 0.0
        %496 = vmatprep.subr.mxu0 0.0
        %497 = vmatpush1.xpose.msra.mxu0 0.0
        %498 = vmatprep.subr.mxu0 0.0
        %499 = vmatpush1.xpose.msra.mxu0 0.0
        %500 = vmatprep.subr.mxu0 0.0
        %501 = vmatpush1.xpose.msra.mxu0 0.0
        %502 = vmatprep.subr.mxu0 0.0
        %503 = vmatpush1.xpose.msra.mxu0 0.0
        %504 = vmatprep.subr.mxu0 0.0
        %505 = vmatpush1.xpose.msra.mxu0 0.0
        %506 = vmatprep.subr.mxu0 0.0
        %507 = vmatpush1.xpose.msra.mxu0 0.0
        %508 = vmatprep.subr.mxu0 0.0
        %509 = vmatpush1.xpose.msra.mxu0 0.0
        %510 = vmatprep.subr.mxu0 0.0
        %511 = vmatpush1.xpose.msra.mxu0 0.0
        %512 = vmatprep.subr.mxu0 0.0
        %513 = vmatpush1.xpose.msra.mxu0 0.0
        %514 = vmatprep.subr.mxu0 0.0
        %515 = vmatpush1.xpose.msra.mxu0 0.0
        %516 = vmatprep.subr.mxu0 0.0
        %517 = vmatpush1.xpose.msra.mxu0 0.0
        %518 = vmatprep.subr.mxu0 0.0
        %519 = vmatpush1.xpose.msra.mxu0 0.0
        %520 = vmatprep.subr.mxu0 0.0
        %521 = vmatpush1.xpose.msra.mxu0 0.0
        %522 = vmatprep.subr.mxu0 0.0
        %523 = vmatpush1.xpose.msra.mxu0 0.0
        %524 = vmatprep.subr.mxu0 0.0
        %525 = vmatpush1.xpose.msra.mxu0 0.0
        %526 = vmatprep.subr.mxu0 0.0
        %527 = vmatpush1.xpose.msra.mxu0 0.0
        %528 = vmatprep.subr.mxu0 0.0
        %529 = vmatpush1.xpose.msra.mxu0 0.0
        %530 = vmatprep.mubr.f32.mxu0 0.0
        %v531 = vand.u32 %v380, 4294901760
        %532 = vmatmul.mubr.f32.gmra.mrb[0].mxu0 %v531
        %v533 = vpop.f32.mrb[0].mxu0
        %v534 = vadd.f32 %v458, %v533
        %v535 = vpop.f32.mrb[0].mxu0
        %536 = vdwg.mxu0
        %537 = vmatprep.subr.mxu0 0.0
        %v538 = vand.u32 %v383, 4294901760
        %v539 = vsub.f32 %v383, %v538
        %540 = vmatpush1.xpose.msra.mxu0 %v539
        %541 = vmatprep.subr.mxu0 0.0
        %542 = vmatpush1.xpose.msra.mxu0 0.0
        %543 = vmatprep.subr.mxu0 0.0
        %544 = vmatpush1.xpose.msra.mxu0 0.0
        %545 = vmatprep.subr.mxu0 0.0
        %546 = vmatpush1.xpose.msra.mxu0 0.0
        %547 = vmatprep.subr.mxu0 0.0
        %548 = vmatpush1.xpose.msra.mxu0 0.0
        %549 = vmatprep.subr.mxu0 0.0
        %550 = vmatpush1.xpose.msra.mxu0 0.0
        %551 = vmatprep.subr.mxu0 0.0
        %552 = vmatpush1.xpose.msra.mxu0 0.0
        %553 = vmatprep.subr.mxu0 0.0
        %554 = vmatpush1.xpose.msra.mxu0 0.0
        %555 = vmatprep.subr.mxu0 0.0
        %556 = vmatpush1.xpose.msra.mxu0 0.0
        %557 = vmatprep.subr.mxu0 0.0
        %558 = vmatpush1.xpose.msra.mxu0 0.0
        %559 = vmatprep.subr.mxu0 0.0
        %560 = vmatpush1.xpose.msra.mxu0 0.0
        %561 = vmatprep.subr.mxu0 0.0
        %562 = vmatpush1.xpose.msra.mxu0 0.0
        %563 = vmatprep.subr.mxu0 0.0
        %564 = vmatpush1.xpose.msra.mxu0 0.0
        %565 = vmatprep.subr.mxu0 0.0
        %566 = vmatpush1.xpose.msra.mxu0 0.0
        %567 = vmatprep.subr.mxu0 0.0
        %568 = vmatpush1.xpose.msra.mxu0 0.0
        %569 = vmatprep.subr.mxu0 0.0
        %570 = vmatpush1.xpose.msra.mxu0 0.0
        %571 = vmatprep.subr.mxu0 0.0
        %572 = vmatpush1.xpose.msra.mxu0 0.0
        %573 = vmatprep.subr.mxu0 0.0
        %574 = vmatpush1.xpose.msra.mxu0 0.0
        %575 = vmatprep.subr.mxu0 0.0
        %576 = vmatpush1.xpose.msra.mxu0 0.0
        %577 = vmatprep.subr.mxu0 0.0
        %578 = vmatpush1.xpose.msra.mxu0 0.0
        %579 = vmatprep.subr.mxu0 0.0
        %580 = vmatpush1.xpose.msra.mxu0 0.0
        %581 = vmatprep.subr.mxu0 0.0
        %582 = vmatpush1.xpose.msra.mxu0 0.0
        %583 = vmatprep.subr.mxu0 0.0
        %584 = vmatpush1.xpose.msra.mxu0 0.0
        %585 = vmatprep.subr.mxu0 0.0
        %586 = vmatpush1.xpose.msra.mxu0 0.0
        %587 = vmatprep.subr.mxu0 0.0
        %588 = vmatpush1.xpose.msra.mxu0 0.0
        %589 = vmatprep.subr.mxu0 0.0
        %590 = vmatpush1.xpose.msra.mxu0 0.0
        %591 = vmatprep.subr.mxu0 0.0
        %592 = vmatpush1.xpose.msra.mxu0 0.0
        %593 = vmatprep.subr.mxu0 0.0
        %594 = vmatpush1.xpose.msra.mxu0 0.0
        %595 = vmatprep.subr.mxu0 0.0
        %596 = vmatpush1.xpose.msra.mxu0 0.0
        %597 = vmatprep.subr.mxu0 0.0
        %598 = vmatpush1.xpose.msra.mxu0 0.0
        %599 = vmatprep.subr.mxu0 0.0
        %600 = vmatpush1.xpose.msra.mxu0 0.0
        %601 = vmatprep.subr.mxu0 0.0
        %602 = vmatpush1.xpose.msra.mxu0 0.0
        %603 = vmatprep.mubr.f32.mxu0 0.0
        %v604 = vand.u32 %v380, 4294901760
        %v605 = vsub.f32 %v380, %v604
        %606 = vmatmul.mubr.f32.gmra.mrb[0].mxu0 %v605
        %v607 = vpop.f32.mrb[0].mxu0
        %v608 = vadd.f32 %v534, %v607
        %v609 = vpop.f32.mrb[0].mxu0
        %610 = vdwg.mxu0
        %611 = vmatprep.subr.mxu0 0.0
        %v612 = vand.u32 %v383, 4294901760
        %613 = vmatpush1.xpose.msra.mxu0 %v612
        %614 = vmatprep.subr.mxu0 0.0
        %615 = vmatpush1.xpose.msra.mxu0 0.0
        %616 = vmatprep.subr.mxu0 0.0
        %617 = vmatpush1.xpose.msra.mxu0 0.0
        %618 = vmatprep.subr.mxu0 0.0
        %619 = vmatpush1.xpose.msra.mxu0 0.0
        %620 = vmatprep.subr.mxu0 0.0
        %621 = vmatpush1.xpose.msra.mxu0 0.0
        %622 = vmatprep.subr.mxu0 0.0
        %623 = vmatpush1.xpose.msra.mxu0 0.0
        %624 = vmatprep.subr.mxu0 0.0
        %625 = vmatpush1.xpose.msra.mxu0 0.0
        %626 = vmatprep.subr.mxu0 0.0
        %627 = vmatpush1.xpose.msra.mxu0 0.0
        %628 = vmatprep.subr.mxu0 0.0
        %629 = vmatpush1.xpose.msra.mxu0 0.0
        %630 = vmatprep.subr.mxu0 0.0
        %631 = vmatpush1.xpose.msra.mxu0 0.0
        %632 = vmatprep.subr.mxu0 0.0
        %633 = vmatpush1.xpose.msra.mxu0 0.0
        %634 = vmatprep.subr.mxu0 0.0
        %635 = vmatpush1.xpose.msra.mxu0 0.0
        %636 = vmatprep.subr.mxu0 0.0
        %637 = vmatpush1.xpose.msra.mxu0 0.0
        %638 = vmatprep.subr.mxu0 0.0
        %639 = vmatpush1.xpose.msra.mxu0 0.0
        %640 = vmatprep.subr.mxu0 0.0
        %641 = vmatpush1.xpose.msra.mxu0 0.0
        %642 = vmatprep.subr.mxu0 0.0
        %643 = vmatpush1.xpose.msra.mxu0 0.0
        %644 = vmatprep.subr.mxu0 0.0
        %645 = vmatpush1.xpose.msra.mxu0 0.0
        %646 = vmatprep.subr.mxu0 0.0
        %647 = vmatpush1.xpose.msra.mxu0 0.0
        %648 = vmatprep.subr.mxu0 0.0
        %649 = vmatpush1.xpose.msra.mxu0 0.0
        %650 = vmatprep.subr.mxu0 0.0
        %651 = vmatpush1.xpose.msra.mxu0 0.0
        %652 = vmatprep.subr.mxu0 0.0
        %653 = vmatpush1.xpose.msra.mxu0 0.0
        %654 = vmatprep.subr.mxu0 0.0
        %655 = vmatpush1.xpose.msra.mxu0 0.0
        %656 = vmatprep.subr.mxu0 0.0
        %657 = vmatpush1.xpose.msra.mxu0 0.0
        %658 = vmatprep.subr.mxu0 0.0
        %659 = vmatpush1.xpose.msra.mxu0 0.0
        %660 = vmatprep.subr.mxu0 0.0
        %661 = vmatpush1.xpose.msra.mxu0 0.0
        %662 = vmatprep.subr.mxu0 0.0
        %663 = vmatpush1.xpose.msra.mxu0 0.0
        %664 = vmatprep.subr.mxu0 0.0
        %665 = vmatpush1.xpose.msra.mxu0 0.0
        %666 = vmatprep.subr.mxu0 0.0
        %667 = vmatpush1.xpose.msra.mxu0 0.0
        %668 = vmatprep.subr.mxu0 0.0
        %669 = vmatpush1.xpose.msra.mxu0 0.0
        %670 = vmatprep.subr.mxu0 0.0
        %671 = vmatpush1.xpose.msra.mxu0 0.0
        %672 = vmatprep.subr.mxu0 0.0
        %673 = vmatpush1.xpose.msra.mxu0 0.0
        %674 = vmatprep.subr.mxu0 0.0
        %675 = vmatpush1.xpose.msra.mxu0 0.0
        %676 = vmatprep.mubr.f32.mxu0 0.0
        %v677 = vand.u32 %v380, 4294901760
        %v678 = vsub.f32 %v380, %v677
        %v679 = vand.u32 %v678, 4294901760
        %680 = vmatmul.mubr.f32.gmra.mrb[0].mxu0 %v679
        %v681 = vpop.f32.mrb[0].mxu0
        %v682 = vadd.f32 %v608, %v681
        %v683 = vpop.f32.mrb[0].mxu0
        %684 = vdwg.mxu0
        %685 = vmatprep.subr.mxu0 0.0
        %v686 = vand.u32 %v383, 4294901760
        %v687 = vsub.f32 %v383, %v686
        %v688 = vand.u32 %v687, 4294901760
        %689 = vmatpush1.xpose.msra.mxu0 %v688
        %690 = vmatprep.subr.mxu0 0.0
        %691 = vmatpush1.xpose.msra.mxu0 0.0
        %692 = vmatprep.subr.mxu0 0.0
        %693 = vmatpush1.xpose.msra.mxu0 0.0
        %694 = vmatprep.subr.mxu0 0.0
        %695 = vmatpush1.xpose.msra.mxu0 0.0
        %696 = vmatprep.subr.mxu0 0.0
        %697 = vmatpush1.xpose.msra.mxu0 0.0
        %698 = vmatprep.subr.mxu0 0.0
        %699 = vmatpush1.xpose.msra.mxu0 0.0
        %700 = vmatprep.subr.mxu0 0.0
        %701 = vmatpush1.xpose.msra.mxu0 0.0
        %702 = vmatprep.subr.mxu0 0.0
        %703 = vmatpush1.xpose.msra.mxu0 0.0
        %704 = vmatprep.subr.mxu0 0.0
        %705 = vmatpush1.xpose.msra.mxu0 0.0
        %706 = vmatprep.subr.mxu0 0.0
        %707 = vmatpush1.xpose.msra.mxu0 0.0
        %708 = vmatprep.subr.mxu0 0.0
        %709 = vmatpush1.xpose.msra.mxu0 0.0
        %710 = vmatprep.subr.mxu0 0.0
        %711 = vmatpush1.xpose.msra.mxu0 0.0
        %712 = vmatprep.subr.mxu0 0.0
        %713 = vmatpush1.xpose.msra.mxu0 0.0
        %714 = vmatprep.subr.mxu0 0.0
        %715 = vmatpush1.xpose.msra.mxu0 0.0
        %716 = vmatprep.subr.mxu0 0.0
        %717 = vmatpush1.xpose.msra.mxu0 0.0
        %718 = vmatprep.subr.mxu0 0.0
        %719 = vmatpush1.xpose.msra.mxu0 0.0
        %720 = vmatprep.subr.mxu0 0.0
        %721 = vmatpush1.xpose.msra.mxu0 0.0
        %722 = vmatprep.subr.mxu0 0.0
        %723 = vmatpush1.xpose.msra.mxu0 0.0
        %724 = vmatprep.subr.mxu0 0.0
        %725 = vmatpush1.xpose.msra.mxu0 0.0
        %726 = vmatprep.subr.mxu0 0.0
        %727 = vmatpush1.xpose.msra.mxu0 0.0
        %728 = vmatprep.subr.mxu0 0.0
        %729 = vmatpush1.xpose.msra.mxu0 0.0
        %730 = vmatprep.subr.mxu0 0.0
        %731 = vmatpush1.xpose.msra.mxu0 0.0
        %732 = vmatprep.subr.mxu0 0.0
        %733 = vmatpush1.xpose.msra.mxu0 0.0
        %734 = vmatprep.subr.mxu0 0.0
        %735 = vmatpush1.xpose.msra.mxu0 0.0
        %736 = vmatprep.subr.mxu0 0.0
        %737 = vmatpush1.xpose.msra.mxu0 0.0
        %738 = vmatprep.subr.mxu0 0.0
        %739 = vmatpush1.xpose.msra.mxu0 0.0
        %740 = vmatprep.subr.mxu0 0.0
        %741 = vmatpush1.xpose.msra.mxu0 0.0
        %742 = vmatprep.subr.mxu0 0.0
        %743 = vmatpush1.xpose.msra.mxu0 0.0
        %744 = vmatprep.subr.mxu0 0.0
        %745 = vmatpush1.xpose.msra.mxu0 0.0
        %746 = vmatprep.subr.mxu0 0.0
        %747 = vmatpush1.xpose.msra.mxu0 0.0
        %748 = vmatprep.subr.mxu0 0.0
        %749 = vmatpush1.xpose.msra.mxu0 0.0
        %750 = vmatprep.subr.mxu0 0.0
        %751 = vmatpush1.xpose.msra.mxu0 0.0
        %752 = vmatprep.mubr.f32.mxu0 0.0
        %v753 = vand.u32 %v380, 4294901760
        %754 = vmatmul.mubr.f32.gmra.mrb[0].mxu0 %v753
        %v755 = vpop.f32.mrb[0].mxu0
        %v756 = vadd.f32 %v682, %v755
        %v757 = vpop.f32.mrb[0].mxu0
        %758 = vdwg.mxu0
        %759 = vmatprep.subr.mxu0 0.0
        %v760 = vand.u32 %v383, 4294901760
        %761 = vmatpush1.xpose.msra.mxu0 %v760
        %762 = vmatprep.subr.mxu0 0.0
        %763 = vmatpush1.xpose.msra.mxu0 0.0
        %764 = vmatprep.subr.mxu0 0.0
        %765 = vmatpush1.xpose.msra.mxu0 0.0
        %766 = vmatprep.subr.mxu0 0.0
        %767 = vmatpush1.xpose.msra.mxu0 0.0
        %768 = vmatprep.subr.mxu0 0.0
        %769 = vmatpush1.xpose.msra.mxu0 0.0
        %770 = vmatprep.subr.mxu0 0.0
        %771 = vmatpush1.xpose.msra.mxu0 0.0
        %772 = vmatprep.subr.mxu0 0.0
        %773 = vmatpush1.xpose.msra.mxu0 0.0
        %774 = vmatprep.subr.mxu0 0.0
        %775 = vmatpush1.xpose.msra.mxu0 0.0
        %776 = vmatprep.subr.mxu0 0.0
        %777 = vmatpush1.xpose.msra.mxu0 0.0
        %778 = vmatprep.subr.mxu0 0.0
        %779 = vmatpush1.xpose.msra.mxu0 0.0
        %780 = vmatprep.subr.mxu0 0.0
        %781 = vmatpush1.xpose.msra.mxu0 0.0
        %782 = vmatprep.subr.mxu0 0.0
        %783 = vmatpush1.xpose.msra.mxu0 0.0
        %784 = vmatprep.subr.mxu0 0.0
        %785 = vmatpush1.xpose.msra.mxu0 0.0
        %786 = vmatprep.subr.mxu0 0.0
        %787 = vmatpush1.xpose.msra.mxu0 0.0
        %788 = vmatprep.subr.mxu0 0.0
        %789 = vmatpush1.xpose.msra.mxu0 0.0
        %790 = vmatprep.subr.mxu0 0.0
        %791 = vmatpush1.xpose.msra.mxu0 0.0
        %792 = vmatprep.subr.mxu0 0.0
        %793 = vmatpush1.xpose.msra.mxu0 0.0
        %794 = vmatprep.subr.mxu0 0.0
        %795 = vmatpush1.xpose.msra.mxu0 0.0
        %796 = vmatprep.subr.mxu0 0.0
        %797 = vmatpush1.xpose.msra.mxu0 0.0
        %798 = vmatprep.subr.mxu0 0.0
        %799 = vmatpush1.xpose.msra.mxu0 0.0
        %800 = vmatprep.subr.mxu0 0.0
        %801 = vmatpush1.xpose.msra.mxu0 0.0
        %802 = vmatprep.subr.mxu0 0.0
        %803 = vmatpush1.xpose.msra.mxu0 0.0
        %804 = vmatprep.subr.mxu0 0.0
        %805 = vmatpush1.xpose.msra.mxu0 0.0
        %806 = vmatprep.subr.mxu0 0.0
        %807 = vmatpush1.xpose.msra.mxu0 0.0
        %808 = vmatprep.subr.mxu0 0.0
        %809 = vmatpush1.xpose.msra.mxu0 0.0
        %810 = vmatprep.subr.mxu0 0.0
        %811 = vmatpush1.xpose.msra.mxu0 0.0
        %812 = vmatprep.subr.mxu0 0.0
        %813 = vmatpush1.xpose.msra.mxu0 0.0
        %814 = vmatprep.subr.mxu0 0.0
        %815 = vmatpush1.xpose.msra.mxu0 0.0
        %816 = vmatprep.subr.mxu0 0.0
        %817 = vmatpush1.xpose.msra.mxu0 0.0
        %818 = vmatprep.subr.mxu0 0.0
        %819 = vmatpush1.xpose.msra.mxu0 0.0
        %820 = vmatprep.subr.mxu0 0.0
        %821 = vmatpush1.xpose.msra.mxu0 0.0
        %822 = vmatprep.subr.mxu0 0.0
        %823 = vmatpush1.xpose.msra.mxu0 0.0
        %824 = vmatprep.mubr.f32.mxu0 0.0
        %v825 = vand.u32 %v380, 4294901760
        %826 = vmatmul.mubr.f32.gmra.mrb[0].mxu0 %v825
        %v827 = vpop.f32.mrb[0].mxu0
        %v828 = vadd.f32 %v756, %v827
        %v829 = vpop.f32.mrb[0].mxu0
        %830 = vdwg.mxu0
        %s831 = sld [smem:[#allocation6]]
        %s832 = sld [smem:[#allocation6 + $0x1]]
        %s833 = sld [smem:[#allocation6 + $0x2]]
        %s834 = sld [smem:[#allocation6 + $0x3]]
        %s835 = sld [smem:[#allocation6 + $0x4]]
        %v836 = vld [vmem:[%s361] sm:$0xff]
        %v838 = vsel %vm378, %v836, 0
        %840 = vmatprep.subr.mxu0 0.0
        %v841 = vand.u32 %v367, 4294901760
        %842 = vmatpush1.msra.mxu0 %v841
        %843 = vmatprep.subr.mxu0 0.0
        %v844 = vand.u32 %v368, 4294901760
        %845 = vmatpush1.msra.mxu0 %v844
        %846 = vmatprep.subr.mxu0 0.0
        %v847 = vand.u32 %v369, 4294901760
        %848 = vmatpush1.msra.mxu0 %v847
        %849 = vmatprep.subr.mxu0 0.0
        %v850 = vand.u32 %v370, 4294901760
        %851 = vmatpush1.msra.mxu0 %v850
        %852 = vmatprep.subr.mxu0 0.0
        %853 = vmatpush1.msra.mxu0 0.0
        %854 = vmatprep.subr.mxu0 0.0
        %855 = vmatpush1.msra.mxu0 0.0
        %856 = vmatprep.subr.mxu0 0.0
        %857 = vmatpush1.msra.mxu0 0.0
        %858 = vmatprep.subr.mxu0 0.0
        %859 = vmatpush1.msra.mxu0 0.0
        %860 = vmatprep.subr.mxu0 0.0
        %861 = vmatpush1.msra.mxu0 0.0
        %862 = vmatprep.subr.mxu0 0.0
        %863 = vmatpush1.msra.mxu0 0.0
        %864 = vmatprep.subr.mxu0 0.0
        %865 = vmatpush1.msra.mxu0 0.0
        %866 = vmatprep.subr.mxu0 0.0
        %867 = vmatpush1.msra.mxu0 0.0
        %868 = vmatprep.subr.mxu0 0.0
        %869 = vmatpush1.msra.mxu0 0.0
        %870 = vmatprep.subr.mxu0 0.0
        %871 = vmatpush1.msra.mxu0 0.0
        %872 = vmatprep.subr.mxu0 0.0
        %873 = vmatpush1.msra.mxu0 0.0
        %874 = vmatprep.subr.mxu0 0.0
        %875 = vmatpush1.msra.mxu0 0.0
        %876 = vmatprep.subr.mxu0 0.0
        %877 = vmatpush1.msra.mxu0 0.0
        %878 = vmatprep.subr.mxu0 0.0
        %879 = vmatpush1.msra.mxu0 0.0
        %880 = vmatprep.subr.mxu0 0.0
        %881 = vmatpush1.msra.mxu0 0.0
        %882 = vmatprep.subr.mxu0 0.0
        %883 = vmatpush1.msra.mxu0 0.0
        %884 = vmatprep.subr.mxu0 0.0
        %885 = vmatpush1.msra.mxu0 0.0
        %886 = vmatprep.subr.mxu0 0.0
        %887 = vmatpush1.msra.mxu0 0.0
        %888 = vmatprep.subr.mxu0 0.0
        %889 = vmatpush1.msra.mxu0 0.0
        %890 = vmatprep.subr.mxu0 0.0
        %891 = vmatpush1.msra.mxu0 0.0
        %892 = vmatprep.subr.mxu0 0.0
        %893 = vmatpush1.msra.mxu0 0.0
        %894 = vmatprep.subr.mxu0 0.0
        %895 = vmatpush1.msra.mxu0 0.0
        %896 = vmatprep.subr.mxu0 0.0
        %897 = vmatpush1.msra.mxu0 0.0
        %898 = vmatprep.subr.mxu0 0.0
        %899 = vmatpush1.msra.mxu0 0.0
        %900 = vmatprep.subr.mxu0 0.0
        %901 = vmatpush1.msra.mxu0 0.0
        %902 = vmatprep.subr.mxu0 0.0
        %903 = vmatpush1.msra.mxu0 0.0
        %904 = vmatprep.subr.mxu0 0.0
        %905 = vmatpush1.msra.mxu0 0.0
        %906 = vmatprep.subr.mxu0 0.0
        %907 = vmatpush1.msra.mxu0 0.0
        %908 = vmatprep.mubr.f32.mxu0 0.0
        %v909 = vand.u32 %v838, 4294901760
        %v910 = vsub.f32 %v838, %v909
        %v911 = vand.u32 %v910, 4294901760
        %v912 = vsub.f32 %v910, %v911
        %v913 = vand.u32 %v912, 4294901760
        %914 = vmatmul.mubr.f32.gmra.mrb[0].mxu0 %v913
        %v915 = vpop.f32.mrb[0].mxu0
        %v916 = vadd.f32 0.0, %v915
        %v917 = vpop.f32.mrb[0].mxu0
        %918 = vdwg.mxu0
        %919 = vmatprep.subr.mxu0 0.0
        %v920 = vand.u32 %v367, 4294901760
        %v921 = vsub.f32 %v367, %v920
        %v922 = vand.u32 %v921, 4294901760
        %v923 = vsub.f32 %v921, %v922
        %v924 = vand.u32 %v923, 4294901760
        %925 = vmatpush1.msra.mxu0 %v924
        %926 = vmatprep.subr.mxu0 0.0
        %v927 = vand.u32 %v368, 4294901760
        %v928 = vsub.f32 %v368, %v927
        %v929 = vand.u32 %v928, 4294901760
        %v930 = vsub.f32 %v928, %v929
        %v931 = vand.u32 %v930, 4294901760
        %932 = vmatpush1.msra.mxu0 %v931
        %933 = vmatprep.subr.mxu0 0.0
        %v934 = vand.u32 %v369, 4294901760
        %v935 = vsub.f32 %v369, %v934
        %v936 = vand.u32 %v935, 4294901760
        %v937 = vsub.f32 %v935, %v936
        %v938 = vand.u32 %v937, 4294901760
        %939 = vmatpush1.msra.mxu0 %v938
        %940 = vmatprep.subr.mxu0 0.0
        %v941 = vand.u32 %v370, 4294901760
        %v942 = vsub.f32 %v370, %v941
        %v943 = vand.u32 %v942, 4294901760
        %v944 = vsub.f32 %v942, %v943
        %v945 = vand.u32 %v944, 4294901760
        %946 = vmatpush1.msra.mxu0 %v945
        %947 = vmatprep.subr.mxu0 0.0
        %948 = vmatpush1.msra.mxu0 0.0
        %949 = vmatprep.subr.mxu0 0.0
        %950 = vmatpush1.msra.mxu0 0.0
        %951 = vmatprep.subr.mxu0 0.0
        %952 = vmatpush1.msra.mxu0 0.0
        %953 = vmatprep.subr.mxu0 0.0
        %954 = vmatpush1.msra.mxu0 0.0
        %955 = vmatprep.subr.mxu0 0.0
        %956 = vmatpush1.msra.mxu0 0.0
        %957 = vmatprep.subr.mxu0 0.0
        %958 = vmatpush1.msra.mxu0 0.0
        %959 = vmatprep.subr.mxu0 0.0
        %960 = vmatpush1.msra.mxu0 0.0
        %961 = vmatprep.subr.mxu0 0.0
        %962 = vmatpush1.msra.mxu0 0.0
        %963 = vmatprep.subr.mxu0 0.0
        %964 = vmatpush1.msra.mxu0 0.0
        %965 = vmatprep.subr.mxu0 0.0
        %966 = vmatpush1.msra.mxu0 0.0
        %967 = vmatprep.subr.mxu0 0.0
        %968 = vmatpush1.msra.mxu0 0.0
        %969 = vmatprep.subr.mxu0 0.0
        %970 = vmatpush1.msra.mxu0 0.0
        %971 = vmatprep.subr.mxu0 0.0
        %972 = vmatpush1.msra.mxu0 0.0
        %973 = vmatprep.subr.mxu0 0.0
        %974 = vmatpush1.msra.mxu0 0.0
        %975 = vmatprep.subr.mxu0 0.0
        %976 = vmatpush1.msra.mxu0 0.0
        %977 = vmatprep.subr.mxu0 0.0
        %978 = vmatpush1.msra.mxu0 0.0
        %979 = vmatprep.subr.mxu0 0.0
        %980 = vmatpush1.msra.mxu0 0.0
        %981 = vmatprep.subr.mxu0 0.0
        %982 = vmatpush1.msra.mxu0 0.0
        %983 = vmatprep.subr.mxu0 0.0
        %984 = vmatpush1.msra.mxu0 0.0
        %985 = vmatprep.subr.mxu0 0.0
        %986 = vmatpush1.msra.mxu0 0.0
        %987 = vmatprep.subr.mxu0 0.0
        %988 = vmatpush1.msra.mxu0 0.0
        %989 = vmatprep.subr.mxu0 0.0
        %990 = vmatpush1.msra.mxu0 0.0
        %991 = vmatprep.subr.mxu0 0.0
        %992 = vmatpush1.msra.mxu0 0.0
        %993 = vmatprep.subr.mxu0 0.0
        %994 = vmatpush1.msra.mxu0 0.0
        %995 = vmatprep.subr.mxu0 0.0
        %996 = vmatpush1.msra.mxu0 0.0
        %997 = vmatprep.subr.mxu0 0.0
        %998 = vmatpush1.msra.mxu0 0.0
        %999 = vmatprep.subr.mxu0 0.0
        %1000 = vmatpush1.msra.mxu0 0.0
        %1001 = vmatprep.subr.mxu0 0.0
        %1002 = vmatpush1.msra.mxu0 0.0
        %1003 = vmatprep.mubr.f32.mxu0 0.0
        %v1004 = vand.u32 %v838, 4294901760
        %1005 = vmatmul.mubr.f32.gmra.mrb[0].mxu0 %v1004
        %v1006 = vpop.f32.mrb[0].mxu0
        %v1007 = vadd.f32 %v916, %v1006
        %v1008 = vpop.f32.mrb[0].mxu0
        %1009 = vdwg.mxu0
        %1010 = vmatprep.subr.mxu0 0.0
        %v1011 = vand.u32 %v367, 4294901760
        %v1012 = vsub.f32 %v367, %v1011
        %1013 = vmatpush1.msra.mxu0 %v1012
        %1014 = vmatprep.subr.mxu0 0.0
        %v1015 = vand.u32 %v368, 4294901760
        %v1016 = vsub.f32 %v368, %v1015
        %1017 = vmatpush1.msra.mxu0 %v1016
        %1018 = vmatprep.subr.mxu0 0.0
        %v1019 = vand.u32 %v369, 4294901760
        %v1020 = vsub.f32 %v369, %v1019
        %1021 = vmatpush1.msra.mxu0 %v1020
        %1022 = vmatprep.subr.mxu0 0.0
        %v1023 = vand.u32 %v370, 4294901760
        %v1024 = vsub.f32 %v370, %v1023
        %1025 = vmatpush1.msra.mxu0 %v1024
        %1026 = vmatprep.subr.mxu0 0.0
        %1027 = vmatpush1.msra.mxu0 0.0
        %1028 = vmatprep.subr.mxu0 0.0
        %1029 = vmatpush1.msra.mxu0 0.0
        %1030 = vmatprep.subr.mxu0 0.0
        %1031 = vmatpush1.msra.mxu0 0.0
        %1032 = vmatprep.subr.mxu0 0.0
        %1033 = vmatpush1.msra.mxu0 0.0
        %1034 = vmatprep.subr.mxu0 0.0
        %1035 = vmatpush1.msra.mxu0 0.0
        %1036 = vmatprep.subr.mxu0 0.0
        %1037 = vmatpush1.msra.mxu0 0.0
        %1038 = vmatprep.subr.mxu0 0.0
        %1039 = vmatpush1.msra.mxu0 0.0
        %1040 = vmatprep.subr.mxu0 0.0
        %1041 = vmatpush1.msra.mxu0 0.0
        %1042 = vmatprep.subr.mxu0 0.0
        %1043 = vmatpush1.msra.mxu0 0.0
        %1044 = vmatprep.subr.mxu0 0.0
        %1045 = vmatpush1.msra.mxu0 0.0
        %1046 = vmatprep.subr.mxu0 0.0
        %1047 = vmatpush1.msra.mxu0 0.0
        %1048 = vmatprep.subr.mxu0 0.0
        %1049 = vmatpush1.msra.mxu0 0.0
        %1050 = vmatprep.subr.mxu0 0.0
        %1051 = vmatpush1.msra.mxu0 0.0
        %1052 = vmatprep.subr.mxu0 0.0
        %1053 = vmatpush1.msra.mxu0 0.0
        %1054 = vmatprep.subr.mxu0 0.0
        %1055 = vmatpush1.msra.mxu0 0.0
        %1056 = vmatprep.subr.mxu0 0.0
        %1057 = vmatpush1.msra.mxu0 0.0
        %1058 = vmatprep.subr.mxu0 0.0
        %1059 = vmatpush1.msra.mxu0 0.0
        %1060 = vmatprep.subr.mxu0 0.0
        %1061 = vmatpush1.msra.mxu0 0.0
        %1062 = vmatprep.subr.mxu0 0.0
        %1063 = vmatpush1.msra.mxu0 0.0
        %1064 = vmatprep.subr.mxu0 0.0
        %1065 = vmatpush1.msra.mxu0 0.0
        %1066 = vmatprep.subr.mxu0 0.0
        %1067 = vmatpush1.msra.mxu0 0.0
        %1068 = vmatprep.subr.mxu0 0.0
        %1069 = vmatpush1.msra.mxu0 0.0
        %1070 = vmatprep.subr.mxu0 0.0
        %1071 = vmatpush1.msra.mxu0 0.0
        %1072 = vmatprep.subr.mxu0 0.0
        %1073 = vmatpush1.msra.mxu0 0.0
        %1074 = vmatprep.subr.mxu0 0.0
        %1075 = vmatpush1.msra.mxu0 0.0
        %1076 = vmatprep.subr.mxu0 0.0
        %1077 = vmatpush1.msra.mxu0 0.0
        %1078 = vmatprep.subr.mxu0 0.0
        %1079 = vmatpush1.msra.mxu0 0.0
        %1080 = vmatprep.subr.mxu0 0.0
        %1081 = vmatpush1.msra.mxu0 0.0
        %1082 = vmatprep.mubr.f32.mxu0 0.0
        %v1083 = vand.u32 %v838, 4294901760
        %v1084 = vsub.f32 %v838, %v1083
        %1085 = vmatmul.mubr.f32.gmra.mrb[0].mxu0 %v1084
        %v1086 = vpop.f32.mrb[0].mxu0
        %v1087 = vadd.f32 %v1007, %v1086
        %v1088 = vpop.f32.mrb[0].mxu0
        %1089 = vdwg.mxu0
        %1090 = vmatprep.subr.mxu0 0.0
        %v1091 = vand.u32 %v367, 4294901760
        %1092 = vmatpush1.msra.mxu0 %v1091
        %1093 = vmatprep.subr.mxu0 0.0
        %v1094 = vand.u32 %v368, 4294901760
        %1095 = vmatpush1.msra.mxu0 %v1094
        %1096 = vmatprep.subr.mxu0 0.0
        %v1097 = vand.u32 %v369, 4294901760
        %1098 = vmatpush1.msra.mxu0 %v1097
        %1099 = vmatprep.subr.mxu0 0.0
        %v1100 = vand.u32 %v370, 4294901760
        %1101 = vmatpush1.msra.mxu0 %v1100
        %1102 = vmatprep.subr.mxu0 0.0
        %1103 = vmatpush1.msra.mxu0 0.0
        %1104 = vmatprep.subr.mxu0 0.0
        %1105 = vmatpush1.msra.mxu0 0.0
        %1106 = vmatprep.subr.mxu0 0.0
        %1107 = vmatpush1.msra.mxu0 0.0
        %1108 = vmatprep.subr.mxu0 0.0
        %1109 = vmatpush1.msra.mxu0 0.0
        %1110 = vmatprep.subr.mxu0 0.0
        %1111 = vmatpush1.msra.mxu0 0.0
        %1112 = vmatprep.subr.mxu0 0.0
        %1113 = vmatpush1.msra.mxu0 0.0
        %1114 = vmatprep.subr.mxu0 0.0
        %1115 = vmatpush1.msra.mxu0 0.0
        %1116 = vmatprep.subr.mxu0 0.0
        %1117 = vmatpush1.msra.mxu0 0.0
        %1118 = vmatprep.subr.mxu0 0.0
        %1119 = vmatpush1.msra.mxu0 0.0
        %1120 = vmatprep.subr.mxu0 0.0
        %1121 = vmatpush1.msra.mxu0 0.0
        %1122 = vmatprep.subr.mxu0 0.0
        %1123 = vmatpush1.msra.mxu0 0.0
        %1124 = vmatprep.subr.mxu0 0.0
        %1125 = vmatpush1.msra.mxu0 0.0
        %1126 = vmatprep.subr.mxu0 0.0
        %1127 = vmatpush1.msra.mxu0 0.0
        %1128 = vmatprep.subr.mxu0 0.0
        %1129 = vmatpush1.msra.mxu0 0.0
        %1130 = vmatprep.subr.mxu0 0.0
        %1131 = vmatpush1.msra.mxu0 0.0
        %1132 = vmatprep.subr.mxu0 0.0
        %1133 = vmatpush1.msra.mxu0 0.0
        %1134 = vmatprep.subr.mxu0 0.0
        %1135 = vmatpush1.msra.mxu0 0.0
        %1136 = vmatprep.subr.mxu0 0.0
        %1137 = vmatpush1.msra.mxu0 0.0
        %1138 = vmatprep.subr.mxu0 0.0
        %1139 = vmatpush1.msra.mxu0 0.0
        %1140 = vmatprep.subr.mxu0 0.0
        %1141 = vmatpush1.msra.mxu0 0.0
        %1142 = vmatprep.subr.mxu0 0.0
        %1143 = vmatpush1.msra.mxu0 0.0
        %1144 = vmatprep.subr.mxu0 0.0
        %1145 = vmatpush1.msra.mxu0 0.0
        %1146 = vmatprep.subr.mxu0 0.0
        %1147 = vmatpush1.msra.mxu0 0.0
        %1148 = vmatprep.subr.mxu0 0.0
        %1149 = vmatpush1.msra.mxu0 0.0
        %1150 = vmatprep.subr.mxu0 0.0
        %1151 = vmatpush1.msra.mxu0 0.0
        %1152 = vmatprep.subr.mxu0 0.0
        %1153 = vmatpush1.msra.mxu0 0.0
        %1154 = vmatprep.subr.mxu0 0.0
        %1155 = vmatpush1.msra.mxu0 0.0
        %1156 = vmatprep.subr.mxu0 0.0
        %1157 = vmatpush1.msra.mxu0 0.0
        %1158 = vmatprep.mubr.f32.mxu0 0.0
        %v1159 = vand.u32 %v838, 4294901760
        %v1160 = vsub.f32 %v838, %v1159
        %v1161 = vand.u32 %v1160, 4294901760
        %1162 = vmatmul.mubr.f32.gmra.mrb[0].mxu0 %v1161
        %v1163 = vpop.f32.mrb[0].mxu0
        %v1164 = vadd.f32 %v1087, %v1163
        %v1165 = vpop.f32.mrb[0].mxu0
        %1166 = vdwg.mxu0
        %1167 = vmatprep.subr.mxu0 0.0
        %v1168 = vand.u32 %v367, 4294901760
        %v1169 = vsub.f32 %v367, %v1168
        %v1170 = vand.u32 %v1169, 4294901760
        %1171 = vmatpush1.msra.mxu0 %v1170
        %1172 = vmatprep.subr.mxu0 0.0
        %v1173 = vand.u32 %v368, 4294901760
        %v1174 = vsub.f32 %v368, %v1173
        %v1175 = vand.u32 %v1174, 4294901760
        %1176 = vmatpush1.msra.mxu0 %v1175
        %1177 = vmatprep.subr.mxu0 0.0
        %v1178 = vand.u32 %v369, 4294901760
        %v1179 = vsub.f32 %v369, %v1178
        %v1180 = vand.u32 %v1179, 4294901760
        %1181 = vmatpush1.msra.mxu0 %v1180
        %1182 = vmatprep.subr.mxu0 0.0
        %v1183 = vand.u32 %v370, 4294901760
        %v1184 = vsub.f32 %v370, %v1183
        %v1185 = vand.u32 %v1184, 4294901760
        %1186 = vmatpush1.msra.mxu0 %v1185
        %1187 = vmatprep.subr.mxu0 0.0
        %1188 = vmatpush1.msra.mxu0 0.0
        %1189 = vmatprep.subr.mxu0 0.0
        %1190 = vmatpush1.msra.mxu0 0.0
        %1191 = vmatprep.subr.mxu0 0.0
        %1192 = vmatpush1.msra.mxu0 0.0
        %1193 = vmatprep.subr.mxu0 0.0
        %1194 = vmatpush1.msra.mxu0 0.0
        %1195 = vmatprep.subr.mxu0 0.0
        %1196 = vmatpush1.msra.mxu0 0.0
        %1197 = vmatprep.subr.mxu0 0.0
        %1198 = vmatpush1.msra.mxu0 0.0
        %1199 = vmatprep.subr.mxu0 0.0
        %1200 = vmatpush1.msra.mxu0 0.0
        %1201 = vmatprep.subr.mxu0 0.0
        %1202 = vmatpush1.msra.mxu0 0.0
        %1203 = vmatprep.subr.mxu0 0.0
        %1204 = vmatpush1.msra.mxu0 0.0
        %1205 = vmatprep.subr.mxu0 0.0
        %1206 = vmatpush1.msra.mxu0 0.0
        %1207 = vmatprep.subr.mxu0 0.0
        %1208 = vmatpush1.msra.mxu0 0.0
        %1209 = vmatprep.subr.mxu0 0.0
        %1210 = vmatpush1.msra.mxu0 0.0
        %1211 = vmatprep.subr.mxu0 0.0
        %1212 = vmatpush1.msra.mxu0 0.0
        %1213 = vmatprep.subr.mxu0 0.0
        %1214 = vmatpush1.msra.mxu0 0.0
        %1215 = vmatprep.subr.mxu0 0.0
        %1216 = vmatpush1.msra.mxu0 0.0
        %1217 = vmatprep.subr.mxu0 0.0
        %1218 = vmatpush1.msra.mxu0 0.0
        %1219 = vmatprep.subr.mxu0 0.0
        %1220 = vmatpush1.msra.mxu0 0.0
        %1221 = vmatprep.subr.mxu0 0.0
        %1222 = vmatpush1.msra.mxu0 0.0
        %1223 = vmatprep.subr.mxu0 0.0
        %1224 = vmatpush1.msra.mxu0 0.0
        %1225 = vmatprep.subr.mxu0 0.0
        %1226 = vmatpush1.msra.mxu0 0.0
        %1227 = vmatprep.subr.mxu0 0.0
        %1228 = vmatpush1.msra.mxu0 0.0
        %1229 = vmatprep.subr.mxu0 0.0
        %1230 = vmatpush1.msra.mxu0 0.0
        %1231 = vmatprep.subr.mxu0 0.0
        %1232 = vmatpush1.msra.mxu0 0.0
        %1233 = vmatprep.subr.mxu0 0.0
        %1234 = vmatpush1.msra.mxu0 0.0
        %1235 = vmatprep.subr.mxu0 0.0
        %1236 = vmatpush1.msra.mxu0 0.0
        %1237 = vmatprep.subr.mxu0 0.0
        %1238 = vmatpush1.msra.mxu0 0.0
        %1239 = vmatprep.subr.mxu0 0.0
        %1240 = vmatpush1.msra.mxu0 0.0
        %1241 = vmatprep.subr.mxu0 0.0
        %1242 = vmatpush1.msra.mxu0 0.0
        %1243 = vmatprep.mubr.f32.mxu0 0.0
        %v1244 = vand.u32 %v838, 4294901760
        %1245 = vmatmul.mubr.f32.gmra.mrb[0].mxu0 %v1244
        %v1246 = vpop.f32.mrb[0].mxu0
        %v1247 = vadd.f32 %v1164, %v1246
        %v1248 = vpop.f32.mrb[0].mxu0
        %1249 = vdwg.mxu0
        %1250 = vmatprep.subr.mxu0 0.0
        %v1251 = vand.u32 %v367, 4294901760
        %1252 = vmatpush1.msra.mxu0 %v1251
        %1253 = vmatprep.subr.mxu0 0.0
        %v1254 = vand.u32 %v368, 4294901760
        %1255 = vmatpush1.msra.mxu0 %v1254
        %1256 = vmatprep.subr.mxu0 0.0
        %v1257 = vand.u32 %v369, 4294901760
        %1258 = vmatpush1.msra.mxu0 %v1257
        %1259 = vmatprep.subr.mxu0 0.0
        %v1260 = vand.u32 %v370, 4294901760
        %1261 = vmatpush1.msra.mxu0 %v1260
        %1262 = vmatprep.subr.mxu0 0.0
        %1263 = vmatpush1.msra.mxu0 0.0
        %1264 = vmatprep.subr.mxu0 0.0
        %1265 = vmatpush1.msra.mxu0 0.0
        %1266 = vmatprep.subr.mxu0 0.0
        %1267 = vmatpush1.msra.mxu0 0.0
        %1268 = vmatprep.subr.mxu0 0.0
        %1269 = vmatpush1.msra.mxu0 0.0
        %1270 = vmatprep.subr.mxu0 0.0
        %1271 = vmatpush1.msra.mxu0 0.0
        %1272 = vmatprep.subr.mxu0 0.0
        %1273 = vmatpush1.msra.mxu0 0.0
        %1274 = vmatprep.subr.mxu0 0.0
        %1275 = vmatpush1.msra.mxu0 0.0
        %1276 = vmatprep.subr.mxu0 0.0
        %1277 = vmatpush1.msra.mxu0 0.0
        %1278 = vmatprep.subr.mxu0 0.0
        %1279 = vmatpush1.msra.mxu0 0.0
        %1280 = vmatprep.subr.mxu0 0.0
        %1281 = vmatpush1.msra.mxu0 0.0
        %1282 = vmatprep.subr.mxu0 0.0
        %1283 = vmatpush1.msra.mxu0 0.0
        %1284 = vmatprep.subr.mxu0 0.0
        %1285 = vmatpush1.msra.mxu0 0.0
        %1286 = vmatprep.subr.mxu0 0.0
        %1287 = vmatpush1.msra.mxu0 0.0
        %1288 = vmatprep.subr.mxu0 0.0
        %1289 = vmatpush1.msra.mxu0 0.0
        %1290 = vmatprep.subr.mxu0 0.0
        %1291 = vmatpush1.msra.mxu0 0.0
        %1292 = vmatprep.subr.mxu0 0.0
        %1293 = vmatpush1.msra.mxu0 0.0
        %1294 = vmatprep.subr.mxu0 0.0
        %1295 = vmatpush1.msra.mxu0 0.0
        %1296 = vmatprep.subr.mxu0 0.0
        %1297 = vmatpush1.msra.mxu0 0.0
        %1298 = vmatprep.subr.mxu0 0.0
        %1299 = vmatpush1.msra.mxu0 0.0
        %1300 = vmatprep.subr.mxu0 0.0
        %1301 = vmatpush1.msra.mxu0 0.0
        %1302 = vmatprep.subr.mxu0 0.0
        %1303 = vmatpush1.msra.mxu0 0.0
        %1304 = vmatprep.subr.mxu0 0.0
        %1305 = vmatpush1.msra.mxu0 0.0
        %1306 = vmatprep.subr.mxu0 0.0
        %1307 = vmatpush1.msra.mxu0 0.0
        %1308 = vmatprep.subr.mxu0 0.0
        %1309 = vmatpush1.msra.mxu0 0.0
        %1310 = vmatprep.subr.mxu0 0.0
        %1311 = vmatpush1.msra.mxu0 0.0
        %1312 = vmatprep.subr.mxu0 0.0
        %1313 = vmatpush1.msra.mxu0 0.0
        %1314 = vmatprep.subr.mxu0 0.0
        %1315 = vmatpush1.msra.mxu0 0.0
        %1316 = vmatprep.subr.mxu0 0.0
        %1317 = vmatpush1.msra.mxu0 0.0
        %1318 = vmatprep.mubr.f32.mxu0 0.0
        %v1319 = vand.u32 %v838, 4294901760
        %1320 = vmatmul.mubr.f32.gmra.mrb[0].mxu0 %v1319
        %v1321 = vpop.f32.mrb[0].mxu0
        %v1322 = vadd.f32 %v1247, %v1321
        %v1323 = vpop.f32.mrb[0].mxu0
        %1324 = vdwg.mxu0
        %1325 = vmatprep.subr.mxu0 0.0
        %v1326 = vand.u32 %v363, 4294901760
        %1327 = vmatpush1.msra.mxu0 %v1326
        %1328 = vmatprep.subr.mxu0 0.0
        %v1329 = vand.u32 %v364, 4294901760
        %1330 = vmatpush1.msra.mxu0 %v1329
        %1331 = vmatprep.subr.mxu0 0.0
        %v1332 = vand.u32 %v365, 4294901760
        %1333 = vmatpush1.msra.mxu0 %v1332
        %1334 = vmatprep.subr.mxu0 0.0
        %v1335 = vand.u32 %v366, 4294901760
        %1336 = vmatpush1.msra.mxu0 %v1335
        %1337 = vmatprep.subr.mxu0 0.0
        %1338 = vmatpush1.msra.mxu0 0.0
        %1339 = vmatprep.subr.mxu0 0.0
        %1340 = vmatpush1.msra.mxu0 0.0
        %1341 = vmatprep.subr.mxu0 0.0
        %1342 = vmatpush1.msra.mxu0 0.0
        %1343 = vmatprep.subr.mxu0 0.0
        %1344 = vmatpush1.msra.mxu0 0.0
        %1345 = vmatprep.subr.mxu0 0.0
        %1346 = vmatpush1.msra.mxu0 0.0
        %1347 = vmatprep.subr.mxu0 0.0
        %1348 = vmatpush1.msra.mxu0 0.0
        %1349 = vmatprep.subr.mxu0 0.0
        %1350 = vmatpush1.msra.mxu0 0.0
        %1351 = vmatprep.subr.mxu0 0.0
        %1352 = vmatpush1.msra.mxu0 0.0
        %1353 = vmatprep.subr.mxu0 0.0
        %1354 = vmatpush1.msra.mxu0 0.0
        %1355 = vmatprep.subr.mxu0 0.0
        %1356 = vmatpush1.msra.mxu0 0.0
        %1357 = vmatprep.subr.mxu0 0.0
        %1358 = vmatpush1.msra.mxu0 0.0
        %1359 = vmatprep.subr.mxu0 0.0
        %1360 = vmatpush1.msra.mxu0 0.0
        %1361 = vmatprep.subr.mxu0 0.0
        %1362 = vmatpush1.msra.mxu0 0.0
        %1363 = vmatprep.subr.mxu0 0.0
        %1364 = vmatpush1.msra.mxu0 0.0
        %1365 = vmatprep.subr.mxu0 0.0
        %1366 = vmatpush1.msra.mxu0 0.0
        %1367 = vmatprep.subr.mxu0 0.0
        %1368 = vmatpush1.msra.mxu0 0.0
        %1369 = vmatprep.subr.mxu0 0.0
        %1370 = vmatpush1.msra.mxu0 0.0
        %1371 = vmatprep.subr.mxu0 0.0
        %1372 = vmatpush1.msra.mxu0 0.0
        %1373 = vmatprep.subr.mxu0 0.0
        %1374 = vmatpush1.msra.mxu0 0.0
        %1375 = vmatprep.subr.mxu0 0.0
        %1376 = vmatpush1.msra.mxu0 0.0
        %1377 = vmatprep.subr.mxu0 0.0
        %1378 = vmatpush1.msra.mxu0 0.0
        %1379 = vmatprep.subr.mxu0 0.0
        %1380 = vmatpush1.msra.mxu0 0.0
        %1381 = vmatprep.subr.mxu0 0.0
        %1382 = vmatpush1.msra.mxu0 0.0
        %1383 = vmatprep.subr.mxu0 0.0
        %1384 = vmatpush1.msra.mxu0 0.0
        %1385 = vmatprep.subr.mxu0 0.0
        %1386 = vmatpush1.msra.mxu0 0.0
        %1387 = vmatprep.subr.mxu0 0.0
        %1388 = vmatpush1.msra.mxu0 0.0
        %1389 = vmatprep.subr.mxu0 0.0
        %1390 = vmatpush1.msra.mxu0 0.0
        %1391 = vmatprep.subr.mxu0 0.0
        %1392 = vmatpush1.msra.mxu0 0.0
        %1393 = vmatprep.mubr.f32.mxu0 0.0
        %v1394 = vand.u32 %v838, 4294901760
        %v1395 = vsub.f32 %v838, %v1394
        %v1396 = vand.u32 %v1395, 4294901760
        %v1397 = vsub.f32 %v1395, %v1396
        %v1398 = vand.u32 %v1397, 4294901760
        %1399 = vmatmul.mubr.f32.gmra.mrb[0].mxu0 %v1398
        %v1400 = vpop.f32.mrb[0].mxu0
        %v1401 = vadd.f32 0.0, %v1400
        %v1402 = vpop.f32.mrb[0].mxu0
        %1403 = vdwg.mxu0
        %1404 = vmatprep.subr.mxu0 0.0
        %v1405 = vand.u32 %v363, 4294901760
        %v1406 = vsub.f32 %v363, %v1405
        %v1407 = vand.u32 %v1406, 4294901760
        %v1408 = vsub.f32 %v1406, %v1407
        %v1409 = vand.u32 %v1408, 4294901760
        %1410 = vmatpush1.msra.mxu0 %v1409
        %1411 = vmatprep.subr.mxu0 0.0
        %v1412 = vand.u32 %v364, 4294901760
        %v1413 = vsub.f32 %v364, %v1412
        %v1414 = vand.u32 %v1413, 4294901760
        %v1415 = vsub.f32 %v1413, %v1414
        %v1416 = vand.u32 %v1415, 4294901760
        %1417 = vmatpush1.msra.mxu0 %v1416
        %1418 = vmatprep.subr.mxu0 0.0
        %v1419 = vand.u32 %v365, 4294901760
        %v1420 = vsub.f32 %v365, %v1419
        %v1421 = vand.u32 %v1420, 4294901760
        %v1422 = vsub.f32 %v1420, %v1421
        %v1423 = vand.u32 %v1422, 4294901760
        %1424 = vmatpush1.msra.mxu0 %v1423
        %1425 = vmatprep.subr.mxu0 0.0
        %v1426 = vand.u32 %v366, 4294901760
        %v1427 = vsub.f32 %v366, %v1426
        %v1428 = vand.u32 %v1427, 4294901760
        %v1429 = vsub.f32 %v1427, %v1428
        %v1430 = vand.u32 %v1429, 4294901760
        %1431 = vmatpush1.msra.mxu0 %v1430
        %1432 = vmatprep.subr.mxu0 0.0
        %1433 = vmatpush1.msra.mxu0 0.0
        %1434 = vmatprep.subr.mxu0 0.0
        %1435 = vmatpush1.msra.mxu0 0.0
        %1436 = vmatprep.subr.mxu0 0.0
        %1437 = vmatpush1.msra.mxu0 0.0
        %1438 = vmatprep.subr.mxu0 0.0
        %1439 = vmatpush1.msra.mxu0 0.0
        %1440 = vmatprep.subr.mxu0 0.0
        %1441 = vmatpush1.msra.mxu0 0.0
        %1442 = vmatprep.subr.mxu0 0.0
        %1443 = vmatpush1.msra.mxu0 0.0
        %1444 = vmatprep.subr.mxu0 0.0
        %1445 = vmatpush1.msra.mxu0 0.0
        %1446 = vmatprep.subr.mxu0 0.0
        %1447 = vmatpush1.msra.mxu0 0.0
        %1448 = vmatprep.subr.mxu0 0.0
        %1449 = vmatpush1.msra.mxu0 0.0
        %1450 = vmatprep.subr.mxu0 0.0
        %1451 = vmatpush1.msra.mxu0 0.0
        %1452 = vmatprep.subr.mxu0 0.0
        %1453 = vmatpush1.msra.mxu0 0.0
        %1454 = vmatprep.subr.mxu0 0.0
        %1455 = vmatpush1.msra.mxu0 0.0
        %1456 = vmatprep.subr.mxu0 0.0
        %1457 = vmatpush1.msra.mxu0 0.0
        %1458 = vmatprep.subr.mxu0 0.0
        %1459 = vmatpush1.msra.mxu0 0.0
        %1460 = vmatprep.subr.mxu0 0.0
        %1461 = vmatpush1.msra.mxu0 0.0
        %1462 = vmatprep.subr.mxu0 0.0
        %1463 = vmatpush1.msra.mxu0 0.0
        %1464 = vmatprep.subr.mxu0 0.0
        %1465 = vmatpush1.msra.mxu0 0.0
        %1466 = vmatprep.subr.mxu0 0.0
        %1467 = vmatpush1.msra.mxu0 0.0
        %1468 = vmatprep.subr.mxu0 0.0
        %1469 = vmatpush1.msra.mxu0 0.0
        %1470 = vmatprep.subr.mxu0 0.0
        %1471 = vmatpush1.msra.mxu0 0.0
        %1472 = vmatprep.subr.mxu0 0.0
        %1473 = vmatpush1.msra.mxu0 0.0
        %1474 = vmatprep.subr.mxu0 0.0
        %1475 = vmatpush1.msra.mxu0 0.0
        %1476 = vmatprep.subr.mxu0 0.0
        %1477 = vmatpush1.msra.mxu0 0.0
        %1478 = vmatprep.subr.mxu0 0.0
        %1479 = vmatpush1.msra.mxu0 0.0
        %1480 = vmatprep.subr.mxu0 0.0
        %1481 = vmatpush1.msra.mxu0 0.0
        %1482 = vmatprep.subr.mxu0 0.0
        %1483 = vmatpush1.msra.mxu0 0.0
        %1484 = vmatprep.subr.mxu0 0.0
        %1485 = vmatpush1.msra.mxu0 0.0
        %1486 = vmatprep.subr.mxu0 0.0
        %1487 = vmatpush1.msra.mxu0 0.0
        %1488 = vmatprep.mubr.f32.mxu0 0.0
        %v1489 = vand.u32 %v838, 4294901760
        %1490 = vmatmul.mubr.f32.gmra.mrb[0].mxu0 %v1489
        %v1491 = vpop.f32.mrb[0].mxu0
        %v1492 = vadd.f32 %v1401, %v1491
        %v1493 = vpop.f32.mrb[0].mxu0
        %1494 = vdwg.mxu0
        %1495 = vmatprep.subr.mxu0 0.0
        %v1496 = vand.u32 %v363, 4294901760
        %v1497 = vsub.f32 %v363, %v1496
        %1498 = vmatpush1.msra.mxu0 %v1497
        %1499 = vmatprep.subr.mxu0 0.0
        %v1500 = vand.u32 %v364, 4294901760
        %v1501 = vsub.f32 %v364, %v1500
        %1502 = vmatpush1.msra.mxu0 %v1501
        %1503 = vmatprep.subr.mxu0 0.0
        %v1504 = vand.u32 %v365, 4294901760
        %v1505 = vsub.f32 %v365, %v1504
        %1506 = vmatpush1.msra.mxu0 %v1505
        %1507 = vmatprep.subr.mxu0 0.0
        %v1508 = vand.u32 %v366, 4294901760
        %v1509 = vsub.f32 %v366, %v1508
        %1510 = vmatpush1.msra.mxu0 %v1509
        %1511 = vmatprep.subr.mxu0 0.0
        %1512 = vmatpush1.msra.mxu0 0.0
        %1513 = vmatprep.subr.mxu0 0.0
        %1514 = vmatpush1.msra.mxu0 0.0
        %1515 = vmatprep.subr.mxu0 0.0
        %1516 = vmatpush1.msra.mxu0 0.0
        %1517 = vmatprep.subr.mxu0 0.0
        %1518 = vmatpush1.msra.mxu0 0.0
        %1519 = vmatprep.subr.mxu0 0.0
        %1520 = vmatpush1.msra.mxu0 0.0
        %1521 = vmatprep.subr.mxu0 0.0
        %1522 = vmatpush1.msra.mxu0 0.0
        %1523 = vmatprep.subr.mxu0 0.0
        %1524 = vmatpush1.msra.mxu0 0.0
        %1525 = vmatprep.subr.mxu0 0.0
        %1526 = vmatpush1.msra.mxu0 0.0
        %1527 = vmatprep.subr.mxu0 0.0
        %1528 = vmatpush1.msra.mxu0 0.0
        %1529 = vmatprep.subr.mxu0 0.0
        %1530 = vmatpush1.msra.mxu0 0.0
        %1531 = vmatprep.subr.mxu0 0.0
        %1532 = vmatpush1.msra.mxu0 0.0
        %1533 = vmatprep.subr.mxu0 0.0
        %1534 = vmatpush1.msra.mxu0 0.0
        %1535 = vmatprep.subr.mxu0 0.0
        %1536 = vmatpush1.msra.mxu0 0.0
        %1537 = vmatprep.subr.mxu0 0.0
        %1538 = vmatpush1.msra.mxu0 0.0
        %1539 = vmatprep.subr.mxu0 0.0
        %1540 = vmatpush1.msra.mxu0 0.0
        %1541 = vmatprep.subr.mxu0 0.0
        %1542 = vmatpush1.msra.mxu0 0.0
        %1543 = vmatprep.subr.mxu0 0.0
        %1544 = vmatpush1.msra.mxu0 0.0
        %1545 = vmatprep.subr.mxu0 0.0
        %1546 = vmatpush1.msra.mxu0 0.0
        %1547 = vmatprep.subr.mxu0 0.0
        %1548 = vmatpush1.msra.mxu0 0.0
        %1549 = vmatprep.subr.mxu0 0.0
        %1550 = vmatpush1.msra.mxu0 0.0
        %1551 = vmatprep.subr.mxu0 0.0
        %1552 = vmatpush1.msra.mxu0 0.0
        %1553 = vmatprep.subr.mxu0 0.0
        %1554 = vmatpush1.msra.mxu0 0.0
        %1555 = vmatprep.subr.mxu0 0.0
        %1556 = vmatpush1.msra.mxu0 0.0
        %1557 = vmatprep.subr.mxu0 0.0
        %1558 = vmatpush1.msra.mxu0 0.0
        %1559 = vmatprep.subr.mxu0 0.0
        %1560 = vmatpush1.msra.mxu0 0.0
        %1561 = vmatprep.subr.mxu0 0.0
        %1562 = vmatpush1.msra.mxu0 0.0
        %1563 = vmatprep.subr.mxu0 0.0
        %1564 = vmatpush1.msra.mxu0 0.0
        %1565 = vmatprep.subr.mxu0 0.0
        %1566 = vmatpush1.msra.mxu0 0.0
        %1567 = vmatprep.mubr.f32.mxu0 0.0
        %v1568 = vand.u32 %v838, 4294901760
        %v1569 = vsub.f32 %v838, %v1568
        %1570 = vmatmul.mubr.f32.gmra.mrb[0].mxu0 %v1569
        %v1571 = vpop.f32.mrb[0].mxu0
        %v1572 = vadd.f32 %v1492, %v1571
        %v1573 = vpop.f32.mrb[0].mxu0
        %1574 = vdwg.mxu0
        %1575 = vmatprep.subr.mxu0 0.0
        %v1576 = vand.u32 %v363, 4294901760
        %1577 = vmatpush1.msra.mxu0 %v1576
        %1578 = vmatprep.subr.mxu0 0.0
        %v1579 = vand.u32 %v364, 4294901760
        %1580 = vmatpush1.msra.mxu0 %v1579
        %1581 = vmatprep.subr.mxu0 0.0
        %v1582 = vand.u32 %v365, 4294901760
        %1583 = vmatpush1.msra.mxu0 %v1582
        %1584 = vmatprep.subr.mxu0 0.0
        %v1585 = vand.u32 %v366, 4294901760
        %1586 = vmatpush1.msra.mxu0 %v1585
        %1587 = vmatprep.subr.mxu0 0.0
        %1588 = vmatpush1.msra.mxu0 0.0
        %1589 = vmatprep.subr.mxu0 0.0
        %1590 = vmatpush1.msra.mxu0 0.0
        %1591 = vmatprep.subr.mxu0 0.0
        %1592 = vmatpush1.msra.mxu0 0.0
        %1593 = vmatprep.subr.mxu0 0.0
        %1594 = vmatpush1.msra.mxu0 0.0
        %1595 = vmatprep.subr.mxu0 0.0
        %1596 = vmatpush1.msra.mxu0 0.0
        %1597 = vmatprep.subr.mxu0 0.0
        %1598 = vmatpush1.msra.mxu0 0.0
        %1599 = vmatprep.subr.mxu0 0.0
        %1600 = vmatpush1.msra.mxu0 0.0
        %1601 = vmatprep.subr.mxu0 0.0
        %1602 = vmatpush1.msra.mxu0 0.0
        %1603 = vmatprep.subr.mxu0 0.0
        %1604 = vmatpush1.msra.mxu0 0.0
        %1605 = vmatprep.subr.mxu0 0.0
        %1606 = vmatpush1.msra.mxu0 0.0
        %1607 = vmatprep.subr.mxu0 0.0
        %1608 = vmatpush1.msra.mxu0 0.0
        %1609 = vmatprep.subr.mxu0 0.0
        %1610 = vmatpush1.msra.mxu0 0.0
        %1611 = vmatprep.subr.mxu0 0.0
        %1612 = vmatpush1.msra.mxu0 0.0
        %1613 = vmatprep.subr.mxu0 0.0
        %1614 = vmatpush1.msra.mxu0 0.0
        %1615 = vmatprep.subr.mxu0 0.0
        %1616 = vmatpush1.msra.mxu0 0.0
        %1617 = vmatprep.subr.mxu0 0.0
        %1618 = vmatpush1.msra.mxu0 0.0
        %1619 = vmatprep.subr.mxu0 0.0
        %1620 = vmatpush1.msra.mxu0 0.0
        %1621 = vmatprep.subr.mxu0 0.0
        %1622 = vmatpush1.msra.mxu0 0.0
        %1623 = vmatprep.subr.mxu0 0.0
        %1624 = vmatpush1.msra.mxu0 0.0
        %1625 = vmatprep.subr.mxu0 0.0
        %1626 = vmatpush1.msra.mxu0 0.0
        %1627 = vmatprep.subr.mxu0 0.0
        %1628 = vmatpush1.msra.mxu0 0.0
        %1629 = vmatprep.subr.mxu0 0.0
        %1630 = vmatpush1.msra.mxu0 0.0
        %1631 = vmatprep.subr.mxu0 0.0
        %1632 = vmatpush1.msra.mxu0 0.0
        %1633 = vmatprep.subr.mxu0 0.0
        %1634 = vmatpush1.msra.mxu0 0.0
        %1635 = vmatprep.subr.mxu0 0.0
        %1636 = vmatpush1.msra.mxu0 0.0
        %1637 = vmatprep.subr.mxu0 0.0
        %1638 = vmatpush1.msra.mxu0 0.0
        %1639 = vmatprep.subr.mxu0 0.0
        %1640 = vmatpush1.msra.mxu0 0.0
        %1641 = vmatprep.subr.mxu0 0.0
        %1642 = vmatpush1.msra.mxu0 0.0
        %1643 = vmatprep.mubr.f32.mxu0 0.0
        %v1644 = vand.u32 %v838, 4294901760
        %v1645 = vsub.f32 %v838, %v1644
        %v1646 = vand.u32 %v1645, 4294901760
        %1647 = vmatmul.mubr.f32.gmra.mrb[0].mxu0 %v1646
        %v1648 = vpop.f32.mrb[0].mxu0
        %v1649 = vadd.f32 %v1572, %v1648
        %v1650 = vpop.f32.mrb[0].mxu0
        %1651 = vdwg.mxu0
        %1652 = vmatprep.subr.mxu0 0.0
        %v1653 = vand.u32 %v363, 4294901760
        %v1654 = vsub.f32 %v363, %v1653
        %v1655 = vand.u32 %v1654, 4294901760
        %1656 = vmatpush1.msra.mxu0 %v1655
        %1657 = vmatprep.subr.mxu0 0.0
        %v1658 = vand.u32 %v364, 4294901760
        %v1659 = vsub.f32 %v364, %v1658
        %v1660 = vand.u32 %v1659, 4294901760
        %1661 = vmatpush1.msra.mxu0 %v1660
        %1662 = vmatprep.subr.mxu0 0.0
        %v1663 = vand.u32 %v365, 4294901760
        %v1664 = vsub.f32 %v365, %v1663
        %v1665 = vand.u32 %v1664, 4294901760
        %1666 = vmatpush1.msra.mxu0 %v1665
        %1667 = vmatprep.subr.mxu0 0.0
        %v1668 = vand.u32 %v366, 4294901760
        %v1669 = vsub.f32 %v366, %v1668
        %v1670 = vand.u32 %v1669, 4294901760
        %1671 = vmatpush1.msra.mxu0 %v1670
        %1672 = vmatprep.subr.mxu0 0.0
        %1673 = vmatpush1.msra.mxu0 0.0
        %1674 = vmatprep.subr.mxu0 0.0
        %1675 = vmatpush1.msra.mxu0 0.0
        %1676 = vmatprep.subr.mxu0 0.0
        %1677 = vmatpush1.msra.mxu0 0.0
        %1678 = vmatprep.subr.mxu0 0.0
        %1679 = vmatpush1.msra.mxu0 0.0
        %1680 = vmatprep.subr.mxu0 0.0
        %1681 = vmatpush1.msra.mxu0 0.0
        %1682 = vmatprep.subr.mxu0 0.0
        %1683 = vmatpush1.msra.mxu0 0.0
        %1684 = vmatprep.subr.mxu0 0.0
        %1685 = vmatpush1.msra.mxu0 0.0
        %1686 = vmatprep.subr.mxu0 0.0
        %1687 = vmatpush1.msra.mxu0 0.0
        %1688 = vmatprep.subr.mxu0 0.0
        %1689 = vmatpush1.msra.mxu0 0.0
        %1690 = vmatprep.subr.mxu0 0.0
        %1691 = vmatpush1.msra.mxu0 0.0
        %1692 = vmatprep.subr.mxu0 0.0
        %1693 = vmatpush1.msra.mxu0 0.0
        %1694 = vmatprep.subr.mxu0 0.0
        %1695 = vmatpush1.msra.mxu0 0.0
        %1696 = vmatprep.subr.mxu0 0.0
        %1697 = vmatpush1.msra.mxu0 0.0
        %1698 = vmatprep.subr.mxu0 0.0
        %1699 = vmatpush1.msra.mxu0 0.0
        %1700 = vmatprep.subr.mxu0 0.0
        %1701 = vmatpush1.msra.mxu0 0.0
        %1702 = vmatprep.subr.mxu0 0.0
        %1703 = vmatpush1.msra.mxu0 0.0
        %1704 = vmatprep.subr.mxu0 0.0
        %1705 = vmatpush1.msra.mxu0 0.0
        %1706 = vmatprep.subr.mxu0 0.0
        %1707 = vmatpush1.msra.mxu0 0.0
        %1708 = vmatprep.subr.mxu0 0.0
        %1709 = vmatpush1.msra.mxu0 0.0
        %1710 = vmatprep.subr.mxu0 0.0
        %1711 = vmatpush1.msra.mxu0 0.0
        %1712 = vmatprep.subr.mxu0 0.0
        %1713 = vmatpush1.msra.mxu0 0.0
        %1714 = vmatprep.subr.mxu0 0.0
        %1715 = vmatpush1.msra.mxu0 0.0
        %1716 = vmatprep.subr.mxu0 0.0
        %1717 = vmatpush1.msra.mxu0 0.0
        %1718 = vmatprep.subr.mxu0 0.0
        %1719 = vmatpush1.msra.mxu0 0.0
        %1720 = vmatprep.subr.mxu0 0.0
        %1721 = vmatpush1.msra.mxu0 0.0
        %1722 = vmatprep.subr.mxu0 0.0
        %1723 = vmatpush1.msra.mxu0 0.0
        %1724 = vmatprep.subr.mxu0 0.0
        %1725 = vmatpush1.msra.mxu0 0.0
        %1726 = vmatprep.subr.mxu0 0.0
        %1727 = vmatpush1.msra.mxu0 0.0
        %1728 = vmatprep.mubr.f32.mxu0 0.0
        %v1729 = vand.u32 %v838, 4294901760
        %1730 = vmatmul.mubr.f32.gmra.mrb[0].mxu0 %v1729
        %v1731 = vpop.f32.mrb[0].mxu0
        %v1732 = vadd.f32 %v1649, %v1731
        %v1733 = vpop.f32.mrb[0].mxu0
        %1734 = vdwg.mxu0
        %1735 = vmatprep.subr.mxu0 0.0
        %v1736 = vand.u32 %v363, 4294901760
        %1737 = vmatpush1.msra.mxu0 %v1736
        %1738 = vmatprep.subr.mxu0 0.0
        %v1739 = vand.u32 %v364, 4294901760
        %1740 = vmatpush1.msra.mxu0 %v1739
        %1741 = vmatprep.subr.mxu0 0.0
        %v1742 = vand.u32 %v365, 4294901760
        %1743 = vmatpush1.msra.mxu0 %v1742
        %1744 = vmatprep.subr.mxu0 0.0
        %v1745 = vand.u32 %v366, 4294901760
        %1746 = vmatpush1.msra.mxu0 %v1745
        %1747 = vmatprep.subr.mxu0 0.0
        %1748 = vmatpush1.msra.mxu0 0.0
        %1749 = vmatprep.subr.mxu0 0.0
        %1750 = vmatpush1.msra.mxu0 0.0
        %1751 = vmatprep.subr.mxu0 0.0
        %1752 = vmatpush1.msra.mxu0 0.0
        %1753 = vmatprep.subr.mxu0 0.0
        %1754 = vmatpush1.msra.mxu0 0.0
        %1755 = vmatprep.subr.mxu0 0.0
        %1756 = vmatpush1.msra.mxu0 0.0
        %1757 = vmatprep.subr.mxu0 0.0
        %1758 = vmatpush1.msra.mxu0 0.0
        %1759 = vmatprep.subr.mxu0 0.0
        %1760 = vmatpush1.msra.mxu0 0.0
        %1761 = vmatprep.subr.mxu0 0.0
        %1762 = vmatpush1.msra.mxu0 0.0
        %1763 = vmatprep.subr.mxu0 0.0
        %1764 = vmatpush1.msra.mxu0 0.0
        %1765 = vmatprep.subr.mxu0 0.0
        %1766 = vmatpush1.msra.mxu0 0.0
        %1767 = vmatprep.subr.mxu0 0.0
        %1768 = vmatpush1.msra.mxu0 0.0
        %1769 = vmatprep.subr.mxu0 0.0
        %1770 = vmatpush1.msra.mxu0 0.0
        %1771 = vmatprep.subr.mxu0 0.0
        %1772 = vmatpush1.msra.mxu0 0.0
        %1773 = vmatprep.subr.mxu0 0.0
        %1774 = vmatpush1.msra.mxu0 0.0
        %1775 = vmatprep.subr.mxu0 0.0
        %1776 = vmatpush1.msra.mxu0 0.0
        %1777 = vmatprep.subr.mxu0 0.0
        %1778 = vmatpush1.msra.mxu0 0.0
        %1779 = vmatprep.subr.mxu0 0.0
        %1780 = vmatpush1.msra.mxu0 0.0
        %1781 = vmatprep.subr.mxu0 0.0
        %1782 = vmatpush1.msra.mxu0 0.0
        %1783 = vmatprep.subr.mxu0 0.0
        %1784 = vmatpush1.msra.mxu0 0.0
        %1785 = vmatprep.subr.mxu0 0.0
        %1786 = vmatpush1.msra.mxu0 0.0
        %1787 = vmatprep.subr.mxu0 0.0
        %1788 = vmatpush1.msra.mxu0 0.0
        %1789 = vmatprep.subr.mxu0 0.0
        %1790 = vmatpush1.msra.mxu0 0.0
        %1791 = vmatprep.subr.mxu0 0.0
        %1792 = vmatpush1.msra.mxu0 0.0
        %1793 = vmatprep.subr.mxu0 0.0
        %1794 = vmatpush1.msra.mxu0 0.0
        %1795 = vmatprep.subr.mxu0 0.0
        %1796 = vmatpush1.msra.mxu0 0.0
        %1797 = vmatprep.subr.mxu0 0.0
        %1798 = vmatpush1.msra.mxu0 0.0
        %1799 = vmatprep.subr.mxu0 0.0
        %1800 = vmatpush1.msra.mxu0 0.0
        %1801 = vmatprep.subr.mxu0 0.0
        %1802 = vmatpush1.msra.mxu0 0.0
        %1803 = vmatprep.mubr.f32.mxu0 0.0
        %v1804 = vand.u32 %v838, 4294901760
        %1805 = vmatmul.mubr.f32.gmra.mrb[0].mxu0 %v1804
        %v1806 = vpop.f32.mrb[0].mxu0
        %v1807 = vadd.f32 %v1732, %v1806
        %v1808 = vpop.f32.mrb[0].mxu0
        %1809 = vdwg.mxu0
        %v1810 = vstv %s835
        %v1812 = vsel %vm378, %v1807, 0
        %1814 = vmatprep.subr.mxu0 0.0
        %v1815 = vand.u32 %v383, 4294901760
        %1816 = vmatpush1.xpose.msra.mxu0 %v1815
        %1817 = vmatprep.subr.mxu0 0.0
        %1818 = vmatpush1.xpose.msra.mxu0 0.0
        %1819 = vmatprep.subr.mxu0 0.0
        %1820 = vmatpush1.xpose.msra.mxu0 0.0
        %1821 = vmatprep.subr.mxu0 0.0
        %1822 = vmatpush1.xpose.msra.mxu0 0.0
        %1823 = vmatprep.subr.mxu0 0.0
        %1824 = vmatpush1.xpose.msra.mxu0 0.0
        %1825 = vmatprep.subr.mxu0 0.0
        %1826 = vmatpush1.xpose.msra.mxu0 0.0
        %1827 = vmatprep.subr.mxu0 0.0
        %1828 = vmatpush1.xpose.msra.mxu0 0.0
        %1829 = vmatprep.subr.mxu0 0.0
        %1830 = vmatpush1.xpose.msra.mxu0 0.0
        %1831 = vmatprep.subr.mxu0 0.0
        %1832 = vmatpush1.xpose.msra.mxu0 0.0
        %1833 = vmatprep.subr.mxu0 0.0
        %1834 = vmatpush1.xpose.msra.mxu0 0.0
        %1835 = vmatprep.subr.mxu0 0.0
        %1836 = vmatpush1.xpose.msra.mxu0 0.0
        %1837 = vmatprep.subr.mxu0 0.0
        %1838 = vmatpush1.xpose.msra.mxu0 0.0
        %1839 = vmatprep.subr.mxu0 0.0
        %1840 = vmatpush1.xpose.msra.mxu0 0.0
        %1841 = vmatprep.subr.mxu0 0.0
        %1842 = vmatpush1.xpose.msra.mxu0 0.0
        %1843 = vmatprep.subr.mxu0 0.0
        %1844 = vmatpush1.xpose.msra.mxu0 0.0
        %1845 = vmatprep.subr.mxu0 0.0
        %1846 = vmatpush1.xpose.msra.mxu0 0.0
        %1847 = vmatprep.subr.mxu0 0.0
        %1848 = vmatpush1.xpose.msra.mxu0 0.0
        %1849 = vmatprep.subr.mxu0 0.0
        %1850 = vmatpush1.xpose.msra.mxu0 0.0
        %1851 = vmatprep.subr.mxu0 0.0
        %1852 = vmatpush1.xpose.msra.mxu0 0.0
        %1853 = vmatprep.subr.mxu0 0.0
        %1854 = vmatpush1.xpose.msra.mxu0 0.0
        %1855 = vmatprep.subr.mxu0 0.0
        %1856 = vmatpush1.xpose.msra.mxu0 0.0
        %1857 = vmatprep.subr.mxu0 0.0
        %1858 = vmatpush1.xpose.msra.mxu0 0.0
        %1859 = vmatprep.subr.mxu0 0.0
        %1860 = vmatpush1.xpose.msra.mxu0 0.0
        %1861 = vmatprep.subr.mxu0 0.0
        %1862 = vmatpush1.xpose.msra.mxu0 0.0
        %1863 = vmatprep.subr.mxu0 0.0
        %1864 = vmatpush1.xpose.msra.mxu0 0.0
        %1865 = vmatprep.subr.mxu0 0.0
        %1866 = vmatpush1.xpose.msra.mxu0 0.0
        %1867 = vmatprep.subr.mxu0 0.0
        %1868 = vmatpush1.xpose.msra.mxu0 0.0
        %1869 = vmatprep.subr.mxu0 0.0
        %1870 = vmatpush1.xpose.msra.mxu0 0.0
        %1871 = vmatprep.subr.mxu0 0.0
        %1872 = vmatpush1.xpose.msra.mxu0 0.0
        %1873 = vmatprep.subr.mxu0 0.0
        %1874 = vmatpush1.xpose.msra.mxu0 0.0
        %1875 = vmatprep.subr.mxu0 0.0
        %1876 = vmatpush1.xpose.msra.mxu0 0.0
        %1877 = vmatprep.subr.mxu0 0.0
        %1878 = vmatpush1.xpose.msra.mxu0 0.0
        %1879 = vmatprep.mubr.f32.mxu0 0.0
        %v1880 = vand.u32 %v1812, 4294901760
        %v1881 = vsub.f32 %v1812, %v1880
        %v1882 = vand.u32 %v1881, 4294901760
        %v1883 = vsub.f32 %v1881, %v1882
        %v1884 = vand.u32 %v1883, 4294901760
        %1885 = vmatmul.mubr.f32.gmra.mrb[0].mxu0 %v1884
        %v1886 = vpop.f32.mrb[0].mxu0
        %v1887 = vadd.f32 0.0, %v1886
        %v1888 = vpop.f32.mrb[0].mxu0
        %1889 = vdwg.mxu0
        %1890 = vmatprep.subr.mxu0 0.0
        %v1891 = vand.u32 %v383, 4294901760
        %v1892 = vsub.f32 %v383, %v1891
        %v1893 = vand.u32 %v1892, 4294901760
        %v1894 = vsub.f32 %v1892, %v1893
        %v1895 = vand.u32 %v1894, 4294901760
        %1896 = vmatpush1.xpose.msra.mxu0 %v1895
        %1897 = vmatprep.subr.mxu0 0.0
        %1898 = vmatpush1.xpose.msra.mxu0 0.0
        %1899 = vmatprep.subr.mxu0 0.0
        %1900 = vmatpush1.xpose.msra.mxu0 0.0
        %1901 = vmatprep.subr.mxu0 0.0
        %1902 = vmatpush1.xpose.msra.mxu0 0.0
        %1903 = vmatprep.subr.mxu0 0.0
        %1904 = vmatpush1.xpose.msra.mxu0 0.0
        %1905 = vmatprep.subr.mxu0 0.0
        %1906 = vmatpush1.xpose.msra.mxu0 0.0
        %1907 = vmatprep.subr.mxu0 0.0
        %1908 = vmatpush1.xpose.msra.mxu0 0.0
        %1909 = vmatprep.subr.mxu0 0.0
        %1910 = vmatpush1.xpose.msra.mxu0 0.0
        %1911 = vmatprep.subr.mxu0 0.0
        %1912 = vmatpush1.xpose.msra.mxu0 0.0
        %1913 = vmatprep.subr.mxu0 0.0
        %1914 = vmatpush1.xpose.msra.mxu0 0.0
        %1915 = vmatprep.subr.mxu0 0.0
        %1916 = vmatpush1.xpose.msra.mxu0 0.0
        %1917 = vmatprep.subr.mxu0 0.0
        %1918 = vmatpush1.xpose.msra.mxu0 0.0
        %1919 = vmatprep.subr.mxu0 0.0
        %1920 = vmatpush1.xpose.msra.mxu0 0.0
        %1921 = vmatprep.subr.mxu0 0.0
        %1922 = vmatpush1.xpose.msra.mxu0 0.0
        %1923 = vmatprep.subr.mxu0 0.0
        %1924 = vmatpush1.xpose.msra.mxu0 0.0
        %1925 = vmatprep.subr.mxu0 0.0
        %1926 = vmatpush1.xpose.msra.mxu0 0.0
        %1927 = vmatprep.subr.mxu0 0.0
        %1928 = vmatpush1.xpose.msra.mxu0 0.0
        %1929 = vmatprep.subr.mxu0 0.0
        %1930 = vmatpush1.xpose.msra.mxu0 0.0
        %1931 = vmatprep.subr.mxu0 0.0
        %1932 = vmatpush1.xpose.msra.mxu0 0.0
        %1933 = vmatprep.subr.mxu0 0.0
        %1934 = vmatpush1.xpose.msra.mxu0 0.0
        %1935 = vmatprep.subr.mxu0 0.0
        %1936 = vmatpush1.xpose.msra.mxu0 0.0
        %1937 = vmatprep.subr.mxu0 0.0
        %1938 = vmatpush1.xpose.msra.mxu0 0.0
        %1939 = vmatprep.subr.mxu0 0.0
        %1940 = vmatpush1.xpose.msra.mxu0 0.0
        %1941 = vmatprep.subr.mxu0 0.0
        %1942 = vmatpush1.xpose.msra.mxu0 0.0
        %1943 = vmatprep.subr.mxu0 0.0
        %1944 = vmatpush1.xpose.msra.mxu0 0.0
        %1945 = vmatprep.subr.mxu0 0.0
        %1946 = vmatpush1.xpose.msra.mxu0 0.0
        %1947 = vmatprep.subr.mxu0 0.0
        %1948 = vmatpush1.xpose.msra.mxu0 0.0
        %1949 = vmatprep.subr.mxu0 0.0
        %1950 = vmatpush1.xpose.msra.mxu0 0.0
        %1951 = vmatprep.subr.mxu0 0.0
        %1952 = vmatpush1.xpose.msra.mxu0 0.0
        %1953 = vmatprep.subr.mxu0 0.0
        %1954 = vmatpush1.xpose.msra.mxu0 0.0
        %1955 = vmatprep.subr.mxu0 0.0
        %1956 = vmatpush1.xpose.msra.mxu0 0.0
        %1957 = vmatprep.subr.mxu0 0.0
        %1958 = vmatpush1.xpose.msra.mxu0 0.0
        %1959 = vmatprep.mubr.f32.mxu0 0.0
        %v1960 = vand.u32 %v1812, 4294901760
        %1961 = vmatmul.mubr.f32.gmra.mrb[0].mxu0 %v1960
        %v1962 = vpop.f32.mrb[0].mxu0
        %v1963 = vadd.f32 %v1887, %v1962
        %v1964 = vpop.f32.mrb[0].mxu0
        %1965 = vdwg.mxu0
        %1966 = vmatprep.subr.mxu0 0.0
        %v1967 = vand.u32 %v383, 4294901760
        %v1968 = vsub.f32 %v383, %v1967
        %1969 = vmatpush1.xpose.msra.mxu0 %v1968
        %1970 = vmatprep.subr.mxu0 0.0
        %1971 = vmatpush1.xpose.msra.mxu0 0.0
        %1972 = vmatprep.subr.mxu0 0.0
        %1973 = vmatpush1.xpose.msra.mxu0 0.0
        %1974 = vmatprep.subr.mxu0 0.0
        %1975 = vmatpush1.xpose.msra.mxu0 0.0
        %1976 = vmatprep.subr.mxu0 0.0
        %1977 = vmatpush1.xpose.msra.mxu0 0.0
        %1978 = vmatprep.subr.mxu0 0.0
        %1979 = vmatpush1.xpose.msra.mxu0 0.0
        %1980 = vmatprep.subr.mxu0 0.0
        %1981 = vmatpush1.xpose.msra.mxu0 0.0
        %1982 = vmatprep.subr.mxu0 0.0
        %1983 = vmatpush1.xpose.msra.mxu0 0.0
        %1984 = vmatprep.subr.mxu0 0.0
        %1985 = vmatpush1.xpose.msra.mxu0 0.0
        %1986 = vmatprep.subr.mxu0 0.0
        %1987 = vmatpush1.xpose.msra.mxu0 0.0
        %1988 = vmatprep.subr.mxu0 0.0
        %1989 = vmatpush1.xpose.msra.mxu0 0.0
        %1990 = vmatprep.subr.mxu0 0.0
        %1991 = vmatpush1.xpose.msra.mxu0 0.0
        %1992 = vmatprep.subr.mxu0 0.0
        %1993 = vmatpush1.xpose.msra.mxu0 0.0
        %1994 = vmatprep.subr.mxu0 0.0
        %1995 = vmatpush1.xpose.msra.mxu0 0.0
        %1996 = vmatprep.subr.mxu0 0.0
        %1997 = vmatpush1.xpose.msra.mxu0 0.0
        %1998 = vmatprep.subr.mxu0 0.0
        %1999 = vmatpush1.xpose.msra.mxu0 0.0
        %2000 = vmatprep.subr.mxu0 0.0
        %2001 = vmatpush1.xpose.msra.mxu0 0.0
        %2002 = vmatprep.subr.mxu0 0.0
        %2003 = vmatpush1.xpose.msra.mxu0 0.0
        %2004 = vmatprep.subr.mxu0 0.0
        %2005 = vmatpush1.xpose.msra.mxu0 0.0
        %2006 = vmatprep.subr.mxu0 0.0
        %2007 = vmatpush1.xpose.msra.mxu0 0.0
        %2008 = vmatprep.subr.mxu0 0.0
        %2009 = vmatpush1.xpose.msra.mxu0 0.0
        %2010 = vmatprep.subr.mxu0 0.0
        %2011 = vmatpush1.xpose.msra.mxu0 0.0
        %2012 = vmatprep.subr.mxu0 0.0
        %2013 = vmatpush1.xpose.msra.mxu0 0.0
        %2014 = vmatprep.subr.mxu0 0.0
        %2015 = vmatpush1.xpose.msra.mxu0 0.0
        %2016 = vmatprep.subr.mxu0 0.0
        %2017 = vmatpush1.xpose.msra.mxu0 0.0
        %2018 = vmatprep.subr.mxu0 0.0
        %2019 = vmatpush1.xpose.msra.mxu0 0.0
        %2020 = vmatprep.subr.mxu0 0.0
        %2021 = vmatpush1.xpose.msra.mxu0 0.0
        %2022 = vmatprep.subr.mxu0 0.0
        %2023 = vmatpush1.xpose.msra.mxu0 0.0
        %2024 = vmatprep.subr.mxu0 0.0
        %2025 = vmatpush1.xpose.msra.mxu0 0.0
        %2026 = vmatprep.subr.mxu0 0.0
        %2027 = vmatpush1.xpose.msra.mxu0 0.0
        %2028 = vmatprep.subr.mxu0 0.0
        %2029 = vmatpush1.xpose.msra.mxu0 0.0
        %2030 = vmatprep.subr.mxu0 0.0
        %2031 = vmatpush1.xpose.msra.mxu0 0.0
        %2032 = vmatprep.mubr.f32.mxu0 0.0
        %v2033 = vand.u32 %v1812, 4294901760
        %v2034 = vsub.f32 %v1812, %v2033
        %2035 = vmatmul.mubr.f32.gmra.mrb[0].mxu0 %v2034
        %v2036 = vpop.f32.mrb[0].mxu0
        %v2037 = vadd.f32 %v1963, %v2036
        %v2038 = vpop.f32.mrb[0].mxu0
        %2039 = vdwg.mxu0
        %2040 = vmatprep.subr.mxu0 0.0
        %v2041 = vand.u32 %v383, 4294901760
        %2042 = vmatpush1.xpose.msra.mxu0 %v2041
        %2043 = vmatprep.subr.mxu0 0.0
        %2044 = vmatpush1.xpose.msra.mxu0 0.0
        %2045 = vmatprep.subr.mxu0 0.0
        %2046 = vmatpush1.xpose.msra.mxu0 0.0
        %2047 = vmatprep.subr.mxu0 0.0
        %2048 = vmatpush1.xpose.msra.mxu0 0.0
        %2049 = vmatprep.subr.mxu0 0.0
        %2050 = vmatpush1.xpose.msra.mxu0 0.0
        %2051 = vmatprep.subr.mxu0 0.0
        %2052 = vmatpush1.xpose.msra.mxu0 0.0
        %2053 = vmatprep.subr.mxu0 0.0
        %2054 = vmatpush1.xpose.msra.mxu0 0.0
        %2055 = vmatprep.subr.mxu0 0.0
        %2056 = vmatpush1.xpose.msra.mxu0 0.0
        %2057 = vmatprep.subr.mxu0 0.0
        %2058 = vmatpush1.xpose.msra.mxu0 0.0
        %2059 = vmatprep.subr.mxu0 0.0
        %2060 = vmatpush1.xpose.msra.mxu0 0.0
        %2061 = vmatprep.subr.mxu0 0.0
        %2062 = vmatpush1.xpose.msra.mxu0 0.0
        %2063 = vmatprep.subr.mxu0 0.0
        %2064 = vmatpush1.xpose.msra.mxu0 0.0
        %2065 = vmatprep.subr.mxu0 0.0
        %2066 = vmatpush1.xpose.msra.mxu0 0.0
        %2067 = vmatprep.subr.mxu0 0.0
        %2068 = vmatpush1.xpose.msra.mxu0 0.0
        %2069 = vmatprep.subr.mxu0 0.0
        %2070 = vmatpush1.xpose.msra.mxu0 0.0
        %2071 = vmatprep.subr.mxu0 0.0
        %2072 = vmatpush1.xpose.msra.mxu0 0.0
        %2073 = vmatprep.subr.mxu0 0.0
        %2074 = vmatpush1.xpose.msra.mxu0 0.0
        %2075 = vmatprep.subr.mxu0 0.0
        %2076 = vmatpush1.xpose.msra.mxu0 0.0
        %2077 = vmatprep.subr.mxu0 0.0
        %2078 = vmatpush1.xpose.msra.mxu0 0.0
        %2079 = vmatprep.subr.mxu0 0.0
        %2080 = vmatpush1.xpose.msra.mxu0 0.0
        %2081 = vmatprep.subr.mxu0 0.0
        %2082 = vmatpush1.xpose.msra.mxu0 0.0
        %2083 = vmatprep.subr.mxu0 0.0
        %2084 = vmatpush1.xpose.msra.mxu0 0.0
        %2085 = vmatprep.subr.mxu0 0.0
        %2086 = vmatpush1.xpose.msra.mxu0 0.0
        %2087 = vmatprep.subr.mxu0 0.0
        %2088 = vmatpush1.xpose.msra.mxu0 0.0
        %2089 = vmatprep.subr.mxu0 0.0
        %2090 = vmatpush1.xpose.msra.mxu0 0.0
        %2091 = vmatprep.subr.mxu0 0.0
        %2092 = vmatpush1.xpose.msra.mxu0 0.0
        %2093 = vmatprep.subr.mxu0 0.0
        %2094 = vmatpush1.xpose.msra.mxu0 0.0
        %2095 = vmatprep.subr.mxu0 0.0
        %2096 = vmatpush1.xpose.msra.mxu0 0.0
        %2097 = vmatprep.subr.mxu0 0.0
        %2098 = vmatpush1.xpose.msra.mxu0 0.0
        %2099 = vmatprep.subr.mxu0 0.0
        %2100 = vmatpush1.xpose.msra.mxu0 0.0
        %2101 = vmatprep.subr.mxu0 0.0
        %2102 = vmatpush1.xpose.msra.mxu0 0.0
        %2103 = vmatprep.subr.mxu0 0.0
        %2104 = vmatpush1.xpose.msra.mxu0 0.0
        %2105 = vmatprep.mubr.f32.mxu0 0.0
        %v2106 = vand.u32 %v1812, 4294901760
        %v2107 = vsub.f32 %v1812, %v2106
        %v2108 = vand.u32 %v2107, 4294901760
        %2109 = vmatmul.mubr.f32.gmra.mrb[0].mxu0 %v2108
        %v2110 = vpop.f32.mrb[0].mxu0
        %v2111 = vadd.f32 %v2037, %v2110
        %v2112 = vpop.f32.mrb[0].mxu0
        %2113 = vdwg.mxu0
        %2114 = vmatprep.subr.mxu0 0.0
        %v2115 = vand.u32 %v383, 4294901760
        %v2116 = vsub.f32 %v383, %v2115
        %v2117 = vand.u32 %v2116, 4294901760
        %2118 = vmatpush1.xpose.msra.mxu0 %v2117
        %2119 = vmatprep.subr.mxu0 0.0
        %2120 = vmatpush1.xpose.msra.mxu0 0.0
        %2121 = vmatprep.subr.mxu0 0.0
        %2122 = vmatpush1.xpose.msra.mxu0 0.0
        %2123 = vmatprep.subr.mxu0 0.0
        %2124 = vmatpush1.xpose.msra.mxu0 0.0
        %2125 = vmatprep.subr.mxu0 0.0
        %2126 = vmatpush1.xpose.msra.mxu0 0.0
        %2127 = vmatprep.subr.mxu0 0.0
        %2128 = vmatpush1.xpose.msra.mxu0 0.0
        %2129 = vmatprep.subr.mxu0 0.0
        %2130 = vmatpush1.xpose.msra.mxu0 0.0
        %2131 = vmatprep.subr.mxu0 0.0
        %2132 = vmatpush1.xpose.msra.mxu0 0.0
        %2133 = vmatprep.subr.mxu0 0.0
        %2134 = vmatpush1.xpose.msra.mxu0 0.0
        %2135 = vmatprep.subr.mxu0 0.0
        %2136 = vmatpush1.xpose.msra.mxu0 0.0
        %2137 = vmatprep.subr.mxu0 0.0
        %2138 = vmatpush1.xpose.msra.mxu0 0.0
        %2139 = vmatprep.subr.mxu0 0.0
        %2140 = vmatpush1.xpose.msra.mxu0 0.0
        %2141 = vmatprep.subr.mxu0 0.0
        %2142 = vmatpush1.xpose.msra.mxu0 0.0
        %2143 = vmatprep.subr.mxu0 0.0
        %2144 = vmatpush1.xpose.msra.mxu0 0.0
        %2145 = vmatprep.subr.mxu0 0.0
        %2146 = vmatpush1.xpose.msra.mxu0 0.0
        %2147 = vmatprep.subr.mxu0 0.0
        %2148 = vmatpush1.xpose.msra.mxu0 0.0
        %2149 = vmatprep.subr.mxu0 0.0
        %2150 = vmatpush1.xpose.msra.mxu0 0.0
        %2151 = vmatprep.subr.mxu0 0.0
        %2152 = vmatpush1.xpose.msra.mxu0 0.0
        %2153 = vmatprep.subr.mxu0 0.0
        %2154 = vmatpush1.xpose.msra.mxu0 0.0
        %2155 = vmatprep.subr.mxu0 0.0
        %2156 = vmatpush1.xpose.msra.mxu0 0.0
        %2157 = vmatprep.subr.mxu0 0.0
        %2158 = vmatpush1.xpose.msra.mxu0 0.0
        %2159 = vmatprep.subr.mxu0 0.0
        %2160 = vmatpush1.xpose.msra.mxu0 0.0
        %2161 = vmatprep.subr.mxu0 0.0
        %2162 = vmatpush1.xpose.msra.mxu0 0.0
        %2163 = vmatprep.subr.mxu0 0.0
        %2164 = vmatpush1.xpose.msra.mxu0 0.0
        %2165 = vmatprep.subr.mxu0 0.0
        %2166 = vmatpush1.xpose.msra.mxu0 0.0
        %2167 = vmatprep.subr.mxu0 0.0
        %2168 = vmatpush1.xpose.msra.mxu0 0.0
        %2169 = vmatprep.subr.mxu0 0.0
        %2170 = vmatpush1.xpose.msra.mxu0 0.0
        %2171 = vmatprep.subr.mxu0 0.0
        %2172 = vmatpush1.xpose.msra.mxu0 0.0
        %2173 = vmatprep.subr.mxu0 0.0
        %2174 = vmatpush1.xpose.msra.mxu0 0.0
        %2175 = vmatprep.subr.mxu0 0.0
        %2176 = vmatpush1.xpose.msra.mxu0 0.0
        %2177 = vmatprep.subr.mxu0 0.0
        %2178 = vmatpush1.xpose.msra.mxu0 0.0
        %2179 = vmatprep.subr.mxu0 0.0
        %2180 = vmatpush1.xpose.msra.mxu0 0.0
        %2181 = vmatprep.mubr.f32.mxu0 0.0
        %v2182 = vand.u32 %v1812, 4294901760
        %2183 = vmatmul.mubr.f32.gmra.mrb[0].mxu0 %v2182
        %v2184 = vpop.f32.mrb[0].mxu0
        %v2185 = vadd.f32 %v2111, %v2184
        %v2186 = vpop.f32.mrb[0].mxu0
        %2187 = vdwg.mxu0
        %2188 = vmatprep.subr.mxu0 0.0
        %v2189 = vand.u32 %v383, 4294901760
        %2190 = vmatpush1.xpose.msra.mxu0 %v2189
        %2191 = vmatprep.subr.mxu0 0.0
        %2192 = vmatpush1.xpose.msra.mxu0 0.0
        %2193 = vmatprep.subr.mxu0 0.0
        %2194 = vmatpush1.xpose.msra.mxu0 0.0
        %2195 = vmatprep.subr.mxu0 0.0
        %2196 = vmatpush1.xpose.msra.mxu0 0.0
        %2197 = vmatprep.subr.mxu0 0.0
        %2198 = vmatpush1.xpose.msra.mxu0 0.0
        %2199 = vmatprep.subr.mxu0 0.0
        %2200 = vmatpush1.xpose.msra.mxu0 0.0
        %2201 = vmatprep.subr.mxu0 0.0
        %2202 = vmatpush1.xpose.msra.mxu0 0.0
        %2203 = vmatprep.subr.mxu0 0.0
        %2204 = vmatpush1.xpose.msra.mxu0 0.0
        %2205 = vmatprep.subr.mxu0 0.0
        %2206 = vmatpush1.xpose.msra.mxu0 0.0
        %2207 = vmatprep.subr.mxu0 0.0
        %2208 = vmatpush1.xpose.msra.mxu0 0.0
        %2209 = vmatprep.subr.mxu0 0.0
        %2210 = vmatpush1.xpose.msra.mxu0 0.0
        %2211 = vmatprep.subr.mxu0 0.0
        %2212 = vmatpush1.xpose.msra.mxu0 0.0
        %2213 = vmatprep.subr.mxu0 0.0
        %2214 = vmatpush1.xpose.msra.mxu0 0.0
        %2215 = vmatprep.subr.mxu0 0.0
        %2216 = vmatpush1.xpose.msra.mxu0 0.0
        %2217 = vmatprep.subr.mxu0 0.0
        %2218 = vmatpush1.xpose.msra.mxu0 0.0
        %2219 = vmatprep.subr.mxu0 0.0
        %2220 = vmatpush1.xpose.msra.mxu0 0.0
        %2221 = vmatprep.subr.mxu0 0.0
        %2222 = vmatpush1.xpose.msra.mxu0 0.0
        %2223 = vmatprep.subr.mxu0 0.0
        %2224 = vmatpush1.xpose.msra.mxu0 0.0
        %2225 = vmatprep.subr.mxu0 0.0
        %2226 = vmatpush1.xpose.msra.mxu0 0.0
        %2227 = vmatprep.subr.mxu0 0.0
        %2228 = vmatpush1.xpose.msra.mxu0 0.0
        %2229 = vmatprep.subr.mxu0 0.0
        %2230 = vmatpush1.xpose.msra.mxu0 0.0
        %2231 = vmatprep.subr.mxu0 0.0
        %2232 = vmatpush1.xpose.msra.mxu0 0.0
        %2233 = vmatprep.subr.mxu0 0.0
        %2234 = vmatpush1.xpose.msra.mxu0 0.0
        %2235 = vmatprep.subr.mxu0 0.0
        %2236 = vmatpush1.xpose.msra.mxu0 0.0
        %2237 = vmatprep.subr.mxu0 0.0
        %2238 = vmatpush1.xpose.msra.mxu0 0.0
        %2239 = vmatprep.subr.mxu0 0.0
        %2240 = vmatpush1.xpose.msra.mxu0 0.0
        %2241 = vmatprep.subr.mxu0 0.0
        %2242 = vmatpush1.xpose.msra.mxu0 0.0
        %2243 = vmatprep.subr.mxu0 0.0
        %2244 = vmatpush1.xpose.msra.mxu0 0.0
        %2245 = vmatprep.subr.mxu0 0.0
        %2246 = vmatpush1.xpose.msra.mxu0 0.0
        %2247 = vmatprep.subr.mxu0 0.0
        %2248 = vmatpush1.xpose.msra.mxu0 0.0
        %2249 = vmatprep.subr.mxu0 0.0
        %2250 = vmatpush1.xpose.msra.mxu0 0.0
        %2251 = vmatprep.subr.mxu0 0.0
        %2252 = vmatpush1.xpose.msra.mxu0 0.0
        %2253 = vmatprep.mubr.f32.mxu0 0.0
        %v2254 = vand.u32 %v1812, 4294901760
        %2255 = vmatmul.mubr.f32.gmra.mrb[0].mxu0 %v2254
        %v2256 = vpop.f32.mrb[0].mxu0
        %v2257 = vadd.f32 %v2185, %v2256
        %v2258 = vpop.f32.mrb[0].mxu0
        %2259 = vdwg.mxu0
        %2261 = vset.pattern.permute.xlu0 0
        %2262 = vperm.xlu0 %2261, %v1322
        %v2263 = vpop.permute.xlu0 %2262
        %v2265 = vlaneseq
        %v2266 = vshrl.u32 %v2265, 7
        %v2267 = vsub.s32 0, %v2266
        %v2268 = vrot.slane %v828, %v2267
        %v2269 = vadd.f32 %v2263, %v2268
        %v2270 = vtanh.pop %v2269
        %v2271 = vstv %s831
        %v2272 = vmul.f32 %v2271, %v2270
        %2273 = vset.pattern.permute.xlu0 4
        %2274 = vperm.xlu0 %2273, %v1322
        %v2275 = vpop.permute.xlu0 %2274
        %v2277 = vlaneseq
        %v2278 = vshrl.u32 %v2277, 7
        %v2279 = vsub.s32 4, %v2278
        %v2280 = vrot.slane %v828, %v2279
        %v2281 = vadd.f32 %v2275, %v2280
        %v2282 = vtanh.pop %v2281
        %v2283 = vadd.f32 %v2257, %v2272
        %v2284 = vsub.f32 %v2257, %v2272
        %v2285 = vmul.f32 %v2282, %v2284
        %v2286 = vadd.f32 %v2283, %v2285
        %v2287 = vadd.f32 %v1810, %v2286
        %2288 = vrot.lane.b32.xlu0 %v1807, 96
        %v2289 = vpop.permute.xlu0 %2288
        %v2290 = vsel %vm378, %v2289, 0
        %2292 = vmatprep.subr.mxu0 0.0
        %v2293 = vand.u32 %v383, 4294901760
        %2294 = vmatpush1.xpose.msra.mxu0 %v2293
        %2295 = vmatprep.subr.mxu0 0.0
        %2296 = vmatpush1.xpose.msra.mxu0 0.0
        %2297 = vmatprep.subr.mxu0 0.0
        %2298 = vmatpush1.xpose.msra.mxu0 0.0
        %2299 = vmatprep.subr.mxu0 0.0
        %2300 = vmatpush1.xpose.msra.mxu0 0.0
        %2301 = vmatprep.subr.mxu0 0.0
        %2302 = vmatpush1.xpose.msra.mxu0 0.0
        %2303 = vmatprep.subr.mxu0 0.0
        %2304 = vmatpush1.xpose.msra.mxu0 0.0
        %2305 = vmatprep.subr.mxu0 0.0
        %2306 = vmatpush1.xpose.msra.mxu0 0.0
        %2307 = vmatprep.subr.mxu0 0.0
        %2308 = vmatpush1.xpose.msra.mxu0 0.0
        %2309 = vmatprep.subr.mxu0 0.0
        %2310 = vmatpush1.xpose.msra.mxu0 0.0
        %2311 = vmatprep.subr.mxu0 0.0
        %2312 = vmatpush1.xpose.msra.mxu0 0.0
        %2313 = vmatprep.subr.mxu0 0.0
        %2314 = vmatpush1.xpose.msra.mxu0 0.0
        %2315 = vmatprep.subr.mxu0 0.0
        %2316 = vmatpush1.xpose.msra.mxu0 0.0
        %2317 = vmatprep.subr.mxu0 0.0
        %2318 = vmatpush1.xpose.msra.mxu0 0.0
        %2319 = vmatprep.subr.mxu0 0.0
        %2320 = vmatpush1.xpose.msra.mxu0 0.0
        %2321 = vmatprep.subr.mxu0 0.0
        %2322 = vmatpush1.xpose.msra.mxu0 0.0
        %2323 = vmatprep.subr.mxu0 0.0
        %2324 = vmatpush1.xpose.msra.mxu0 0.0
        %2325 = vmatprep.subr.mxu0 0.0
        %2326 = vmatpush1.xpose.msra.mxu0 0.0
        %2327 = vmatprep.subr.mxu0 0.0
        %2328 = vmatpush1.xpose.msra.mxu0 0.0
        %2329 = vmatprep.subr.mxu0 0.0
        %2330 = vmatpush1.xpose.msra.mxu0 0.0
        %2331 = vmatprep.subr.mxu0 0.0
        %2332 = vmatpush1.xpose.msra.mxu0 0.0
        %2333 = vmatprep.subr.mxu0 0.0
        %2334 = vmatpush1.xpose.msra.mxu0 0.0
        %2335 = vmatprep.subr.mxu0 0.0
        %2336 = vmatpush1.xpose.msra.mxu0 0.0
        %2337 = vmatprep.subr.mxu0 0.0
        %2338 = vmatpush1.xpose.msra.mxu0 0.0
        %2339 = vmatprep.subr.mxu0 0.0
        %2340 = vmatpush1.xpose.msra.mxu0 0.0
        %2341 = vmatprep.subr.mxu0 0.0
        %2342 = vmatpush1.xpose.msra.mxu0 0.0
        %2343 = vmatprep.subr.mxu0 0.0
        %2344 = vmatpush1.xpose.msra.mxu0 0.0
        %2345 = vmatprep.subr.mxu0 0.0
        %2346 = vmatpush1.xpose.msra.mxu0 0.0
        %2347 = vmatprep.subr.mxu0 0.0
        %2348 = vmatpush1.xpose.msra.mxu0 0.0
        %2349 = vmatprep.subr.mxu0 0.0
        %2350 = vmatpush1.xpose.msra.mxu0 0.0
        %2351 = vmatprep.subr.mxu0 0.0
        %2352 = vmatpush1.xpose.msra.mxu0 0.0
        %2353 = vmatprep.subr.mxu0 0.0
        %2354 = vmatpush1.xpose.msra.mxu0 0.0
        %2355 = vmatprep.subr.mxu0 0.0
        %2356 = vmatpush1.xpose.msra.mxu0 0.0
        %2357 = vmatprep.mubr.f32.mxu0 0.0
        %v2358 = vand.u32 %v2290, 4294901760
        %v2359 = vsub.f32 %v2290, %v2358
        %v2360 = vand.u32 %v2359, 4294901760
        %v2361 = vsub.f32 %v2359, %v2360
        %v2362 = vand.u32 %v2361, 4294901760
        %2363 = vmatmul.mubr.f32.gmra.mrb[0].mxu0 %v2362
        %v2364 = vpop.f32.mrb[0].mxu0
        %v2365 = vadd.f32 0.0, %v2364
        %v2366 = vpop.f32.mrb[0].mxu0
        %2367 = vdwg.mxu0
        %2368 = vmatprep.subr.mxu0 0.0
        %v2369 = vand.u32 %v383, 4294901760
        %v2370 = vsub.f32 %v383, %v2369
        %v2371 = vand.u32 %v2370, 4294901760
        %v2372 = vsub.f32 %v2370, %v2371
        %v2373 = vand.u32 %v2372, 4294901760
        %2374 = vmatpush1.xpose.msra.mxu0 %v2373
        %2375 = vmatprep.subr.mxu0 0.0
        %2376 = vmatpush1.xpose.msra.mxu0 0.0
        %2377 = vmatprep.subr.mxu0 0.0
        %2378 = vmatpush1.xpose.msra.mxu0 0.0
        %2379 = vmatprep.subr.mxu0 0.0
        %2380 = vmatpush1.xpose.msra.mxu0 0.0
        %2381 = vmatprep.subr.mxu0 0.0
        %2382 = vmatpush1.xpose.msra.mxu0 0.0
        %2383 = vmatprep.subr.mxu0 0.0
        %2384 = vmatpush1.xpose.msra.mxu0 0.0
        %2385 = vmatprep.subr.mxu0 0.0
        %2386 = vmatpush1.xpose.msra.mxu0 0.0
        %2387 = vmatprep.subr.mxu0 0.0
        %2388 = vmatpush1.xpose.msra.mxu0 0.0
        %2389 = vmatprep.subr.mxu0 0.0
        %2390 = vmatpush1.xpose.msra.mxu0 0.0
        %2391 = vmatprep.subr.mxu0 0.0
        %2392 = vmatpush1.xpose.msra.mxu0 0.0
        %2393 = vmatprep.subr.mxu0 0.0
        %2394 = vmatpush1.xpose.msra.mxu0 0.0
        %2395 = vmatprep.subr.mxu0 0.0
        %2396 = vmatpush1.xpose.msra.mxu0 0.0
        %2397 = vmatprep.subr.mxu0 0.0
        %2398 = vmatpush1.xpose.msra.mxu0 0.0
        %2399 = vmatprep.subr.mxu0 0.0
        %2400 = vmatpush1.xpose.msra.mxu0 0.0
        %2401 = vmatprep.subr.mxu0 0.0
        %2402 = vmatpush1.xpose.msra.mxu0 0.0
        %2403 = vmatprep.subr.mxu0 0.0
        %2404 = vmatpush1.xpose.msra.mxu0 0.0
        %2405 = vmatprep.subr.mxu0 0.0
        %2406 = vmatpush1.xpose.msra.mxu0 0.0
        %2407 = vmatprep.subr.mxu0 0.0
        %2408 = vmatpush1.xpose.msra.mxu0 0.0
        %2409 = vmatprep.subr.mxu0 0.0
        %2410 = vmatpush1.xpose.msra.mxu0 0.0
        %2411 = vmatprep.subr.mxu0 0.0
        %2412 = vmatpush1.xpose.msra.mxu0 0.0
        %2413 = vmatprep.subr.mxu0 0.0
        %2414 = vmatpush1.xpose.msra.mxu0 0.0
        %2415 = vmatprep.subr.mxu0 0.0
        %2416 = vmatpush1.xpose.msra.mxu0 0.0
        %2417 = vmatprep.subr.mxu0 0.0
        %2418 = vmatpush1.xpose.msra.mxu0 0.0
        %2419 = vmatprep.subr.mxu0 0.0
        %2420 = vmatpush1.xpose.msra.mxu0 0.0
        %2421 = vmatprep.subr.mxu0 0.0
        %2422 = vmatpush1.xpose.msra.mxu0 0.0
        %2423 = vmatprep.subr.mxu0 0.0
        %2424 = vmatpush1.xpose.msra.mxu0 0.0
        %2425 = vmatprep.subr.mxu0 0.0
        %2426 = vmatpush1.xpose.msra.mxu0 0.0
        %2427 = vmatprep.subr.mxu0 0.0
        %2428 = vmatpush1.xpose.msra.mxu0 0.0
        %2429 = vmatprep.subr.mxu0 0.0
        %2430 = vmatpush1.xpose.msra.mxu0 0.0
        %2431 = vmatprep.subr.mxu0 0.0
        %2432 = vmatpush1.xpose.msra.mxu0 0.0
        %2433 = vmatprep.subr.mxu0 0.0
        %2434 = vmatpush1.xpose.msra.mxu0 0.0
        %2435 = vmatprep.subr.mxu0 0.0
        %2436 = vmatpush1.xpose.msra.mxu0 0.0
        %2437 = vmatprep.mubr.f32.mxu0 0.0
        %v2438 = vand.u32 %v2290, 4294901760
        %2439 = vmatmul.mubr.f32.gmra.mrb[0].mxu0 %v2438
        %v2440 = vpop.f32.mrb[0].mxu0
        %v2441 = vadd.f32 %v2365, %v2440
        %v2442 = vpop.f32.mrb[0].mxu0
        %2443 = vdwg.mxu0
        %2444 = vmatprep.subr.mxu0 0.0
        %v2445 = vand.u32 %v383, 4294901760
        %v2446 = vsub.f32 %v383, %v2445
        %2447 = vmatpush1.xpose.msra.mxu0 %v2446
        %2448 = vmatprep.subr.mxu0 0.0
        %2449 = vmatpush1.xpose.msra.mxu0 0.0
        %2450 = vmatprep.subr.mxu0 0.0
        %2451 = vmatpush1.xpose.msra.mxu0 0.0
        %2452 = vmatprep.subr.mxu0 0.0
        %2453 = vmatpush1.xpose.msra.mxu0 0.0
        %2454 = vmatprep.subr.mxu0 0.0
        %2455 = vmatpush1.xpose.msra.mxu0 0.0
        %2456 = vmatprep.subr.mxu0 0.0
        %2457 = vmatpush1.xpose.msra.mxu0 0.0
        %2458 = vmatprep.subr.mxu0 0.0
        %2459 = vmatpush1.xpose.msra.mxu0 0.0
        %2460 = vmatprep.subr.mxu0 0.0
        %2461 = vmatpush1.xpose.msra.mxu0 0.0
        %2462 = vmatprep.subr.mxu0 0.0
        %2463 = vmatpush1.xpose.msra.mxu0 0.0
        %2464 = vmatprep.subr.mxu0 0.0
        %2465 = vmatpush1.xpose.msra.mxu0 0.0
        %2466 = vmatprep.subr.mxu0 0.0
        %2467 = vmatpush1.xpose.msra.mxu0 0.0
        %2468 = vmatprep.subr.mxu0 0.0
        %2469 = vmatpush1.xpose.msra.mxu0 0.0
        %2470 = vmatprep.subr.mxu0 0.0
        %2471 = vmatpush1.xpose.msra.mxu0 0.0
        %2472 = vmatprep.subr.mxu0 0.0
        %2473 = vmatpush1.xpose.msra.mxu0 0.0
        %2474 = vmatprep.subr.mxu0 0.0
        %2475 = vmatpush1.xpose.msra.mxu0 0.0
        %2476 = vmatprep.subr.mxu0 0.0
        %2477 = vmatpush1.xpose.msra.mxu0 0.0
        %2478 = vmatprep.subr.mxu0 0.0
        %2479 = vmatpush1.xpose.msra.mxu0 0.0
        %2480 = vmatprep.subr.mxu0 0.0
        %2481 = vmatpush1.xpose.msra.mxu0 0.0
        %2482 = vmatprep.subr.mxu0 0.0
        %2483 = vmatpush1.xpose.msra.mxu0 0.0
        %2484 = vmatprep.subr.mxu0 0.0
        %2485 = vmatpush1.xpose.msra.mxu0 0.0
        %2486 = vmatprep.subr.mxu0 0.0
        %2487 = vmatpush1.xpose.msra.mxu0 0.0
        %2488 = vmatprep.subr.mxu0 0.0
        %2489 = vmatpush1.xpose.msra.mxu0 0.0
        %2490 = vmatprep.subr.mxu0 0.0
        %2491 = vmatpush1.xpose.msra.mxu0 0.0
        %2492 = vmatprep.subr.mxu0 0.0
        %2493 = vmatpush1.xpose.msra.mxu0 0.0
        %2494 = vmatprep.subr.mxu0 0.0
        %2495 = vmatpush1.xpose.msra.mxu0 0.0
        %2496 = vmatprep.subr.mxu0 0.0
        %2497 = vmatpush1.xpose.msra.mxu0 0.0
        %2498 = vmatprep.subr.mxu0 0.0
        %2499 = vmatpush1.xpose.msra.mxu0 0.0
        %2500 = vmatprep.subr.mxu0 0.0
        %2501 = vmatpush1.xpose.msra.mxu0 0.0
        %2502 = vmatprep.subr.mxu0 0.0
        %2503 = vmatpush1.xpose.msra.mxu0 0.0
        %2504 = vmatprep.subr.mxu0 0.0
        %2505 = vmatpush1.xpose.msra.mxu0 0.0
        %2506 = vmatprep.subr.mxu0 0.0
        %2507 = vmatpush1.xpose.msra.mxu0 0.0
        %2508 = vmatprep.subr.mxu0 0.0
        %2509 = vmatpush1.xpose.msra.mxu0 0.0
        %2510 = vmatprep.mubr.f32.mxu0 0.0
        %v2511 = vand.u32 %v2290, 4294901760
        %v2512 = vsub.f32 %v2290, %v2511
        %2513 = vmatmul.mubr.f32.gmra.mrb[0].mxu0 %v2512
        %v2514 = vpop.f32.mrb[0].mxu0
        %v2515 = vadd.f32 %v2441, %v2514
        %v2516 = vpop.f32.mrb[0].mxu0
        %2517 = vdwg.mxu0
        %2518 = vmatprep.subr.mxu0 0.0
        %v2519 = vand.u32 %v383, 4294901760
        %2520 = vmatpush1.xpose.msra.mxu0 %v2519
        %2521 = vmatprep.subr.mxu0 0.0
        %2522 = vmatpush1.xpose.msra.mxu0 0.0
        %2523 = vmatprep.subr.mxu0 0.0
        %2524 = vmatpush1.xpose.msra.mxu0 0.0
        %2525 = vmatprep.subr.mxu0 0.0
        %2526 = vmatpush1.xpose.msra.mxu0 0.0
        %2527 = vmatprep.subr.mxu0 0.0
        %2528 = vmatpush1.xpose.msra.mxu0 0.0
        %2529 = vmatprep.subr.mxu0 0.0
        %2530 = vmatpush1.xpose.msra.mxu0 0.0
        %2531 = vmatprep.subr.mxu0 0.0
        %2532 = vmatpush1.xpose.msra.mxu0 0.0
        %2533 = vmatprep.subr.mxu0 0.0
        %2534 = vmatpush1.xpose.msra.mxu0 0.0
        %2535 = vmatprep.subr.mxu0 0.0
        %2536 = vmatpush1.xpose.msra.mxu0 0.0
        %2537 = vmatprep.subr.mxu0 0.0
        %2538 = vmatpush1.xpose.msra.mxu0 0.0
        %2539 = vmatprep.subr.mxu0 0.0
        %2540 = vmatpush1.xpose.msra.mxu0 0.0
        %2541 = vmatprep.subr.mxu0 0.0
        %2542 = vmatpush1.xpose.msra.mxu0 0.0
        %2543 = vmatprep.subr.mxu0 0.0
        %2544 = vmatpush1.xpose.msra.mxu0 0.0
        %2545 = vmatprep.subr.mxu0 0.0
        %2546 = vmatpush1.xpose.msra.mxu0 0.0
        %2547 = vmatprep.subr.mxu0 0.0
        %2548 = vmatpush1.xpose.msra.mxu0 0.0
        %2549 = vmatprep.subr.mxu0 0.0
        %2550 = vmatpush1.xpose.msra.mxu0 0.0
        %2551 = vmatprep.subr.mxu0 0.0
        %2552 = vmatpush1.xpose.msra.mxu0 0.0
        %2553 = vmatprep.subr.mxu0 0.0
        %2554 = vmatpush1.xpose.msra.mxu0 0.0
        %2555 = vmatprep.subr.mxu0 0.0
        %2556 = vmatpush1.xpose.msra.mxu0 0.0
        %2557 = vmatprep.subr.mxu0 0.0
        %2558 = vmatpush1.xpose.msra.mxu0 0.0
        %2559 = vmatprep.subr.mxu0 0.0
        %2560 = vmatpush1.xpose.msra.mxu0 0.0
        %2561 = vmatprep.subr.mxu0 0.0
        %2562 = vmatpush1.xpose.msra.mxu0 0.0
        %2563 = vmatprep.subr.mxu0 0.0
        %2564 = vmatpush1.xpose.msra.mxu0 0.0
        %2565 = vmatprep.subr.mxu0 0.0
        %2566 = vmatpush1.xpose.msra.mxu0 0.0
        %2567 = vmatprep.subr.mxu0 0.0
        %2568 = vmatpush1.xpose.msra.mxu0 0.0
        %2569 = vmatprep.subr.mxu0 0.0
        %2570 = vmatpush1.xpose.msra.mxu0 0.0
        %2571 = vmatprep.subr.mxu0 0.0
        %2572 = vmatpush1.xpose.msra.mxu0 0.0
        %2573 = vmatprep.subr.mxu0 0.0
        %2574 = vmatpush1.xpose.msra.mxu0 0.0
        %2575 = vmatprep.subr.mxu0 0.0
        %2576 = vmatpush1.xpose.msra.mxu0 0.0
        %2577 = vmatprep.subr.mxu0 0.0
        %2578 = vmatpush1.xpose.msra.mxu0 0.0
        %2579 = vmatprep.subr.mxu0 0.0
        %2580 = vmatpush1.xpose.msra.mxu0 0.0
        %2581 = vmatprep.subr.mxu0 0.0
        %2582 = vmatpush1.xpose.msra.mxu0 0.0
        %2583 = vmatprep.mubr.f32.mxu0 0.0
        %v2584 = vand.u32 %v2290, 4294901760
        %v2585 = vsub.f32 %v2290, %v2584
        %v2586 = vand.u32 %v2585, 4294901760
        %2587 = vmatmul.mubr.f32.gmra.mrb[0].mxu0 %v2586
        %v2588 = vpop.f32.mrb[0].mxu0
        %v2589 = vadd.f32 %v2515, %v2588
        %v2590 = vpop.f32.mrb[0].mxu0
        %2591 = vdwg.mxu0
        %2592 = vmatprep.subr.mxu0 0.0
        %v2593 = vand.u32 %v383, 4294901760
        %v2594 = vsub.f32 %v383, %v2593
        %v2595 = vand.u32 %v2594, 4294901760
        %2596 = vmatpush1.xpose.msra.mxu0 %v2595
        %2597 = vmatprep.subr.mxu0 0.0
        %2598 = vmatpush1.xpose.msra.mxu0 0.0
        %2599 = vmatprep.subr.mxu0 0.0
        %2600 = vmatpush1.xpose.msra.mxu0 0.0
        %2601 = vmatprep.subr.mxu0 0.0
        %2602 = vmatpush1.xpose.msra.mxu0 0.0
        %2603 = vmatprep.subr.mxu0 0.0
        %2604 = vmatpush1.xpose.msra.mxu0 0.0
        %2605 = vmatprep.subr.mxu0 0.0
        %2606 = vmatpush1.xpose.msra.mxu0 0.0
        %2607 = vmatprep.subr.mxu0 0.0
        %2608 = vmatpush1.xpose.msra.mxu0 0.0
        %2609 = vmatprep.subr.mxu0 0.0
        %2610 = vmatpush1.xpose.msra.mxu0 0.0
        %2611 = vmatprep.subr.mxu0 0.0
        %2612 = vmatpush1.xpose.msra.mxu0 0.0
        %2613 = vmatprep.subr.mxu0 0.0
        %2614 = vmatpush1.xpose.msra.mxu0 0.0
        %2615 = vmatprep.subr.mxu0 0.0
        %2616 = vmatpush1.xpose.msra.mxu0 0.0
        %2617 = vmatprep.subr.mxu0 0.0
        %2618 = vmatpush1.xpose.msra.mxu0 0.0
        %2619 = vmatprep.subr.mxu0 0.0
        %2620 = vmatpush1.xpose.msra.mxu0 0.0
        %2621 = vmatprep.subr.mxu0 0.0
        %2622 = vmatpush1.xpose.msra.mxu0 0.0
        %2623 = vmatprep.subr.mxu0 0.0
        %2624 = vmatpush1.xpose.msra.mxu0 0.0
        %2625 = vmatprep.subr.mxu0 0.0
        %2626 = vmatpush1.xpose.msra.mxu0 0.0
        %2627 = vmatprep.subr.mxu0 0.0
        %2628 = vmatpush1.xpose.msra.mxu0 0.0
        %2629 = vmatprep.subr.mxu0 0.0
        %2630 = vmatpush1.xpose.msra.mxu0 0.0
        %2631 = vmatprep.subr.mxu0 0.0
        %2632 = vmatpush1.xpose.msra.mxu0 0.0
        %2633 = vmatprep.subr.mxu0 0.0
        %2634 = vmatpush1.xpose.msra.mxu0 0.0
        %2635 = vmatprep.subr.mxu0 0.0
        %2636 = vmatpush1.xpose.msra.mxu0 0.0
        %2637 = vmatprep.subr.mxu0 0.0
        %2638 = vmatpush1.xpose.msra.mxu0 0.0
        %2639 = vmatprep.subr.mxu0 0.0
        %2640 = vmatpush1.xpose.msra.mxu0 0.0
        %2641 = vmatprep.subr.mxu0 0.0
        %2642 = vmatpush1.xpose.msra.mxu0 0.0
        %2643 = vmatprep.subr.mxu0 0.0
        %2644 = vmatpush1.xpose.msra.mxu0 0.0
        %2645 = vmatprep.subr.mxu0 0.0
        %2646 = vmatpush1.xpose.msra.mxu0 0.0
        %2647 = vmatprep.subr.mxu0 0.0
        %2648 = vmatpush1.xpose.msra.mxu0 0.0
        %2649 = vmatprep.subr.mxu0 0.0
        %2650 = vmatpush1.xpose.msra.mxu0 0.0
        %2651 = vmatprep.subr.mxu0 0.0
        %2652 = vmatpush1.xpose.msra.mxu0 0.0
        %2653 = vmatprep.subr.mxu0 0.0
        %2654 = vmatpush1.xpose.msra.mxu0 0.0
        %2655 = vmatprep.subr.mxu0 0.0
        %2656 = vmatpush1.xpose.msra.mxu0 0.0
        %2657 = vmatprep.subr.mxu0 0.0
        %2658 = vmatpush1.xpose.msra.mxu0 0.0
        %2659 = vmatprep.mubr.f32.mxu0 0.0
        %v2660 = vand.u32 %v2290, 4294901760
        %2661 = vmatmul.mubr.f32.gmra.mrb[0].mxu0 %v2660
        %v2662 = vpop.f32.mrb[0].mxu0
        %v2663 = vadd.f32 %v2589, %v2662
        %v2664 = vpop.f32.mrb[0].mxu0
        %2665 = vdwg.mxu0
        %2666 = vmatprep.subr.mxu0 0.0
        %v2667 = vand.u32 %v383, 4294901760
        %2668 = vmatpush1.xpose.msra.mxu0 %v2667
        %2669 = vmatprep.subr.mxu0 0.0
        %2670 = vmatpush1.xpose.msra.mxu0 0.0
        %2671 = vmatprep.subr.mxu0 0.0
        %2672 = vmatpush1.xpose.msra.mxu0 0.0
        %2673 = vmatprep.subr.mxu0 0.0
        %2674 = vmatpush1.xpose.msra.mxu0 0.0
        %2675 = vmatprep.subr.mxu0 0.0
        %2676 = vmatpush1.xpose.msra.mxu0 0.0
        %2677 = vmatprep.subr.mxu0 0.0
        %2678 = vmatpush1.xpose.msra.mxu0 0.0
        %2679 = vmatprep.subr.mxu0 0.0
        %2680 = vmatpush1.xpose.msra.mxu0 0.0
        %2681 = vmatprep.subr.mxu0 0.0
        %2682 = vmatpush1.xpose.msra.mxu0 0.0
        %2683 = vmatprep.subr.mxu0 0.0
        %2684 = vmatpush1.xpose.msra.mxu0 0.0
        %2685 = vmatprep.subr.mxu0 0.0
        %2686 = vmatpush1.xpose.msra.mxu0 0.0
        %2687 = vmatprep.subr.mxu0 0.0
        %2688 = vmatpush1.xpose.msra.mxu0 0.0
        %2689 = vmatprep.subr.mxu0 0.0
        %2690 = vmatpush1.xpose.msra.mxu0 0.0
        %2691 = vmatprep.subr.mxu0 0.0
        %2692 = vmatpush1.xpose.msra.mxu0 0.0
        %2693 = vmatprep.subr.mxu0 0.0
        %2694 = vmatpush1.xpose.msra.mxu0 0.0
        %2695 = vmatprep.subr.mxu0 0.0
        %2696 = vmatpush1.xpose.msra.mxu0 0.0
        %2697 = vmatprep.subr.mxu0 0.0
        %2698 = vmatpush1.xpose.msra.mxu0 0.0
        %2699 = vmatprep.subr.mxu0 0.0
        %2700 = vmatpush1.xpose.msra.mxu0 0.0
        %2701 = vmatprep.subr.mxu0 0.0
        %2702 = vmatpush1.xpose.msra.mxu0 0.0
        %2703 = vmatprep.subr.mxu0 0.0
        %2704 = vmatpush1.xpose.msra.mxu0 0.0
        %2705 = vmatprep.subr.mxu0 0.0
        %2706 = vmatpush1.xpose.msra.mxu0 0.0
        %2707 = vmatprep.subr.mxu0 0.0
        %2708 = vmatpush1.xpose.msra.mxu0 0.0
        %2709 = vmatprep.subr.mxu0 0.0
        %2710 = vmatpush1.xpose.msra.mxu0 0.0
        %2711 = vmatprep.subr.mxu0 0.0
        %2712 = vmatpush1.xpose.msra.mxu0 0.0
        %2713 = vmatprep.subr.mxu0 0.0
        %2714 = vmatpush1.xpose.msra.mxu0 0.0
        %2715 = vmatprep.subr.mxu0 0.0
        %2716 = vmatpush1.xpose.msra.mxu0 0.0
        %2717 = vmatprep.subr.mxu0 0.0
        %2718 = vmatpush1.xpose.msra.mxu0 0.0
        %2719 = vmatprep.subr.mxu0 0.0
        %2720 = vmatpush1.xpose.msra.mxu0 0.0
        %2721 = vmatprep.subr.mxu0 0.0
        %2722 = vmatpush1.xpose.msra.mxu0 0.0
        %2723 = vmatprep.subr.mxu0 0.0
        %2724 = vmatpush1.xpose.msra.mxu0 0.0
        %2725 = vmatprep.subr.mxu0 0.0
        %2726 = vmatpush1.xpose.msra.mxu0 0.0
        %2727 = vmatprep.subr.mxu0 0.0
        %2728 = vmatpush1.xpose.msra.mxu0 0.0
        %2729 = vmatprep.subr.mxu0 0.0
        %2730 = vmatpush1.xpose.msra.mxu0 0.0
        %2731 = vmatprep.mubr.f32.mxu0 0.0
        %v2732 = vand.u32 %v2290, 4294901760
        %2733 = vmatmul.mubr.f32.gmra.mrb[0].mxu0 %v2732
        %v2734 = vpop.f32.mrb[0].mxu0
        %v2735 = vadd.f32 %v2663, %v2734
        %v2736 = vpop.f32.mrb[0].mxu0
        %2737 = vdwg.mxu0
        %2738 = vset.pattern.permute.xlu0 1
        %2739 = vperm.xlu0 %2738, %v1322
        %v2740 = vpop.permute.xlu0 %2739
        %v2742 = vlaneseq
        %v2743 = vshrl.u32 %v2742, 7
        %v2744 = vsub.s32 1, %v2743
        %v2745 = vrot.slane %v828, %v2744
        %v2746 = vadd.f32 %v2740, %v2745
        %v2747 = vtanh.pop %v2746
        %v2748 = vstv %s832
        %v2749 = vmul.f32 %v2748, %v2747
        %2750 = vset.pattern.permute.xlu0 5
        %2751 = vperm.xlu0 %2750, %v1322
        %v2752 = vpop.permute.xlu0 %2751
        %v2754 = vlaneseq
        %v2755 = vshrl.u32 %v2754, 7
        %v2756 = vsub.s32 5, %v2755
        %v2757 = vrot.slane %v828, %v2756
        %v2758 = vadd.f32 %v2752, %v2757
        %v2759 = vtanh.pop %v2758
        %v2760 = vadd.f32 %v2735, %v2749
        %v2761 = vsub.f32 %v2735, %v2749
        %v2762 = vmul.f32 %v2759, %v2761
        %v2763 = vadd.f32 %v2760, %v2762
        %v2764 = vadd.f32 %v2287, %v2763
        %2765 = vrot.lane.b32.xlu0 %v1807, 64
        %v2766 = vpop.permute.xlu0 %2765
        %v2767 = vsel %vm378, %v2766, 0
        %2769 = vmatprep.subr.mxu0 0.0
        %v2770 = vand.u32 %v383, 4294901760
        %2771 = vmatpush1.xpose.msra.mxu0 %v2770
        %2772 = vmatprep.subr.mxu0 0.0
        %2773 = vmatpush1.xpose.msra.mxu0 0.0
        %2774 = vmatprep.subr.mxu0 0.0
        %2775 = vmatpush1.xpose.msra.mxu0 0.0
        %2776 = vmatprep.subr.mxu0 0.0
        %2777 = vmatpush1.xpose.msra.mxu0 0.0
        %2778 = vmatprep.subr.mxu0 0.0
        %2779 = vmatpush1.xpose.msra.mxu0 0.0
        %2780 = vmatprep.subr.mxu0 0.0
        %2781 = vmatpush1.xpose.msra.mxu0 0.0
        %2782 = vmatprep.subr.mxu0 0.0
        %2783 = vmatpush1.xpose.msra.mxu0 0.0
        %2784 = vmatprep.subr.mxu0 0.0
        %2785 = vmatpush1.xpose.msra.mxu0 0.0
        %2786 = vmatprep.subr.mxu0 0.0
        %2787 = vmatpush1.xpose.msra.mxu0 0.0
        %2788 = vmatprep.subr.mxu0 0.0
        %2789 = vmatpush1.xpose.msra.mxu0 0.0
        %2790 = vmatprep.subr.mxu0 0.0
        %2791 = vmatpush1.xpose.msra.mxu0 0.0
        %2792 = vmatprep.subr.mxu0 0.0
        %2793 = vmatpush1.xpose.msra.mxu0 0.0
        %2794 = vmatprep.subr.mxu0 0.0
        %2795 = vmatpush1.xpose.msra.mxu0 0.0
        %2796 = vmatprep.subr.mxu0 0.0
        %2797 = vmatpush1.xpose.msra.mxu0 0.0
        %2798 = vmatprep.subr.mxu0 0.0
        %2799 = vmatpush1.xpose.msra.mxu0 0.0
        %2800 = vmatprep.subr.mxu0 0.0
        %2801 = vmatpush1.xpose.msra.mxu0 0.0
        %2802 = vmatprep.subr.mxu0 0.0
        %2803 = vmatpush1.xpose.msra.mxu0 0.0
        %2804 = vmatprep.subr.mxu0 0.0
        %2805 = vmatpush1.xpose.msra.mxu0 0.0
        %2806 = vmatprep.subr.mxu0 0.0
        %2807 = vmatpush1.xpose.msra.mxu0 0.0
        %2808 = vmatprep.subr.mxu0 0.0
        %2809 = vmatpush1.xpose.msra.mxu0 0.0
        %2810 = vmatprep.subr.mxu0 0.0
        %2811 = vmatpush1.xpose.msra.mxu0 0.0
        %2812 = vmatprep.subr.mxu0 0.0
        %2813 = vmatpush1.xpose.msra.mxu0 0.0
        %2814 = vmatprep.subr.mxu0 0.0
        %2815 = vmatpush1.xpose.msra.mxu0 0.0
        %2816 = vmatprep.subr.mxu0 0.0
        %2817 = vmatpush1.xpose.msra.mxu0 0.0
        %2818 = vmatprep.subr.mxu0 0.0
        %2819 = vmatpush1.xpose.msra.mxu0 0.0
        %2820 = vmatprep.subr.mxu0 0.0
        %2821 = vmatpush1.xpose.msra.mxu0 0.0
        %2822 = vmatprep.subr.mxu0 0.0
        %2823 = vmatpush1.xpose.msra.mxu0 0.0
        %2824 = vmatprep.subr.mxu0 0.0
        %2825 = vmatpush1.xpose.msra.mxu0 0.0
        %2826 = vmatprep.subr.mxu0 0.0
        %2827 = vmatpush1.xpose.msra.mxu0 0.0
        %2828 = vmatprep.subr.mxu0 0.0
        %2829 = vmatpush1.xpose.msra.mxu0 0.0
        %2830 = vmatprep.subr.mxu0 0.0
        %2831 = vmatpush1.xpose.msra.mxu0 0.0
        %2832 = vmatprep.subr.mxu0 0.0
        %2833 = vmatpush1.xpose.msra.mxu0 0.0
        %2834 = vmatprep.mubr.f32.mxu0 0.0
        %v2835 = vand.u32 %v2767, 4294901760
        %v2836 = vsub.f32 %v2767, %v2835
        %v2837 = vand.u32 %v2836, 4294901760
        %v2838 = vsub.f32 %v2836, %v2837
        %v2839 = vand.u32 %v2838, 4294901760
        %2840 = vmatmul.mubr.f32.gmra.mrb[0].mxu0 %v2839
        %v2841 = vpop.f32.mrb[0].mxu0
        %v2842 = vadd.f32 0.0, %v2841
        %v2843 = vpop.f32.mrb[0].mxu0
        %2844 = vdwg.mxu0
        %2845 = vmatprep.subr.mxu0 0.0
        %v2846 = vand.u32 %v383, 4294901760
        %v2847 = vsub.f32 %v383, %v2846
        %v2848 = vand.u32 %v2847, 4294901760
        %v2849 = vsub.f32 %v2847, %v2848
        %v2850 = vand.u32 %v2849, 4294901760
        %2851 = vmatpush1.xpose.msra.mxu0 %v2850
        %2852 = vmatprep.subr.mxu0 0.0
        %2853 = vmatpush1.xpose.msra.mxu0 0.0
        %2854 = vmatprep.subr.mxu0 0.0
        %2855 = vmatpush1.xpose.msra.mxu0 0.0
        %2856 = vmatprep.subr.mxu0 0.0
        %2857 = vmatpush1.xpose.msra.mxu0 0.0
        %2858 = vmatprep.subr.mxu0 0.0
        %2859 = vmatpush1.xpose.msra.mxu0 0.0
        %2860 = vmatprep.subr.mxu0 0.0
        %2861 = vmatpush1.xpose.msra.mxu0 0.0
        %2862 = vmatprep.subr.mxu0 0.0
        %2863 = vmatpush1.xpose.msra.mxu0 0.0
        %2864 = vmatprep.subr.mxu0 0.0
        %2865 = vmatpush1.xpose.msra.mxu0 0.0
        %2866 = vmatprep.subr.mxu0 0.0
        %2867 = vmatpush1.xpose.msra.mxu0 0.0
        %2868 = vmatprep.subr.mxu0 0.0
        %2869 = vmatpush1.xpose.msra.mxu0 0.0
        %2870 = vmatprep.subr.mxu0 0.0
        %2871 = vmatpush1.xpose.msra.mxu0 0.0
        %2872 = vmatprep.subr.mxu0 0.0
        %2873 = vmatpush1.xpose.msra.mxu0 0.0
        %2874 = vmatprep.subr.mxu0 0.0
        %2875 = vmatpush1.xpose.msra.mxu0 0.0
        %2876 = vmatprep.subr.mxu0 0.0
        %2877 = vmatpush1.xpose.msra.mxu0 0.0
        %2878 = vmatprep.subr.mxu0 0.0
        %2879 = vmatpush1.xpose.msra.mxu0 0.0
        %2880 = vmatprep.subr.mxu0 0.0
        %2881 = vmatpush1.xpose.msra.mxu0 0.0
        %2882 = vmatprep.subr.mxu0 0.0
        %2883 = vmatpush1.xpose.msra.mxu0 0.0
        %2884 = vmatprep.subr.mxu0 0.0
        %2885 = vmatpush1.xpose.msra.mxu0 0.0
        %2886 = vmatprep.subr.mxu0 0.0
        %2887 = vmatpush1.xpose.msra.mxu0 0.0
        %2888 = vmatprep.subr.mxu0 0.0
        %2889 = vmatpush1.xpose.msra.mxu0 0.0
        %2890 = vmatprep.subr.mxu0 0.0
        %2891 = vmatpush1.xpose.msra.mxu0 0.0
        %2892 = vmatprep.subr.mxu0 0.0
        %2893 = vmatpush1.xpose.msra.mxu0 0.0
        %2894 = vmatprep.subr.mxu0 0.0
        %2895 = vmatpush1.xpose.msra.mxu0 0.0
        %2896 = vmatprep.subr.mxu0 0.0
        %2897 = vmatpush1.xpose.msra.mxu0 0.0
        %2898 = vmatprep.subr.mxu0 0.0
        %2899 = vmatpush1.xpose.msra.mxu0 0.0
        %2900 = vmatprep.subr.mxu0 0.0
        %2901 = vmatpush1.xpose.msra.mxu0 0.0
        %2902 = vmatprep.subr.mxu0 0.0
        %2903 = vmatpush1.xpose.msra.mxu0 0.0
        %2904 = vmatprep.subr.mxu0 0.0
        %2905 = vmatpush1.xpose.msra.mxu0 0.0
        %2906 = vmatprep.subr.mxu0 0.0
        %2907 = vmatpush1.xpose.msra.mxu0 0.0
        %2908 = vmatprep.subr.mxu0 0.0
        %2909 = vmatpush1.xpose.msra.mxu0 0.0
        %2910 = vmatprep.subr.mxu0 0.0
        %2911 = vmatpush1.xpose.msra.mxu0 0.0
        %2912 = vmatprep.subr.mxu0 0.0
        %2913 = vmatpush1.xpose.msra.mxu0 0.0
        %2914 = vmatprep.mubr.f32.mxu0 0.0
        %v2915 = vand.u32 %v2767, 4294901760
        %2916 = vmatmul.mubr.f32.gmra.mrb[0].mxu0 %v2915
        %v2917 = vpop.f32.mrb[0].mxu0
        %v2918 = vadd.f32 %v2842, %v2917
        %v2919 = vpop.f32.mrb[0].mxu0
        %2920 = vdwg.mxu0
        %2921 = vmatprep.subr.mxu0 0.0
        %v2922 = vand.u32 %v383, 4294901760
        %v2923 = vsub.f32 %v383, %v2922
        %2924 = vmatpush1.xpose.msra.mxu0 %v2923
        %2925 = vmatprep.subr.mxu0 0.0
        %2926 = vmatpush1.xpose.msra.mxu0 0.0
        %2927 = vmatprep.subr.mxu0 0.0
        %2928 = vmatpush1.xpose.msra.mxu0 0.0
        %2929 = vmatprep.subr.mxu0 0.0
        %2930 = vmatpush1.xpose.msra.mxu0 0.0
        %2931 = vmatprep.subr.mxu0 0.0
        %2932 = vmatpush1.xpose.msra.mxu0 0.0
        %2933 = vmatprep.subr.mxu0 0.0
        %2934 = vmatpush1.xpose.msra.mxu0 0.0
        %2935 = vmatprep.subr.mxu0 0.0
        %2936 = vmatpush1.xpose.msra.mxu0 0.0
        %2937 = vmatprep.subr.mxu0 0.0
        %2938 = vmatpush1.xpose.msra.mxu0 0.0
        %2939 = vmatprep.subr.mxu0 0.0
        %2940 = vmatpush1.xpose.msra.mxu0 0.0
        %2941 = vmatprep.subr.mxu0 0.0
        %2942 = vmatpush1.xpose.msra.mxu0 0.0
        %2943 = vmatprep.subr.mxu0 0.0
        %2944 = vmatpush1.xpose.msra.mxu0 0.0
        %2945 = vmatprep.subr.mxu0 0.0
        %2946 = vmatpush1.xpose.msra.mxu0 0.0
        %2947 = vmatprep.subr.mxu0 0.0
        %2948 = vmatpush1.xpose.msra.mxu0 0.0
        %2949 = vmatprep.subr.mxu0 0.0
        %2950 = vmatpush1.xpose.msra.mxu0 0.0
        %2951 = vmatprep.subr.mxu0 0.0
        %2952 = vmatpush1.xpose.msra.mxu0 0.0
        %2953 = vmatprep.subr.mxu0 0.0
        %2954 = vmatpush1.xpose.msra.mxu0 0.0
        %2955 = vmatprep.subr.mxu0 0.0
        %2956 = vmatpush1.xpose.msra.mxu0 0.0
        %2957 = vmatprep.subr.mxu0 0.0
        %2958 = vmatpush1.xpose.msra.mxu0 0.0
        %2959 = vmatprep.subr.mxu0 0.0
        %2960 = vmatpush1.xpose.msra.mxu0 0.0
        %2961 = vmatprep.subr.mxu0 0.0
        %2962 = vmatpush1.xpose.msra.mxu0 0.0
        %2963 = vmatprep.subr.mxu0 0.0
        %2964 = vmatpush1.xpose.msra.mxu0 0.0
        %2965 = vmatprep.subr.mxu0 0.0
        %2966 = vmatpush1.xpose.msra.mxu0 0.0
        %2967 = vmatprep.subr.mxu0 0.0
        %2968 = vmatpush1.xpose.msra.mxu0 0.0
        %2969 = vmatprep.subr.mxu0 0.0
        %2970 = vmatpush1.xpose.msra.mxu0 0.0
        %2971 = vmatprep.subr.mxu0 0.0
        %2972 = vmatpush1.xpose.msra.mxu0 0.0
        %2973 = vmatprep.subr.mxu0 0.0
        %2974 = vmatpush1.xpose.msra.mxu0 0.0
        %2975 = vmatprep.subr.mxu0 0.0
        %2976 = vmatpush1.xpose.msra.mxu0 0.0
        %2977 = vmatprep.subr.mxu0 0.0
        %2978 = vmatpush1.xpose.msra.mxu0 0.0
        %2979 = vmatprep.subr.mxu0 0.0
        %2980 = vmatpush1.xpose.msra.mxu0 0.0
        %2981 = vmatprep.subr.mxu0 0.0
        %2982 = vmatpush1.xpose.msra.mxu0 0.0
        %2983 = vmatprep.subr.mxu0 0.0
        %2984 = vmatpush1.xpose.msra.mxu0 0.0
        %2985 = vmatprep.subr.mxu0 0.0
        %2986 = vmatpush1.xpose.msra.mxu0 0.0
        %2987 = vmatprep.mubr.f32.mxu0 0.0
        %v2988 = vand.u32 %v2767, 4294901760
        %v2989 = vsub.f32 %v2767, %v2988
        %2990 = vmatmul.mubr.f32.gmra.mrb[0].mxu0 %v2989
        %v2991 = vpop.f32.mrb[0].mxu0
        %v2992 = vadd.f32 %v2918, %v2991
        %v2993 = vpop.f32.mrb[0].mxu0
        %2994 = vdwg.mxu0
        %2995 = vmatprep.subr.mxu0 0.0
        %v2996 = vand.u32 %v383, 4294901760
        %2997 = vmatpush1.xpose.msra.mxu0 %v2996
        %2998 = vmatprep.subr.mxu0 0.0
        %2999 = vmatpush1.xpose.msra.mxu0 0.0
        %3000 = vmatprep.subr.mxu0 0.0
        %3001 = vmatpush1.xpose.msra.mxu0 0.0
        %3002 = vmatprep.subr.mxu0 0.0
        %3003 = vmatpush1.xpose.msra.mxu0 0.0
        %3004 = vmatprep.subr.mxu0 0.0
        %3005 = vmatpush1.xpose.msra.mxu0 0.0
        %3006 = vmatprep.subr.mxu0 0.0
        %3007 = vmatpush1.xpose.msra.mxu0 0.0
        %3008 = vmatprep.subr.mxu0 0.0
        %3009 = vmatpush1.xpose.msra.mxu0 0.0
        %3010 = vmatprep.subr.mxu0 0.0
        %3011 = vmatpush1.xpose.msra.mxu0 0.0
        %3012 = vmatprep.subr.mxu0 0.0
        %3013 = vmatpush1.xpose.msra.mxu0 0.0
        %3014 = vmatprep.subr.mxu0 0.0
        %3015 = vmatpush1.xpose.msra.mxu0 0.0
        %3016 = vmatprep.subr.mxu0 0.0
        %3017 = vmatpush1.xpose.msra.mxu0 0.0
        %3018 = vmatprep.subr.mxu0 0.0
        %3019 = vmatpush1.xpose.msra.mxu0 0.0
        %3020 = vmatprep.subr.mxu0 0.0
        %3021 = vmatpush1.xpose.msra.mxu0 0.0
        %3022 = vmatprep.subr.mxu0 0.0
        %3023 = vmatpush1.xpose.msra.mxu0 0.0
        %3024 = vmatprep.subr.mxu0 0.0
        %3025 = vmatpush1.xpose.msra.mxu0 0.0
        %3026 = vmatprep.subr.mxu0 0.0
        %3027 = vmatpush1.xpose.msra.mxu0 0.0
        %3028 = vmatprep.subr.mxu0 0.0
        %3029 = vmatpush1.xpose.msra.mxu0 0.0
        %3030 = vmatprep.subr.mxu0 0.0
        %3031 = vmatpush1.xpose.msra.mxu0 0.0
        %3032 = vmatprep.subr.mxu0 0.0
        %3033 = vmatpush1.xpose.msra.mxu0 0.0
        %3034 = vmatprep.subr.mxu0 0.0
        %3035 = vmatpush1.xpose.msra.mxu0 0.0
        %3036 = vmatprep.subr.mxu0 0.0
        %3037 = vmatpush1.xpose.msra.mxu0 0.0
        %3038 = vmatprep.subr.mxu0 0.0
        %3039 = vmatpush1.xpose.msra.mxu0 0.0
        %3040 = vmatprep.subr.mxu0 0.0
        %3041 = vmatpush1.xpose.msra.mxu0 0.0
        %3042 = vmatprep.subr.mxu0 0.0
        %3043 = vmatpush1.xpose.msra.mxu0 0.0
        %3044 = vmatprep.subr.mxu0 0.0
        %3045 = vmatpush1.xpose.msra.mxu0 0.0
        %3046 = vmatprep.subr.mxu0 0.0
        %3047 = vmatpush1.xpose.msra.mxu0 0.0
        %3048 = vmatprep.subr.mxu0 0.0
        %3049 = vmatpush1.xpose.msra.mxu0 0.0
        %3050 = vmatprep.subr.mxu0 0.0
        %3051 = vmatpush1.xpose.msra.mxu0 0.0
        %3052 = vmatprep.subr.mxu0 0.0
        %3053 = vmatpush1.xpose.msra.mxu0 0.0
        %3054 = vmatprep.subr.mxu0 0.0
        %3055 = vmatpush1.xpose.msra.mxu0 0.0
        %3056 = vmatprep.subr.mxu0 0.0
        %3057 = vmatpush1.xpose.msra.mxu0 0.0
        %3058 = vmatprep.subr.mxu0 0.0
        %3059 = vmatpush1.xpose.msra.mxu0 0.0
        %3060 = vmatprep.mubr.f32.mxu0 0.0
        %v3061 = vand.u32 %v2767, 4294901760
        %v3062 = vsub.f32 %v2767, %v3061
        %v3063 = vand.u32 %v3062, 4294901760
        %3064 = vmatmul.mubr.f32.gmra.mrb[0].mxu0 %v3063
        %v3065 = vpop.f32.mrb[0].mxu0
        %v3066 = vadd.f32 %v2992, %v3065
        %v3067 = vpop.f32.mrb[0].mxu0
        %3068 = vdwg.mxu0
        %3069 = vmatprep.subr.mxu0 0.0
        %v3070 = vand.u32 %v383, 4294901760
        %v3071 = vsub.f32 %v383, %v3070
        %v3072 = vand.u32 %v3071, 4294901760
        %3073 = vmatpush1.xpose.msra.mxu0 %v3072
        %3074 = vmatprep.subr.mxu0 0.0
        %3075 = vmatpush1.xpose.msra.mxu0 0.0
        %3076 = vmatprep.subr.mxu0 0.0
        %3077 = vmatpush1.xpose.msra.mxu0 0.0
        %3078 = vmatprep.subr.mxu0 0.0
        %3079 = vmatpush1.xpose.msra.mxu0 0.0
        %3080 = vmatprep.subr.mxu0 0.0
        %3081 = vmatpush1.xpose.msra.mxu0 0.0
        %3082 = vmatprep.subr.mxu0 0.0
        %3083 = vmatpush1.xpose.msra.mxu0 0.0
        %3084 = vmatprep.subr.mxu0 0.0
        %3085 = vmatpush1.xpose.msra.mxu0 0.0
        %3086 = vmatprep.subr.mxu0 0.0
        %3087 = vmatpush1.xpose.msra.mxu0 0.0
        %3088 = vmatprep.subr.mxu0 0.0
        %3089 = vmatpush1.xpose.msra.mxu0 0.0
        %3090 = vmatprep.subr.mxu0 0.0
        %3091 = vmatpush1.xpose.msra.mxu0 0.0
        %3092 = vmatprep.subr.mxu0 0.0
        %3093 = vmatpush1.xpose.msra.mxu0 0.0
        %3094 = vmatprep.subr.mxu0 0.0
        %3095 = vmatpush1.xpose.msra.mxu0 0.0
        %3096 = vmatprep.subr.mxu0 0.0
        %3097 = vmatpush1.xpose.msra.mxu0 0.0
        %3098 = vmatprep.subr.mxu0 0.0
        %3099 = vmatpush1.xpose.msra.mxu0 0.0
        %3100 = vmatprep.subr.mxu0 0.0
        %3101 = vmatpush1.xpose.msra.mxu0 0.0
        %3102 = vmatprep.subr.mxu0 0.0
        %3103 = vmatpush1.xpose.msra.mxu0 0.0
        %3104 = vmatprep.subr.mxu0 0.0
        %3105 = vmatpush1.xpose.msra.mxu0 0.0
        %3106 = vmatprep.subr.mxu0 0.0
        %3107 = vmatpush1.xpose.msra.mxu0 0.0
        %3108 = vmatprep.subr.mxu0 0.0
        %3109 = vmatpush1.xpose.msra.mxu0 0.0
        %3110 = vmatprep.subr.mxu0 0.0
        %3111 = vmatpush1.xpose.msra.mxu0 0.0
        %3112 = vmatprep.subr.mxu0 0.0
        %3113 = vmatpush1.xpose.msra.mxu0 0.0
        %3114 = vmatprep.subr.mxu0 0.0
        %3115 = vmatpush1.xpose.msra.mxu0 0.0
        %3116 = vmatprep.subr.mxu0 0.0
        %3117 = vmatpush1.xpose.msra.mxu0 0.0
        %3118 = vmatprep.subr.mxu0 0.0
        %3119 = vmatpush1.xpose.msra.mxu0 0.0
        %3120 = vmatprep.subr.mxu0 0.0
        %3121 = vmatpush1.xpose.msra.mxu0 0.0
        %3122 = vmatprep.subr.mxu0 0.0
        %3123 = vmatpush1.xpose.msra.mxu0 0.0
        %3124 = vmatprep.subr.mxu0 0.0
        %3125 = vmatpush1.xpose.msra.mxu0 0.0
        %3126 = vmatprep.subr.mxu0 0.0
        %3127 = vmatpush1.xpose.msra.mxu0 0.0
        %3128 = vmatprep.subr.mxu0 0.0
        %3129 = vmatpush1.xpose.msra.mxu0 0.0
        %3130 = vmatprep.subr.mxu0 0.0
        %3131 = vmatpush1.xpose.msra.mxu0 0.0
        %3132 = vmatprep.subr.mxu0 0.0
        %3133 = vmatpush1.xpose.msra.mxu0 0.0
        %3134 = vmatprep.subr.mxu0 0.0
        %3135 = vmatpush1.xpose.msra.mxu0 0.0
        %3136 = vmatprep.mubr.f32.mxu0 0.0
        %v3137 = vand.u32 %v2767, 4294901760
        %3138 = vmatmul.mubr.f32.gmra.mrb[0].mxu0 %v3137
        %v3139 = vpop.f32.mrb[0].mxu0
        %v3140 = vadd.f32 %v3066, %v3139
        %v3141 = vpop.f32.mrb[0].mxu0
        %3142 = vdwg.mxu0
        %3143 = vmatprep.subr.mxu0 0.0
        %v3144 = vand.u32 %v383, 4294901760
        %3145 = vmatpush1.xpose.msra.mxu0 %v3144
        %3146 = vmatprep.subr.mxu0 0.0
        %3147 = vmatpush1.xpose.msra.mxu0 0.0
        %3148 = vmatprep.subr.mxu0 0.0
        %3149 = vmatpush1.xpose.msra.mxu0 0.0
        %3150 = vmatprep.subr.mxu0 0.0
        %3151 = vmatpush1.xpose.msra.mxu0 0.0
        %3152 = vmatprep.subr.mxu0 0.0
        %3153 = vmatpush1.xpose.msra.mxu0 0.0
        %3154 = vmatprep.subr.mxu0 0.0
        %3155 = vmatpush1.xpose.msra.mxu0 0.0
        %3156 = vmatprep.subr.mxu0 0.0
        %3157 = vmatpush1.xpose.msra.mxu0 0.0
        %3158 = vmatprep.subr.mxu0 0.0
        %3159 = vmatpush1.xpose.msra.mxu0 0.0
        %3160 = vmatprep.subr.mxu0 0.0
        %3161 = vmatpush1.xpose.msra.mxu0 0.0
        %3162 = vmatprep.subr.mxu0 0.0
        %3163 = vmatpush1.xpose.msra.mxu0 0.0
        %3164 = vmatprep.subr.mxu0 0.0
        %3165 = vmatpush1.xpose.msra.mxu0 0.0
        %3166 = vmatprep.subr.mxu0 0.0
        %3167 = vmatpush1.xpose.msra.mxu0 0.0
        %3168 = vmatprep.subr.mxu0 0.0
        %3169 = vmatpush1.xpose.msra.mxu0 0.0
        %3170 = vmatprep.subr.mxu0 0.0
        %3171 = vmatpush1.xpose.msra.mxu0 0.0
        %3172 = vmatprep.subr.mxu0 0.0
        %3173 = vmatpush1.xpose.msra.mxu0 0.0
        %3174 = vmatprep.subr.mxu0 0.0
        %3175 = vmatpush1.xpose.msra.mxu0 0.0
        %3176 = vmatprep.subr.mxu0 0.0
        %3177 = vmatpush1.xpose.msra.mxu0 0.0
        %3178 = vmatprep.subr.mxu0 0.0
        %3179 = vmatpush1.xpose.msra.mxu0 0.0
        %3180 = vmatprep.subr.mxu0 0.0
        %3181 = vmatpush1.xpose.msra.mxu0 0.0
        %3182 = vmatprep.subr.mxu0 0.0
        %3183 = vmatpush1.xpose.msra.mxu0 0.0
        %3184 = vmatprep.subr.mxu0 0.0
        %3185 = vmatpush1.xpose.msra.mxu0 0.0
        %3186 = vmatprep.subr.mxu0 0.0
        %3187 = vmatpush1.xpose.msra.mxu0 0.0
        %3188 = vmatprep.subr.mxu0 0.0
        %3189 = vmatpush1.xpose.msra.mxu0 0.0
        %3190 = vmatprep.subr.mxu0 0.0
        %3191 = vmatpush1.xpose.msra.mxu0 0.0
        %3192 = vmatprep.subr.mxu0 0.0
        %3193 = vmatpush1.xpose.msra.mxu0 0.0
        %3194 = vmatprep.subr.mxu0 0.0
        %3195 = vmatpush1.xpose.msra.mxu0 0.0
        %3196 = vmatprep.subr.mxu0 0.0
        %3197 = vmatpush1.xpose.msra.mxu0 0.0
        %3198 = vmatprep.subr.mxu0 0.0
        %3199 = vmatpush1.xpose.msra.mxu0 0.0
        %3200 = vmatprep.subr.mxu0 0.0
        %3201 = vmatpush1.xpose.msra.mxu0 0.0
        %3202 = vmatprep.subr.mxu0 0.0
        %3203 = vmatpush1.xpose.msra.mxu0 0.0
        %3204 = vmatprep.subr.mxu0 0.0
        %3205 = vmatpush1.xpose.msra.mxu0 0.0
        %3206 = vmatprep.subr.mxu0 0.0
        %3207 = vmatpush1.xpose.msra.mxu0 0.0
        %3208 = vmatprep.mubr.f32.mxu0 0.0
        %v3209 = vand.u32 %v2767, 4294901760
        %3210 = vmatmul.mubr.f32.gmra.mrb[0].mxu0 %v3209
        %v3211 = vpop.f32.mrb[0].mxu0
        %v3212 = vadd.f32 %v3140, %v3211
        %v3213 = vpop.f32.mrb[0].mxu0
        %3214 = vdwg.mxu0
        %3215 = vset.pattern.permute.xlu0 2
        %3216 = vperm.xlu0 %3215, %v1322
        %v3217 = vpop.permute.xlu0 %3216
        %v3219 = vlaneseq
        %v3220 = vshrl.u32 %v3219, 7
        %v3221 = vsub.s32 2, %v3220
        %v3222 = vrot.slane %v828, %v3221
        %v3223 = vadd.f32 %v3217, %v3222
        %v3224 = vtanh.pop %v3223
        %v3225 = vstv %s833
        %v3226 = vmul.f32 %v3225, %v3224
        %3227 = vset.pattern.permute.xlu0 6
        %3228 = vperm.xlu0 %3227, %v1322
        %v3229 = vpop.permute.xlu0 %3228
        %v3231 = vlaneseq
        %v3232 = vshrl.u32 %v3231, 7
        %v3233 = vsub.s32 6, %v3232
        %v3234 = vrot.slane %v828, %v3233
        %v3235 = vadd.f32 %v3229, %v3234
        %v3236 = vtanh.pop %v3235
        %v3237 = vadd.f32 %v3212, %v3226
        %v3238 = vsub.f32 %v3212, %v3226
        %v3239 = vmul.f32 %v3236, %v3238
        %v3240 = vadd.f32 %v3237, %v3239
        %v3241 = vadd.f32 %v2764, %v3240
        %3242 = vrot.lane.b32.xlu0 %v1807, 32
        %v3243 = vpop.permute.xlu0 %3242
        %v3244 = vsel %vm378, %v3243, 0
        %3246 = vmatprep.subr.mxu0 0.0
        %v3247 = vand.u32 %v383, 4294901760
        %3248 = vmatpush1.xpose.msra.mxu0 %v3247
        %3249 = vmatprep.subr.mxu0 0.0
        %3250 = vmatpush1.xpose.msra.mxu0 0.0
        %3251 = vmatprep.subr.mxu0 0.0
        %3252 = vmatpush1.xpose.msra.mxu0 0.0
        %3253 = vmatprep.subr.mxu0 0.0
        %3254 = vmatpush1.xpose.msra.mxu0 0.0
        %3255 = vmatprep.subr.mxu0 0.0
        %3256 = vmatpush1.xpose.msra.mxu0 0.0
        %3257 = vmatprep.subr.mxu0 0.0
        %3258 = vmatpush1.xpose.msra.mxu0 0.0
        %3259 = vmatprep.subr.mxu0 0.0
        %3260 = vmatpush1.xpose.msra.mxu0 0.0
        %3261 = vmatprep.subr.mxu0 0.0
        %3262 = vmatpush1.xpose.msra.mxu0 0.0
        %3263 = vmatprep.subr.mxu0 0.0
        %3264 = vmatpush1.xpose.msra.mxu0 0.0
        %3265 = vmatprep.subr.mxu0 0.0
        %3266 = vmatpush1.xpose.msra.mxu0 0.0
        %3267 = vmatprep.subr.mxu0 0.0
        %3268 = vmatpush1.xpose.msra.mxu0 0.0
        %3269 = vmatprep.subr.mxu0 0.0
        %3270 = vmatpush1.xpose.msra.mxu0 0.0
        %3271 = vmatprep.subr.mxu0 0.0
        %3272 = vmatpush1.xpose.msra.mxu0 0.0
        %3273 = vmatprep.subr.mxu0 0.0
        %3274 = vmatpush1.xpose.msra.mxu0 0.0
        %3275 = vmatprep.subr.mxu0 0.0
        %3276 = vmatpush1.xpose.msra.mxu0 0.0
        %3277 = vmatprep.subr.mxu0 0.0
        %3278 = vmatpush1.xpose.msra.mxu0 0.0
        %3279 = vmatprep.subr.mxu0 0.0
        %3280 = vmatpush1.xpose.msra.mxu0 0.0
        %3281 = vmatprep.subr.mxu0 0.0
        %3282 = vmatpush1.xpose.msra.mxu0 0.0
        %3283 = vmatprep.subr.mxu0 0.0
        %3284 = vmatpush1.xpose.msra.mxu0 0.0
        %3285 = vmatprep.subr.mxu0 0.0
        %3286 = vmatpush1.xpose.msra.mxu0 0.0
        %3287 = vmatprep.subr.mxu0 0.0
        %3288 = vmatpush1.xpose.msra.mxu0 0.0
        %3289 = vmatprep.subr.mxu0 0.0
        %3290 = vmatpush1.xpose.msra.mxu0 0.0
        %3291 = vmatprep.subr.mxu0 0.0
        %3292 = vmatpush1.xpose.msra.mxu0 0.0
        %3293 = vmatprep.subr.mxu0 0.0
        %3294 = vmatpush1.xpose.msra.mxu0 0.0
        %3295 = vmatprep.subr.mxu0 0.0
        %3296 = vmatpush1.xpose.msra.mxu0 0.0
        %3297 = vmatprep.subr.mxu0 0.0
        %3298 = vmatpush1.xpose.msra.mxu0 0.0
        %3299 = vmatprep.subr.mxu0 0.0
        %3300 = vmatpush1.xpose.msra.mxu0 0.0
        %3301 = vmatprep.subr.mxu0 0.0
        %3302 = vmatpush1.xpose.msra.mxu0 0.0
        %3303 = vmatprep.subr.mxu0 0.0
        %3304 = vmatpush1.xpose.msra.mxu0 0.0
        %3305 = vmatprep.subr.mxu0 0.0
        %3306 = vmatpush1.xpose.msra.mxu0 0.0
        %3307 = vmatprep.subr.mxu0 0.0
        %3308 = vmatpush1.xpose.msra.mxu0 0.0
        %3309 = vmatprep.subr.mxu0 0.0
        %3310 = vmatpush1.xpose.msra.mxu0 0.0
        %3311 = vmatprep.mubr.f32.mxu0 0.0
        %v3312 = vand.u32 %v3244, 4294901760
        %v3313 = vsub.f32 %v3244, %v3312
        %v3314 = vand.u32 %v3313, 4294901760
        %v3315 = vsub.f32 %v3313, %v3314
        %v3316 = vand.u32 %v3315, 4294901760
        %3317 = vmatmul.mubr.f32.gmra.mrb[0].mxu0 %v3316
        %v3318 = vpop.f32.mrb[0].mxu0
        %v3319 = vadd.f32 0.0, %v3318
        %v3320 = vpop.f32.mrb[0].mxu0
        %3321 = vdwg.mxu0
        %3322 = vmatprep.subr.mxu0 0.0
        %v3323 = vand.u32 %v383, 4294901760
        %v3324 = vsub.f32 %v383, %v3323
        %v3325 = vand.u32 %v3324, 4294901760
        %v3326 = vsub.f32 %v3324, %v3325
        %v3327 = vand.u32 %v3326, 4294901760
        %3328 = vmatpush1.xpose.msra.mxu0 %v3327
        %3329 = vmatprep.subr.mxu0 0.0
        %3330 = vmatpush1.xpose.msra.mxu0 0.0
        %3331 = vmatprep.subr.mxu0 0.0
        %3332 = vmatpush1.xpose.msra.mxu0 0.0
        %3333 = vmatprep.subr.mxu0 0.0
        %3334 = vmatpush1.xpose.msra.mxu0 0.0
        %3335 = vmatprep.subr.mxu0 0.0
        %3336 = vmatpush1.xpose.msra.mxu0 0.0
        %3337 = vmatprep.subr.mxu0 0.0
        %3338 = vmatpush1.xpose.msra.mxu0 0.0
        %3339 = vmatprep.subr.mxu0 0.0
        %3340 = vmatpush1.xpose.msra.mxu0 0.0
        %3341 = vmatprep.subr.mxu0 0.0
        %3342 = vmatpush1.xpose.msra.mxu0 0.0
        %3343 = vmatprep.subr.mxu0 0.0
        %3344 = vmatpush1.xpose.msra.mxu0 0.0
        %3345 = vmatprep.subr.mxu0 0.0
        %3346 = vmatpush1.xpose.msra.mxu0 0.0
        %3347 = vmatprep.subr.mxu0 0.0
        %3348 = vmatpush1.xpose.msra.mxu0 0.0
        %3349 = vmatprep.subr.mxu0 0.0
        %3350 = vmatpush1.xpose.msra.mxu0 0.0
        %3351 = vmatprep.subr.mxu0 0.0
        %3352 = vmatpush1.xpose.msra.mxu0 0.0
        %3353 = vmatprep.subr.mxu0 0.0
        %3354 = vmatpush1.xpose.msra.mxu0 0.0
        %3355 = vmatprep.subr.mxu0 0.0
        %3356 = vmatpush1.xpose.msra.mxu0 0.0
        %3357 = vmatprep.subr.mxu0 0.0
        %3358 = vmatpush1.xpose.msra.mxu0 0.0
        %3359 = vmatprep.subr.mxu0 0.0
        %3360 = vmatpush1.xpose.msra.mxu0 0.0
        %3361 = vmatprep.subr.mxu0 0.0
        %3362 = vmatpush1.xpose.msra.mxu0 0.0
        %3363 = vmatprep.subr.mxu0 0.0
        %3364 = vmatpush1.xpose.msra.mxu0 0.0
        %3365 = vmatprep.subr.mxu0 0.0
        %3366 = vmatpush1.xpose.msra.mxu0 0.0
        %3367 = vmatprep.subr.mxu0 0.0
        %3368 = vmatpush1.xpose.msra.mxu0 0.0
        %3369 = vmatprep.subr.mxu0 0.0
        %3370 = vmatpush1.xpose.msra.mxu0 0.0
        %3371 = vmatprep.subr.mxu0 0.0
        %3372 = vmatpush1.xpose.msra.mxu0 0.0
        %3373 = vmatprep.subr.mxu0 0.0
        %3374 = vmatpush1.xpose.msra.mxu0 0.0
        %3375 = vmatprep.subr.mxu0 0.0
        %3376 = vmatpush1.xpose.msra.mxu0 0.0
        %3377 = vmatprep.subr.mxu0 0.0
        %3378 = vmatpush1.xpose.msra.mxu0 0.0
        %3379 = vmatprep.subr.mxu0 0.0
        %3380 = vmatpush1.xpose.msra.mxu0 0.0
        %3381 = vmatprep.subr.mxu0 0.0
        %3382 = vmatpush1.xpose.msra.mxu0 0.0
        %3383 = vmatprep.subr.mxu0 0.0
        %3384 = vmatpush1.xpose.msra.mxu0 0.0
        %3385 = vmatprep.subr.mxu0 0.0
        %3386 = vmatpush1.xpose.msra.mxu0 0.0
        %3387 = vmatprep.subr.mxu0 0.0
        %3388 = vmatpush1.xpose.msra.mxu0 0.0
        %3389 = vmatprep.subr.mxu0 0.0
        %3390 = vmatpush1.xpose.msra.mxu0 0.0
        %3391 = vmatprep.mubr.f32.mxu0 0.0
        %v3392 = vand.u32 %v3244, 4294901760
        %3393 = vmatmul.mubr.f32.gmra.mrb[0].mxu0 %v3392
        %v3394 = vpop.f32.mrb[0].mxu0
        %v3395 = vadd.f32 %v3319, %v3394
        %v3396 = vpop.f32.mrb[0].mxu0
        %3397 = vdwg.mxu0
        %3398 = vmatprep.subr.mxu0 0.0
        %v3399 = vand.u32 %v383, 4294901760
        %v3400 = vsub.f32 %v383, %v3399
        %3401 = vmatpush1.xpose.msra.mxu0 %v3400
        %3402 = vmatprep.subr.mxu0 0.0
        %3403 = vmatpush1.xpose.msra.mxu0 0.0
        %3404 = vmatprep.subr.mxu0 0.0
        %3405 = vmatpush1.xpose.msra.mxu0 0.0
        %3406 = vmatprep.subr.mxu0 0.0
        %3407 = vmatpush1.xpose.msra.mxu0 0.0
        %3408 = vmatprep.subr.mxu0 0.0
        %3409 = vmatpush1.xpose.msra.mxu0 0.0
        %3410 = vmatprep.subr.mxu0 0.0
        %3411 = vmatpush1.xpose.msra.mxu0 0.0
        %3412 = vmatprep.subr.mxu0 0.0
        %3413 = vmatpush1.xpose.msra.mxu0 0.0
        %3414 = vmatprep.subr.mxu0 0.0
        %3415 = vmatpush1.xpose.msra.mxu0 0.0
        %3416 = vmatprep.subr.mxu0 0.0
        %3417 = vmatpush1.xpose.msra.mxu0 0.0
        %3418 = vmatprep.subr.mxu0 0.0
        %3419 = vmatpush1.xpose.msra.mxu0 0.0
        %3420 = vmatprep.subr.mxu0 0.0
        %3421 = vmatpush1.xpose.msra.mxu0 0.0
        %3422 = vmatprep.subr.mxu0 0.0
        %3423 = vmatpush1.xpose.msra.mxu0 0.0
        %3424 = vmatprep.subr.mxu0 0.0
        %3425 = vmatpush1.xpose.msra.mxu0 0.0
        %3426 = vmatprep.subr.mxu0 0.0
        %3427 = vmatpush1.xpose.msra.mxu0 0.0
        %3428 = vmatprep.subr.mxu0 0.0
        %3429 = vmatpush1.xpose.msra.mxu0 0.0
        %3430 = vmatprep.subr.mxu0 0.0
        %3431 = vmatpush1.xpose.msra.mxu0 0.0
        %3432 = vmatprep.subr.mxu0 0.0
        %3433 = vmatpush1.xpose.msra.mxu0 0.0
        %3434 = vmatprep.subr.mxu0 0.0
        %3435 = vmatpush1.xpose.msra.mxu0 0.0
        %3436 = vmatprep.subr.mxu0 0.0
        %3437 = vmatpush1.xpose.msra.mxu0 0.0
        %3438 = vmatprep.subr.mxu0 0.0
        %3439 = vmatpush1.xpose.msra.mxu0 0.0
        %3440 = vmatprep.subr.mxu0 0.0
        %3441 = vmatpush1.xpose.msra.mxu0 0.0
        %3442 = vmatprep.subr.mxu0 0.0
        %3443 = vmatpush1.xpose.msra.mxu0 0.0
        %3444 = vmatprep.subr.mxu0 0.0
        %3445 = vmatpush1.xpose.msra.mxu0 0.0
        %3446 = vmatprep.subr.mxu0 0.0
        %3447 = vmatpush1.xpose.msra.mxu0 0.0
        %3448 = vmatprep.subr.mxu0 0.0
        %3449 = vmatpush1.xpose.msra.mxu0 0.0
        %3450 = vmatprep.subr.mxu0 0.0
        %3451 = vmatpush1.xpose.msra.mxu0 0.0
        %3452 = vmatprep.subr.mxu0 0.0
        %3453 = vmatpush1.xpose.msra.mxu0 0.0
        %3454 = vmatprep.subr.mxu0 0.0
        %3455 = vmatpush1.xpose.msra.mxu0 0.0
        %3456 = vmatprep.subr.mxu0 0.0
        %3457 = vmatpush1.xpose.msra.mxu0 0.0
        %3458 = vmatprep.subr.mxu0 0.0
        %3459 = vmatpush1.xpose.msra.mxu0 0.0
        %3460 = vmatprep.subr.mxu0 0.0
        %3461 = vmatpush1.xpose.msra.mxu0 0.0
        %3462 = vmatprep.subr.mxu0 0.0
        %3463 = vmatpush1.xpose.msra.mxu0 0.0
        %3464 = vmatprep.mubr.f32.mxu0 0.0
        %v3465 = vand.u32 %v3244, 4294901760
        %v3466 = vsub.f32 %v3244, %v3465
        %3467 = vmatmul.mubr.f32.gmra.mrb[0].mxu0 %v3466
        %v3468 = vpop.f32.mrb[0].mxu0
        %v3469 = vadd.f32 %v3395, %v3468
        %v3470 = vpop.f32.mrb[0].mxu0
        %3471 = vdwg.mxu0
        %3472 = vmatprep.subr.mxu0 0.0
        %v3473 = vand.u32 %v383, 4294901760
        %3474 = vmatpush1.xpose.msra.mxu0 %v3473
        %3475 = vmatprep.subr.mxu0 0.0
        %3476 = vmatpush1.xpose.msra.mxu0 0.0
        %3477 = vmatprep.subr.mxu0 0.0
        %3478 = vmatpush1.xpose.msra.mxu0 0.0
        %3479 = vmatprep.subr.mxu0 0.0
        %3480 = vmatpush1.xpose.msra.mxu0 0.0
        %3481 = vmatprep.subr.mxu0 0.0
        %3482 = vmatpush1.xpose.msra.mxu0 0.0
        %3483 = vmatprep.subr.mxu0 0.0
        %3484 = vmatpush1.xpose.msra.mxu0 0.0
        %3485 = vmatprep.subr.mxu0 0.0
        %3486 = vmatpush1.xpose.msra.mxu0 0.0
        %3487 = vmatprep.subr.mxu0 0.0
        %3488 = vmatpush1.xpose.msra.mxu0 0.0
        %3489 = vmatprep.subr.mxu0 0.0
        %3490 = vmatpush1.xpose.msra.mxu0 0.0
        %3491 = vmatprep.subr.mxu0 0.0
        %3492 = vmatpush1.xpose.msra.mxu0 0.0
        %3493 = vmatprep.subr.mxu0 0.0
        %3494 = vmatpush1.xpose.msra.mxu0 0.0
        %3495 = vmatprep.subr.mxu0 0.0
        %3496 = vmatpush1.xpose.msra.mxu0 0.0
        %3497 = vmatprep.subr.mxu0 0.0
        %3498 = vmatpush1.xpose.msra.mxu0 0.0
        %3499 = vmatprep.subr.mxu0 0.0
        %3500 = vmatpush1.xpose.msra.mxu0 0.0
        %3501 = vmatprep.subr.mxu0 0.0
        %3502 = vmatpush1.xpose.msra.mxu0 0.0
        %3503 = vmatprep.subr.mxu0 0.0
        %3504 = vmatpush1.xpose.msra.mxu0 0.0
        %3505 = vmatprep.subr.mxu0 0.0
        %3506 = vmatpush1.xpose.msra.mxu0 0.0
        %3507 = vmatprep.subr.mxu0 0.0
        %3508 = vmatpush1.xpose.msra.mxu0 0.0
        %3509 = vmatprep.subr.mxu0 0.0
        %3510 = vmatpush1.xpose.msra.mxu0 0.0
        %3511 = vmatprep.subr.mxu0 0.0
        %3512 = vmatpush1.xpose.msra.mxu0 0.0
        %3513 = vmatprep.subr.mxu0 0.0
        %3514 = vmatpush1.xpose.msra.mxu0 0.0
        %3515 = vmatprep.subr.mxu0 0.0
        %3516 = vmatpush1.xpose.msra.mxu0 0.0
        %3517 = vmatprep.subr.mxu0 0.0
        %3518 = vmatpush1.xpose.msra.mxu0 0.0
        %3519 = vmatprep.subr.mxu0 0.0
        %3520 = vmatpush1.xpose.msra.mxu0 0.0
        %3521 = vmatprep.subr.mxu0 0.0
        %3522 = vmatpush1.xpose.msra.mxu0 0.0
        %3523 = vmatprep.subr.mxu0 0.0
        %3524 = vmatpush1.xpose.msra.mxu0 0.0
        %3525 = vmatprep.subr.mxu0 0.0
        %3526 = vmatpush1.xpose.msra.mxu0 0.0
        %3527 = vmatprep.subr.mxu0 0.0
        %3528 = vmatpush1.xpose.msra.mxu0 0.0
        %3529 = vmatprep.subr.mxu0 0.0
        %3530 = vmatpush1.xpose.msra.mxu0 0.0
        %3531 = vmatprep.subr.mxu0 0.0
        %3532 = vmatpush1.xpose.msra.mxu0 0.0
        %3533 = vmatprep.subr.mxu0 0.0
        %3534 = vmatpush1.xpose.msra.mxu0 0.0
        %3535 = vmatprep.subr.mxu0 0.0
        %3536 = vmatpush1.xpose.msra.mxu0 0.0
        %3537 = vmatprep.mubr.f32.mxu0 0.0
        %v3538 = vand.u32 %v3244, 4294901760
        %v3539 = vsub.f32 %v3244, %v3538
        %v3540 = vand.u32 %v3539, 4294901760
        %3541 = vmatmul.mubr.f32.gmra.mrb[0].mxu0 %v3540
        %v3542 = vpop.f32.mrb[0].mxu0
        %v3543 = vadd.f32 %v3469, %v3542
        %v3544 = vpop.f32.mrb[0].mxu0
        %3545 = vdwg.mxu0
        %3546 = vmatprep.subr.mxu0 0.0
        %v3547 = vand.u32 %v383, 4294901760
        %v3548 = vsub.f32 %v383, %v3547
        %v3549 = vand.u32 %v3548, 4294901760
        %3550 = vmatpush1.xpose.msra.mxu0 %v3549
        %3551 = vmatprep.subr.mxu0 0.0
        %3552 = vmatpush1.xpose.msra.mxu0 0.0
        %3553 = vmatprep.subr.mxu0 0.0
        %3554 = vmatpush1.xpose.msra.mxu0 0.0
        %3555 = vmatprep.subr.mxu0 0.0
        %3556 = vmatpush1.xpose.msra.mxu0 0.0
        %3557 = vmatprep.subr.mxu0 0.0
        %3558 = vmatpush1.xpose.msra.mxu0 0.0
        %3559 = vmatprep.subr.mxu0 0.0
        %3560 = vmatpush1.xpose.msra.mxu0 0.0
        %3561 = vmatprep.subr.mxu0 0.0
        %3562 = vmatpush1.xpose.msra.mxu0 0.0
        %3563 = vmatprep.subr.mxu0 0.0
        %3564 = vmatpush1.xpose.msra.mxu0 0.0
        %3565 = vmatprep.subr.mxu0 0.0
        %3566 = vmatpush1.xpose.msra.mxu0 0.0
        %3567 = vmatprep.subr.mxu0 0.0
        %3568 = vmatpush1.xpose.msra.mxu0 0.0
        %3569 = vmatprep.subr.mxu0 0.0
        %3570 = vmatpush1.xpose.msra.mxu0 0.0
        %3571 = vmatprep.subr.mxu0 0.0
        %3572 = vmatpush1.xpose.msra.mxu0 0.0
        %3573 = vmatprep.subr.mxu0 0.0
        %3574 = vmatpush1.xpose.msra.mxu0 0.0
        %3575 = vmatprep.subr.mxu0 0.0
        %3576 = vmatpush1.xpose.msra.mxu0 0.0
        %3577 = vmatprep.subr.mxu0 0.0
        %3578 = vmatpush1.xpose.msra.mxu0 0.0
        %3579 = vmatprep.subr.mxu0 0.0
        %3580 = vmatpush1.xpose.msra.mxu0 0.0
        %3581 = vmatprep.subr.mxu0 0.0
        %3582 = vmatpush1.xpose.msra.mxu0 0.0
        %3583 = vmatprep.subr.mxu0 0.0
        %3584 = vmatpush1.xpose.msra.mxu0 0.0
        %3585 = vmatprep.subr.mxu0 0.0
        %3586 = vmatpush1.xpose.msra.mxu0 0.0
        %3587 = vmatprep.subr.mxu0 0.0
        %3588 = vmatpush1.xpose.msra.mxu0 0.0
        %3589 = vmatprep.subr.mxu0 0.0
        %3590 = vmatpush1.xpose.msra.mxu0 0.0
        %3591 = vmatprep.subr.mxu0 0.0
        %3592 = vmatpush1.xpose.msra.mxu0 0.0
        %3593 = vmatprep.subr.mxu0 0.0
        %3594 = vmatpush1.xpose.msra.mxu0 0.0
        %3595 = vmatprep.subr.mxu0 0.0
        %3596 = vmatpush1.xpose.msra.mxu0 0.0
        %3597 = vmatprep.subr.mxu0 0.0
        %3598 = vmatpush1.xpose.msra.mxu0 0.0
        %3599 = vmatprep.subr.mxu0 0.0
        %3600 = vmatpush1.xpose.msra.mxu0 0.0
        %3601 = vmatprep.subr.mxu0 0.0
        %3602 = vmatpush1.xpose.msra.mxu0 0.0
        %3603 = vmatprep.subr.mxu0 0.0
        %3604 = vmatpush1.xpose.msra.mxu0 0.0
        %3605 = vmatprep.subr.mxu0 0.0
        %3606 = vmatpush1.xpose.msra.mxu0 0.0
        %3607 = vmatprep.subr.mxu0 0.0
        %3608 = vmatpush1.xpose.msra.mxu0 0.0
        %3609 = vmatprep.subr.mxu0 0.0
        %3610 = vmatpush1.xpose.msra.mxu0 0.0
        %3611 = vmatprep.subr.mxu0 0.0
        %3612 = vmatpush1.xpose.msra.mxu0 0.0
        %3613 = vmatprep.mubr.f32.mxu0 0.0
        %v3614 = vand.u32 %v3244, 4294901760
        %3615 = vmatmul.mubr.f32.gmra.mrb[0].mxu0 %v3614
        %v3616 = vpop.f32.mrb[0].mxu0
        %v3617 = vadd.f32 %v3543, %v3616
        %v3618 = vpop.f32.mrb[0].mxu0
        %3619 = vdwg.mxu0
        %3620 = vmatprep.subr.mxu0 0.0
        %v3621 = vand.u32 %v383, 4294901760
        %3622 = vmatpush1.xpose.msra.mxu0 %v3621
        %3623 = vmatprep.subr.mxu0 0.0
        %3624 = vmatpush1.xpose.msra.mxu0 0.0
        %3625 = vmatprep.subr.mxu0 0.0
        %3626 = vmatpush1.xpose.msra.mxu0 0.0
        %3627 = vmatprep.subr.mxu0 0.0
        %3628 = vmatpush1.xpose.msra.mxu0 0.0
        %3629 = vmatprep.subr.mxu0 0.0
        %3630 = vmatpush1.xpose.msra.mxu0 0.0
        %3631 = vmatprep.subr.mxu0 0.0
        %3632 = vmatpush1.xpose.msra.mxu0 0.0
        %3633 = vmatprep.subr.mxu0 0.0
        %3634 = vmatpush1.xpose.msra.mxu0 0.0
        %3635 = vmatprep.subr.mxu0 0.0
        %3636 = vmatpush1.xpose.msra.mxu0 0.0
        %3637 = vmatprep.subr.mxu0 0.0
        %3638 = vmatpush1.xpose.msra.mxu0 0.0
        %3639 = vmatprep.subr.mxu0 0.0
        %3640 = vmatpush1.xpose.msra.mxu0 0.0
        %3641 = vmatprep.subr.mxu0 0.0
        %3642 = vmatpush1.xpose.msra.mxu0 0.0
        %3643 = vmatprep.subr.mxu0 0.0
        %3644 = vmatpush1.xpose.msra.mxu0 0.0
        %3645 = vmatprep.subr.mxu0 0.0
        %3646 = vmatpush1.xpose.msra.mxu0 0.0
        %3647 = vmatprep.subr.mxu0 0.0
        %3648 = vmatpush1.xpose.msra.mxu0 0.0
        %3649 = vmatprep.subr.mxu0 0.0
        %3650 = vmatpush1.xpose.msra.mxu0 0.0
        %3651 = vmatprep.subr.mxu0 0.0
        %3652 = vmatpush1.xpose.msra.mxu0 0.0
        %3653 = vmatprep.subr.mxu0 0.0
        %3654 = vmatpush1.xpose.msra.mxu0 0.0
        %3655 = vmatprep.subr.mxu0 0.0
        %3656 = vmatpush1.xpose.msra.mxu0 0.0
        %3657 = vmatprep.subr.mxu0 0.0
        %3658 = vmatpush1.xpose.msra.mxu0 0.0
        %3659 = vmatprep.subr.mxu0 0.0
        %3660 = vmatpush1.xpose.msra.mxu0 0.0
        %3661 = vmatprep.subr.mxu0 0.0
        %3662 = vmatpush1.xpose.msra.mxu0 0.0
        %3663 = vmatprep.subr.mxu0 0.0
        %3664 = vmatpush1.xpose.msra.mxu0 0.0
        %3665 = vmatprep.subr.mxu0 0.0
        %3666 = vmatpush1.xpose.msra.mxu0 0.0
        %3667 = vmatprep.subr.mxu0 0.0
        %3668 = vmatpush1.xpose.msra.mxu0 0.0
        %3669 = vmatprep.subr.mxu0 0.0
        %3670 = vmatpush1.xpose.msra.mxu0 0.0
        %3671 = vmatprep.subr.mxu0 0.0
        %3672 = vmatpush1.xpose.msra.mxu0 0.0
        %3673 = vmatprep.subr.mxu0 0.0
        %3674 = vmatpush1.xpose.msra.mxu0 0.0
        %3675 = vmatprep.subr.mxu0 0.0
        %3676 = vmatpush1.xpose.msra.mxu0 0.0
        %3677 = vmatprep.subr.mxu0 0.0
        %3678 = vmatpush1.xpose.msra.mxu0 0.0
        %3679 = vmatprep.subr.mxu0 0.0
        %3680 = vmatpush1.xpose.msra.mxu0 0.0
        %3681 = vmatprep.subr.mxu0 0.0
        %3682 = vmatpush1.xpose.msra.mxu0 0.0
        %3683 = vmatprep.subr.mxu0 0.0
        %3684 = vmatpush1.xpose.msra.mxu0 0.0
        %3685 = vmatprep.mubr.f32.mxu0 0.0
        %v3686 = vand.u32 %v3244, 4294901760
        %3687 = vmatmul.mubr.f32.gmra.mrb[0].mxu0 %v3686
        %v3688 = vpop.f32.mrb[0].mxu0
        %v3689 = vadd.f32 %v3617, %v3688
        %v3690 = vpop.f32.mrb[0].mxu0
        %3691 = vdwg.mxu0
        %3692 = vset.pattern.permute.xlu0 3
        %3693 = vperm.xlu0 %3692, %v1322
        %v3694 = vpop.permute.xlu0 %3693
        %v3696 = vlaneseq
        %v3697 = vshrl.u32 %v3696, 7
        %v3698 = vsub.s32 3, %v3697
        %v3699 = vrot.slane %v828, %v3698
        %v3700 = vadd.f32 %v3694, %v3699
        %v3701 = vtanh.pop %v3700
        %v3702 = vstv %s834
        %v3703 = vmul.f32 %v3702, %v3701
        %3704 = vset.pattern.permute.xlu0 7
        %3705 = vperm.xlu0 %3704, %v1322
        %v3706 = vpop.permute.xlu0 %3705
        %v3708 = vlaneseq
        %v3709 = vshrl.u32 %v3708, 7
        %v3710 = vsub.s32 7, %v3709
        %v3711 = vrot.slane %v828, %v3710
        %v3712 = vadd.f32 %v3706, %v3711
        %v3713 = vtanh.pop %v3712
        %v3714 = vadd.f32 %v3689, %v3703
        %v3715 = vsub.f32 %v3689, %v3703
        %v3716 = vmul.f32 %v3713, %v3715
        %v3717 = vadd.f32 %v3714, %v3716
        %v3718 = vadd.f32 %v3241, %v3717
        %vm3719 = vcmask 64512
        %3720 = vst.msk [vmem:[%s354] sm:$0xff] %vm3719, %v3718
        %s3721 = sand.u32 %s217, 1
        %s3722 = scalar_lea.sflag [#allocation4], %s3721
        %s3723 = sand.u32 %s217, 1
        %s3724 = smul.addr %s3723, 8
        %s3725 = scalar_lea.vmem [#allocation7], %s3724
        // Predicated region
        $region57: #{tpu_custom_call.1} parent=47 // pred_check
          %p3726 = pneg %p227
        $region58: #{tpu_custom_call.1} parent=47 // pred_check_branch
          %3728 = sbr.rel (%p3726) target = $region60
        $region59: #{tpu_custom_call.1} parent=47 // pred_region
          %s3730 = ssub.s32 128, 128
          %3731 = vsyncadd %s3722, %s3730
          %s3732 = sadd.s32 %s31, %s32
          %s3733 = sadd.s32 %s3732, %s30
          %s3734 = smul.addr %s3733, 128
          %s3735 = scalar_lea.hbm %s7, %s3734
          %s3737 = sshll.u32 %s3725, 4
          %s3738 = int_to_ptr.vmem [resolvable:$true] %s3737
          %3740 = dma.vmem_to_hbm [thread:$0]  %s3738, 128, %s3735, %s3722
        $region60: #{tpu_custom_call.1} parent=47 // pred_fallthru
          _
      $region48: #{tpu_custom_call.1} parent=5 // pred_fallthru
        _
      %p3741 = scmp.le.s32.totalorder 2, %s20
      // Predicated region
      $region61: #{tpu_custom_call.1} parent=5 // pred_check
        %p3742 = pneg %p3741
      $region62: #{tpu_custom_call.1} parent=5 // pred_check_branch
        %3744 = sbr.rel (%p3742) target = $region64
      $region63: #{tpu_custom_call.1} parent=5 // pred_region
        %s3745 = ssub.s32 %s20, 2
        // Predicated region
        $region65: #{tpu_custom_call.1} parent=63 // pred_check
          %p3746 = pneg %p233
        $region66: #{tpu_custom_call.1} parent=63 // pred_check_branch
          %3748 = sbr.rel (%p3746) target = $region68
        $region67: #{tpu_custom_call.1} parent=63 // pred_region
          %s3749 = sand.u32 %s218, 1
          %s3750 = scalar_lea.sflag [#allocation4], %s3749
          %s3751 = sand.u32 %s218, 1
          %s3752 = smul.addr %s3751, 8
          %s3753 = scalar_lea.vmem [#allocation7], %s3752
          %3754 = dma.done %s3750, 128
        $region68: #{tpu_custom_call.1} parent=63 // pred_fallthru
          _
      $region64: #{tpu_custom_call.1} parent=5 // pred_fallthru
        _
    $region6: #{tpu_custom_call.1} parent=1 // loop_footer
      %s24 = sadd.s32 1, %s20
    $region7: #{tpu_custom_call.1} parent=1 // loop_footer_branch
      %19 = sbr.rel target = $region3
    $region8: #{tpu_custom_call.1} parent=1 // loop_exit
      _
    %3755 = vsyncpa [#allocation3], 1
    %s3756 = scalar_lea.sflag [#allocation3], 1
    %3757 = vsyncpa %s3756, 1
    %3758 = vsyncpa [#allocation4], 1
    %s3759 = scalar_lea.sflag [#allocation4], 1
    %3760 = vsyncpa %s3759, 1
    %3761 = vsyncpa [#allocation5], 1
    %s3762 = scalar_lea.sflag [#allocation5], 1
    %3763 = vsyncpa %s3762, 1

</llo_original>
